<compile_context>
chip_gen: v7x
topology: tpu7x:2x2x1
jax: 0.10.0
libtpu: 0.0.40
codegen_flags: <defaults>
</compile_context>

<pallas_src>
import jax
import jax.numpy as jnp
from jax.experimental import pallas as pl
from jax.experimental.pallas import tpu as pltpu

# ----- small synthetic ELECTRA config -----
VOCAB = 100
TYPE_VOCAB = 2
MAX_POS = 16
HIDDEN = 32
N_LAYERS = 2
N_HEADS = 4
HEAD_DIM = HIDDEN // N_HEADS
INTER = 64
LN_EPS = 1e-12
B, S = 2, 8
N_CLASS = 2  # number of prompt (masked-local) positions per row


def _gelu(x):
    # TODO(synk): HF Electra uses exact (erf) GELU; tanh approximation used here.
    return 0.5 * x * (1.0 + jnp.tanh(0.7978845608028654 * (x + 0.044715 * x * x * x)))


def _ln(x, gb):
    """LayerNorm over the last dim. gb is (2, H) stacked [gamma; beta]."""
    g = gb[0:1, :]
    b = gb[1:2, :]
    mu = jnp.mean(x, axis=-1, keepdims=True)
    xc = x - mu
    var = jnp.mean(xc * xc, axis=-1, keepdims=True)
    return xc * jax.lax.rsqrt(var + LN_EPS) * g + b


# ---------------- fused Pallas kernel (one batch row per grid step) ----------------
def _electra_fused_kernel(emb_ref, mask_ref, lbl_ref,
                          emb_ln_ref,
                          wqkv_ref, bqkv_ref, wo_ref, bo_ref, ln1_ref,
                          wi_ref, bi_ref, wf_ref, bf_ref, ln2_ref,
                          hdw_ref, hdb_ref, hpw_ref, hpb_ref,
                          prob_ref, bce_ref):
    x = emb_ref[0]                       # (S, H) summed embeddings for this row
    am = mask_ref[0]                     # (1, S) attention mask (float)
    y = lbl_ref[0]                       # (1, S) float labels
    bias = (1.0 - am) * (-1e9)           # additive attention-mask bias, (1, S)

    x = _ln(x, emb_ln_ref[...])          # embedding LayerNorm
    scale = 1.0 / (HEAD_DIM ** 0.5)

    for l in range(N_LAYERS):            # static unroll over layers
        # --- fused QKV projection: one (S,H) @ (H,3H) matmul ---
        qkv = jnp.dot(x, wqkv_ref[l], preferred_element_type=jnp.float32) + bqkv_ref[l]
        wo_l = wo_ref[l]                 # (H, H)

        # --- per-head attention; the output projection is folded into the
        #     per-head accumulation (ctx @ Wo = sum_h ctx_h @ Wo[h*D:(h+1)*D]) ---
        attn_acc = None
        for h in range(N_HEADS):
            lo = h * HEAD_DIM
            hi = (h + 1) * HEAD_DIM
            q_h = qkv[:, lo:hi]                            # (S, D)
            k_h = qkv[:, HIDDEN + lo:HIDDEN + hi]          # (S, D)
            v_h = qkv[:, 2 * HIDDEN + lo:2 * HIDDEN + hi]  # (S, D)

            s = jnp.einsum("qd,kd->qk", q_h, k_h,
                           preferred_element_type=jnp.float32) * scale      # (S, S)
            s = s + bias
            s = s - jnp.max(s, axis=-1, keepdims=True)
            p = jnp.exp(s)
            p = p * pl.reciprocal(jnp.sum(p, axis=-1, keepdims=True), approx=True)
            ctx_h = jnp.dot(p, v_h, preferred_element_type=jnp.float32)     # (S, D)
            contrib = jnp.dot(ctx_h, wo_l[lo:hi, :],
                              preferred_element_type=jnp.float32)           # (S, H)
            attn_acc = contrib if attn_acc is None else attn_acc + contrib

        attn_out = attn_acc + bo_ref[l]
        x = _ln(x + attn_out, ln1_ref[l])                                   # residual + LN fused

        # --- feed-forward ---
        inter = _gelu(jnp.dot(x, wi_ref[l], preferred_element_type=jnp.float32) + bi_ref[l])
        ffn = jnp.dot(inter, wf_ref[l], preferred_element_type=jnp.float32) + bf_ref[l]
        x = _ln(x + ffn, ln2_ref[l])                                        # residual + LN fused

    # --- discriminator head (ElectraForPreTraining) ---
    z = _gelu(jnp.dot(x, hdw_ref[...], preferred_element_type=jnp.float32) + hdb_ref[...])
    # Lane-dense logits (1, S): contract hidden dim of (1,H) weights with z (S,H).
    logits = jnp.einsum("oh,sh->os", hpw_ref[...], z,
                        preferred_element_type=jnp.float32) + hpb_ref[...]  # (1, S)

    # prob of "original" = 1 - sigmoid(logits) = sigmoid(-logits)
    prob_ref[0] = 1.0 / (1.0 + jnp.exp(logits))

    # BCEWithLogits per token (masked): max(x,0) - x*y + log(1 + exp(-|x|))
    per = (jnp.maximum(logits, 0.0) - logits * y
           + jnp.log(1.0 + jnp.exp(-jnp.abs(logits))))
    bce_ref[0] = per * am


# ---------------- parameter init (deterministic, synthetic, pre-stacked) ----------------
def init_params(key):
    keys = iter(jax.random.split(key, 32))

    def nrm(shape):
        return 0.02 * jax.random.normal(next(keys), shape, jnp.float32)

    ln_gb = jnp.stack([jnp.ones((HIDDEN,), jnp.float32),
                       jnp.zeros((HIDDEN,), jnp.float32)])        # (2, H) = [gamma; beta]

    return {
        "word_emb": nrm((VOCAB, HIDDEN)),
        "pos_emb": nrm((MAX_POS, HIDDEN)),
        "type_emb": nrm((TYPE_VOCAB, HIDDEN)),
        "emb_ln": ln_gb,
        # fused QKV weights: columns [0:H]=Q, [H:2H]=K, [2H:3H]=V
        "wqkv": nrm((N_LAYERS, HIDDEN, 3 * HIDDEN)),
        "bqkv": jnp.zeros((N_LAYERS, 1, 3 * HIDDEN), jnp.float32),
        "wo": nrm((N_LAYERS, HIDDEN, HIDDEN)),
        "bo": jnp.zeros((N_LAYERS, 1, HIDDEN), jnp.float32),
        "ln1": jnp.tile(ln_gb[None], (N_LAYERS, 1, 1)),
        "wi": nrm((N_LAYERS, HIDDEN, INTER)),
        "bi": jnp.zeros((N_LAYERS, 1, INTER), jnp.float32),
        "wf": nrm((N_LAYERS, INTER, HIDDEN)),
        "bf": jnp.zeros((N_LAYERS, 1, HIDDEN), jnp.float32),
        "ln2": jnp.tile(ln_gb[None], (N_LAYERS, 1, 1)),
        "head_dense_w": nrm((HIDDEN, HIDDEN)),
        "head_dense_b": jnp.zeros((1, HIDDEN), jnp.float32),
        "head_pred_w": nrm((1, HIDDEN)),          # stored row-major (1, H)
        "head_pred_b": jnp.zeros((1, 1), jnp.float32),
    }


# ---------------- forward (ElectraForPrompt semantics) ----------------
def forward(params, input_ids, input_mask, segment_ids, full_labels, mask_local):
    pos_ids = jnp.arange(S)
    emb = (params["word_emb"][input_ids]
           + params["pos_emb"][pos_ids][None, :, :]
           + params["type_emb"][segment_ids])                           # (B, S, H)
    mask_f = input_mask.astype(jnp.float32).reshape(B, 1, S)
    labels_f = full_labels.astype(jnp.float32).reshape(B, 1, S)

    row_spec_emb = pl.BlockSpec((1, S, HIDDEN), lambda b: (b, 0, 0))
    row_spec_vec = pl.BlockSpec((1, 1, S), lambda b: (b, 0, 0))

    def w2(shape):
        return pl.BlockSpec(shape, lambda b: (0, 0))

    def w3(shape):
        return pl.BlockSpec(shape, lambda b: (0, 0, 0))

    prob3, bce3 = pl.pallas_call(
        _electra_fused_kernel,
        out_shape=(jax.ShapeDtypeStruct((B, 1, S), jnp.float32),
                   jax.ShapeDtypeStruct((B, 1, S), jnp.float32)),
        grid=(B,),
        in_specs=[
            row_spec_emb,                                   # emb
            row_spec_vec,                                   # attention mask
            row_spec_vec,                                   # labels
            w2((2, HIDDEN)),                                # emb_ln
            w3((N_LAYERS, HIDDEN, 3 * HIDDEN)),             # wqkv
            w3((N_LAYERS, 1, 3 * HIDDEN)),                  # bqkv
            w3((N_LAYERS, HIDDEN, HIDDEN)),                 # wo
            w3((N_LAYERS, 1, HIDDEN)),                      # bo
            w3((N_LAYERS, 2, HIDDEN)),                      # ln1
            w3((N_LAYERS, HIDDEN, INTER)),                  # wi
            w3((N_LAYERS, 1, INTER)),                       # bi
            w3((N_LAYERS, INTER, HIDDEN)),                  # wf
            w3((N_LAYERS, 1, HIDDEN)),                      # bf
            w3((N_LAYERS, 2, HIDDEN)),                      # ln2
            w2((HIDDEN, HIDDEN)),                           # head_dense_w
            w2((1, HIDDEN)),                                # head_dense_b
            w2((1, HIDDEN)),                                # head_pred_w
            w2((1, 1)),                                     # head_pred_b
        ],
        out_specs=(row_spec_vec, row_spec_vec),
        compiler_params=pltpu.CompilerParams(dimension_semantics=("parallel",)),
    )(emb, mask_f, labels_f,
      params["emb_ln"],
      params["wqkv"], params["bqkv"], params["wo"], params["bo"], params["ln1"],
      params["wi"], params["bi"], params["wf"], params["bf"], params["ln2"],
      params["head_dense_w"], params["head_dense_b"],
      params["head_pred_w"], params["head_pred_b"])

    prob = prob3.reshape(B, S)                       # 1 - sigmoid(logits) per token
    # BCEWithLogits mean over active (attention_mask==1) tokens across the whole batch.
    loss = jnp.sum(bce3) / jnp.sum(mask_f)

    # logits[mask_local.bool()].reshape(B, -1): each row has exactly N_CLASS masked
    # positions. Explicit stable ordering: masked positions first, ascending index.
    order_key = (1 - mask_local) * S + jnp.arange(S)[None, :]
    idx = jnp.argsort(order_key, axis=1)[:, :N_CLASS]
    class_prob = jnp.take_along_axis(prob, idx, axis=1)   # (B, N_CLASS)
    return loss, class_prob


if __name__ == "__main__":
    key = jax.random.PRNGKey(0)
    params = init_params(key)

    k_ids = jax.random.fold_in(key, 101)
    k_lbl = jax.random.fold_in(key, 202)
    input_ids = jax.random.randint(k_ids, (B, S), 0, VOCAB, dtype=jnp.int32)
    segment_ids = jnp.zeros((B, S), dtype=jnp.int32)
    input_mask = jnp.array([[1, 1, 1, 1, 1, 1, 1, 1],
                            [1, 1, 1, 1, 1, 1, 0, 0]], dtype=jnp.int32)
    full_labels = jax.random.randint(k_lbl, (B, S), 0, 2, dtype=jnp.int32)
    full_labels_mask_local = jnp.zeros((B, S), jnp.int32).at[:, jnp.array([2, 5])].set(1)

    fwd = jax.jit(forward)
    loss, class_prob = fwd(params, input_ids, input_mask, segment_ids,
                           full_labels, full_labels_mask_local)
    jax.block_until_ready((loss, class_prob))
    assert loss.shape == () and class_prob.shape == (B, N_CLASS)
    assert bool(jnp.isfinite(loss))
    print("KERNEL_OK")
</pallas_src>

<mosaic_0001>
module attributes {stable_mosaic.version = 11 : i64} {
  func.func @_electra_fused_kernel(%arg0: i32, %arg1: memref<1x8x32xf32, #tpu.memory_space<vmem>>, %arg2: memref<1x1x8xf32, #tpu.memory_space<vmem>>, %arg3: memref<1x1x8xf32, #tpu.memory_space<vmem>>, %arg4: memref<2x32xf32, #tpu.memory_space<vmem>>, %arg5: memref<2x32x96xf32, #tpu.memory_space<vmem>>, %arg6: memref<2x1x96xf32, #tpu.memory_space<vmem>>, %arg7: memref<2x32x32xf32, #tpu.memory_space<vmem>>, %arg8: memref<2x1x32xf32, #tpu.memory_space<vmem>>, %arg9: memref<2x2x32xf32, #tpu.memory_space<vmem>>, %arg10: memref<2x32x64xf32, #tpu.memory_space<vmem>>, %arg11: memref<2x1x64xf32, #tpu.memory_space<vmem>>, %arg12: memref<2x64x32xf32, #tpu.memory_space<vmem>>, %arg13: memref<2x1x32xf32, #tpu.memory_space<vmem>>, %arg14: memref<2x2x32xf32, #tpu.memory_space<vmem>>, %arg15: memref<32x32xf32, #tpu.memory_space<vmem>>, %arg16: memref<1x32xf32, #tpu.memory_space<vmem>>, %arg17: memref<1x32xf32, #tpu.memory_space<vmem>>, %arg18: memref<1x1xf32, #tpu.memory_space<vmem>>, %arg19: memref<1x1x8xf32, #tpu.memory_space<vmem>>, %arg20: memref<1x1x8xf32, #tpu.memory_space<vmem>>) attributes {dimension_semantics = [#tpu.dimension_semantics<parallel>], iteration_bounds = array<i64: 2>, scalar_prefetch = 0 : i64, scratch_operands = 0 : i64, tpu.core_type = #tpu.core_type<tc>, window_params = [{transform_indices = @transform_0, window_bounds = array<i64: 1, 8, 32>}, {transform_indices = @transform_1, window_bounds = array<i64: 1, 1, 8>}, {transform_indices = @transform_2, window_bounds = array<i64: 1, 1, 8>}, {pipeline_mode = #tpu.pipeline_mode<synchronous>, transform_indices = @transform_3, window_bounds = array<i64: 2, 32>}, {pipeline_mode = #tpu.pipeline_mode<synchronous>, transform_indices = @transform_4, window_bounds = array<i64: 2, 32, 96>}, {pipeline_mode = #tpu.pipeline_mode<synchronous>, transform_indices = @transform_5, window_bounds = array<i64: 2, 1, 96>}, {pipeline_mode = #tpu.pipeline_mode<synchronous>, transform_indices = @transform_6, window_bounds = array<i64: 2, 32, 32>}, {pipeline_mode = #tpu.pipeline_mode<synchronous>, transform_indices = @transform_7, window_bounds = array<i64: 2, 1, 32>}, {pipeline_mode = #tpu.pipeline_mode<synchronous>, transform_indices = @transform_8, window_bounds = array<i64: 2, 2, 32>}, {pipeline_mode = #tpu.pipeline_mode<synchronous>, transform_indices = @transform_9, window_bounds = array<i64: 2, 32, 64>}, {pipeline_mode = #tpu.pipeline_mode<synchronous>, transform_indices = @transform_10, window_bounds = array<i64: 2, 1, 64>}, {pipeline_mode = #tpu.pipeline_mode<synchronous>, transform_indices = @transform_11, window_bounds = array<i64: 2, 64, 32>}, {pipeline_mode = #tpu.pipeline_mode<synchronous>, transform_indices = @transform_12, window_bounds = array<i64: 2, 1, 32>}, {pipeline_mode = #tpu.pipeline_mode<synchronous>, transform_indices = @transform_13, window_bounds = array<i64: 2, 2, 32>}, {pipeline_mode = #tpu.pipeline_mode<synchronous>, transform_indices = @transform_14, window_bounds = array<i64: 32, 32>}, {pipeline_mode = #tpu.pipeline_mode<synchronous>, transform_indices = @transform_15, window_bounds = array<i64: 1, 32>}, {pipeline_mode = #tpu.pipeline_mode<synchronous>, transform_indices = @transform_16, window_bounds = array<i64: 1, 32>}, {pipeline_mode = #tpu.pipeline_mode<synchronous>, transform_indices = @transform_17, window_bounds = array<i64: 1, 1>}, {transform_indices = @transform_18, window_bounds = array<i64: 1, 1, 8>}, {transform_indices = @transform_19, window_bounds = array<i64: 1, 1, 8>}]} {
    %c0 = arith.constant 0 : index
    %c0_0 = arith.constant 0 : index
    %c0_1 = arith.constant 0 : index
    %0 = vector.load %arg1[%c0, %c0_0, %c0_1] : memref<1x8x32xf32, #tpu.memory_space<vmem>>, vector<1x8x32xf32>
    %1 = vector.shape_cast %0 : vector<1x8x32xf32> to vector<8x32xf32>
    %c0_2 = arith.constant 0 : index
    %c0_3 = arith.constant 0 : index
    %c0_4 = arith.constant 0 : index
    %2 = vector.load %arg2[%c0_2, %c0_3, %c0_4] : memref<1x1x8xf32, #tpu.memory_space<vmem>>, vector<1x1x8xf32>
    %3 = vector.shape_cast %2 : vector<1x1x8xf32> to vector<1x8xf32>
    %c0_5 = arith.constant 0 : index
    %c0_6 = arith.constant 0 : index
    %c0_7 = arith.constant 0 : index
    %4 = vector.load %arg3[%c0_5, %c0_6, %c0_7] : memref<1x1x8xf32, #tpu.memory_space<vmem>>, vector<1x1x8xf32>
    %5 = vector.shape_cast %4 : vector<1x1x8xf32> to vector<1x8xf32>
    %cst = arith.constant 1.000000e+00 : f32
    %6 = vector.broadcast %cst : f32 to vector<1x8xf32>
    %7 = arith.subf %6, %3 : vector<1x8xf32>
    %cst_8 = arith.constant -1.000000e+09 : f32
    %8 = vector.broadcast %cst_8 : f32 to vector<1x8xf32>
    %9 = arith.mulf %7, %8 : vector<1x8xf32>
    %c0_9 = arith.constant 0 : index
    %c0_10 = arith.constant 0 : index
    %10 = vector.load %arg4[%c0_9, %c0_10] : memref<2x32xf32, #tpu.memory_space<vmem>>, vector<2x32xf32>
    %11 = vector.extract_strided_slice %10 {offsets = [0, 0], sizes = [1, 32], strides = [1, 1]} : vector<2x32xf32> to vector<1x32xf32>
    %12 = vector.extract_strided_slice %10 {offsets = [1, 0], sizes = [1, 32], strides = [1, 1]} : vector<2x32xf32> to vector<1x32xf32>
    %cst_11 = arith.constant dense<0.000000e+00> : vector<8xf32>
    %13 = vector.multi_reduction <add>, %1, %cst_11 [1] : vector<8x32xf32> to vector<8xf32>
    %14 = vector.shape_cast %13 : vector<8xf32> to vector<8x1xf32>
    %cst_12 = arith.constant 3.200000e+01 : f32
    %15 = vector.broadcast %cst_12 : f32 to vector<8x1xf32>
    %16 = arith.divf %14, %15 : vector<8x1xf32>
    %17 = vector.broadcast %16 : vector<8x1xf32> to vector<8x32xf32>
    %18 = arith.subf %1, %17 : vector<8x32xf32>
    %19 = arith.mulf %18, %18 : vector<8x32xf32>
    %cst_13 = arith.constant dense<0.000000e+00> : vector<8xf32>
    %20 = vector.multi_reduction <add>, %19, %cst_13 [1] : vector<8x32xf32> to vector<8xf32>
    %21 = vector.shape_cast %20 : vector<8xf32> to vector<8x1xf32>
    %cst_14 = arith.constant 3.200000e+01 : f32
    %22 = vector.broadcast %cst_14 : f32 to vector<8x1xf32>
    %23 = arith.divf %21, %22 : vector<8x1xf32>
    %cst_15 = arith.constant 9.99999996E-13 : f32
    %24 = vector.broadcast %cst_15 : f32 to vector<8x1xf32>
    %25 = arith.addf %23, %24 : vector<8x1xf32>
    %26 = math.rsqrt %25 : vector<8x1xf32>
    %27 = vector.broadcast %26 : vector<8x1xf32> to vector<8x32xf32>
    %28 = arith.mulf %18, %27 : vector<8x32xf32>
    %29 = vector.broadcast %11 : vector<1x32xf32> to vector<8x32xf32>
    %30 = arith.mulf %28, %29 : vector<8x32xf32>
    %31 = vector.broadcast %12 : vector<1x32xf32> to vector<8x32xf32>
    %32 = arith.addf %30, %31 : vector<8x32xf32>
    %c0_16 = arith.constant 0 : index
    %c0_17 = arith.constant 0 : index
    %c0_18 = arith.constant 0 : index
    %33 = vector.load %arg5[%c0_16, %c0_17, %c0_18] : memref<2x32x96xf32, #tpu.memory_space<vmem>>, vector<1x32x96xf32>
    %34 = vector.shape_cast %33 : vector<1x32x96xf32> to vector<32x96xf32>
    %cst_19 = arith.constant dense<0.000000e+00> : vector<8x96xf32>
    %35 = tpu.matmul %32, %34, %cst_19 {dimension_numbers = #tpu.dot_dimension_numbers<[1], [0], [0], [1], [0, 0, 1, 1], [], []>} : vector<8x32xf32>, vector<32x96xf32>, vector<8x96xf32> -> vector<8x96xf32>
    %c0_20 = arith.constant 0 : index
    %c0_21 = arith.constant 0 : index
    %c0_22 = arith.constant 0 : index
    %36 = vector.load %arg6[%c0_20, %c0_21, %c0_22] : memref<2x1x96xf32, #tpu.memory_space<vmem>>, vector<1x1x96xf32>
    %37 = vector.shape_cast %36 : vector<1x1x96xf32> to vector<1x96xf32>
    %38 = vector.broadcast %37 : vector<1x96xf32> to vector<8x96xf32>
    %39 = arith.addf %35, %38 : vector<8x96xf32>
    %c0_23 = arith.constant 0 : index
    %c0_24 = arith.constant 0 : index
    %c0_25 = arith.constant 0 : index
    %40 = vector.load %arg7[%c0_23, %c0_24, %c0_25] : memref<2x32x32xf32, #tpu.memory_space<vmem>>, vector<1x32x32xf32>
    %41 = vector.shape_cast %40 : vector<1x32x32xf32> to vector<32x32xf32>
    %42 = vector.extract_strided_slice %39 {offsets = [0, 0], sizes = [8, 8], strides = [1, 1]} : vector<8x96xf32> to vector<8x8xf32>
    %43 = vector.extract_strided_slice %39 {offsets = [0, 32], sizes = [8, 8], strides = [1, 1]} : vector<8x96xf32> to vector<8x8xf32>
    %44 = vector.extract_strided_slice %39 {offsets = [0, 64], sizes = [8, 8], strides = [1, 1]} : vector<8x96xf32> to vector<8x8xf32>
    "tpu.trace_start"() <{level = 10 : i32, message = "qd,kd->qk"}> : () -> ()
    %cst_26 = arith.constant dense<0.000000e+00> : vector<8x8xf32>
    %45 = tpu.matmul %42, %43, %cst_26 {dimension_numbers = #tpu.dot_dimension_numbers<[1], [1], [0], [0], [0, 0, 1, 0], [], []>} : vector<8x8xf32>, vector<8x8xf32>, vector<8x8xf32> -> vector<8x8xf32>
    "tpu.trace_stop"() : () -> ()
    %cst_27 = arith.constant 0.353553385 : f32
    %46 = vector.broadcast %cst_27 : f32 to vector<8x8xf32>
    %47 = arith.mulf %45, %46 : vector<8x8xf32>
    %48 = vector.broadcast %9 : vector<1x8xf32> to vector<8x8xf32>
    %49 = arith.addf %47, %48 : vector<8x8xf32>
    %cst_28 = arith.constant dense<0xFF800000> : vector<8xf32>
    %50 = vector.multi_reduction <maximumf>, %49, %cst_28 [1] : vector<8x8xf32> to vector<8xf32>
    %51 = vector.shape_cast %50 : vector<8xf32> to vector<8x1xf32>
    %52 = vector.broadcast %51 : vector<8x1xf32> to vector<8x8xf32>
    %53 = arith.subf %49, %52 : vector<8x8xf32>
    %54 = math.exp %53 : vector<8x8xf32>
    %cst_29 = arith.constant dense<0.000000e+00> : vector<8xf32>
    %55 = vector.multi_reduction <add>, %54, %cst_29 [1] : vector<8x8xf32> to vector<8xf32>
    %56 = vector.shape_cast %55 : vector<8xf32> to vector<8x1xf32>
    %57 = tpu.reciprocal %56 {approx = true} : vector<8x1xf32> -> vector<8x1xf32>
    %58 = vector.broadcast %57 : vector<8x1xf32> to vector<8x8xf32>
    %59 = arith.mulf %54, %58 : vector<8x8xf32>
    %cst_30 = arith.constant dense<0.000000e+00> : vector<8x8xf32>
    %60 = tpu.matmul %59, %44, %cst_30 {dimension_numbers = #tpu.dot_dimension_numbers<[1], [0], [0], [1], [0, 0, 1, 1], [], []>} : vector<8x8xf32>, vector<8x8xf32>, vector<8x8xf32> -> vector<8x8xf32>
    %61 = vector.extract_strided_slice %41 {offsets = [0, 0], sizes = [8, 32], strides = [1, 1]} : vector<32x32xf32> to vector<8x32xf32>
    %cst_31 = arith.constant dense<0.000000e+00> : vector<8x32xf32>
    %62 = tpu.matmul %60, %61, %cst_31 {dimension_numbers = #tpu.dot_dimension_numbers<[1], [0], [0], [1], [0, 0, 1, 1], [], []>} : vector<8x8xf32>, vector<8x32xf32>, vector<8x32xf32> -> vector<8x32xf32>
    %63 = vector.extract_strided_slice %39 {offsets = [0, 8], sizes = [8, 8], strides = [1, 1]} : vector<8x96xf32> to vector<8x8xf32>
    %64 = vector.extract_strided_slice %39 {offsets = [0, 40], sizes = [8, 8], strides = [1, 1]} : vector<8x96xf32> to vector<8x8xf32>
    %65 = vector.extract_strided_slice %39 {offsets = [0, 72], sizes = [8, 8], strides = [1, 1]} : vector<8x96xf32> to vector<8x8xf32>
    "tpu.trace_start"() <{level = 10 : i32, message = "qd,kd->qk"}> : () -> ()
    %cst_32 = arith.constant dense<0.000000e+00> : vector<8x8xf32>
    %66 = tpu.matmul %63, %64, %cst_32 {dimension_numbers = #tpu.dot_dimension_numbers<[1], [1], [0], [0], [0, 0, 1, 0], [], []>} : vector<8x8xf32>, vector<8x8xf32>, vector<8x8xf32> -> vector<8x8xf32>
    "tpu.trace_stop"() : () -> ()
    %cst_33 = arith.constant 0.353553385 : f32
    %67 = vector.broadcast %cst_33 : f32 to vector<8x8xf32>
    %68 = arith.mulf %66, %67 : vector<8x8xf32>
    %69 = vector.broadcast %9 : vector<1x8xf32> to vector<8x8xf32>
    %70 = arith.addf %68, %69 : vector<8x8xf32>
    %cst_34 = arith.constant dense<0xFF800000> : vector<8xf32>
    %71 = vector.multi_reduction <maximumf>, %70, %cst_34 [1] : vector<8x8xf32> to vector<8xf32>
    %72 = vector.shape_cast %71 : vector<8xf32> to vector<8x1xf32>
    %73 = vector.broadcast %72 : vector<8x1xf32> to vector<8x8xf32>
    %74 = arith.subf %70, %73 : vector<8x8xf32>
    %75 = math.exp %74 : vector<8x8xf32>
    %cst_35 = arith.constant dense<0.000000e+00> : vector<8xf32>
    %76 = vector.multi_reduction <add>, %75, %cst_35 [1] : vector<8x8xf32> to vector<8xf32>
    %77 = vector.shape_cast %76 : vector<8xf32> to vector<8x1xf32>
    %78 = tpu.reciprocal %77 {approx = true} : vector<8x1xf32> -> vector<8x1xf32>
    %79 = vector.broadcast %78 : vector<8x1xf32> to vector<8x8xf32>
    %80 = arith.mulf %75, %79 : vector<8x8xf32>
    %cst_36 = arith.constant dense<0.000000e+00> : vector<8x8xf32>
    %81 = tpu.matmul %80, %65, %cst_36 {dimension_numbers = #tpu.dot_dimension_numbers<[1], [0], [0], [1], [0, 0, 1, 1], [], []>} : vector<8x8xf32>, vector<8x8xf32>, vector<8x8xf32> -> vector<8x8xf32>
    %82 = vector.extract_strided_slice %41 {offsets = [8, 0], sizes = [8, 32], strides = [1, 1]} : vector<32x32xf32> to vector<8x32xf32>
    %cst_37 = arith.constant dense<0.000000e+00> : vector<8x32xf32>
    %83 = tpu.matmul %81, %82, %cst_37 {dimension_numbers = #tpu.dot_dimension_numbers<[1], [0], [0], [1], [0, 0, 1, 1], [], []>} : vector<8x8xf32>, vector<8x32xf32>, vector<8x32xf32> -> vector<8x32xf32>
    %84 = arith.addf %62, %83 : vector<8x32xf32>
    %85 = vector.extract_strided_slice %39 {offsets = [0, 16], sizes = [8, 8], strides = [1, 1]} : vector<8x96xf32> to vector<8x8xf32>
    %86 = vector.extract_strided_slice %39 {offsets = [0, 48], sizes = [8, 8], strides = [1, 1]} : vector<8x96xf32> to vector<8x8xf32>
    %87 = vector.extract_strided_slice %39 {offsets = [0, 80], sizes = [8, 8], strides = [1, 1]} : vector<8x96xf32> to vector<8x8xf32>
    "tpu.trace_start"() <{level = 10 : i32, message = "qd,kd->qk"}> : () -> ()
    %cst_38 = arith.constant dense<0.000000e+00> : vector<8x8xf32>
    %88 = tpu.matmul %85, %86, %cst_38 {dimension_numbers = #tpu.dot_dimension_numbers<[1], [1], [0], [0], [0, 0, 1, 0], [], []>} : vector<8x8xf32>, vector<8x8xf32>, vector<8x8xf32> -> vector<8x8xf32>
    "tpu.trace_stop"() : () -> ()
    %cst_39 = arith.constant 0.353553385 : f32
    %89 = vector.broadcast %cst_39 : f32 to vector<8x8xf32>
    %90 = arith.mulf %88, %89 : vector<8x8xf32>
    %91 = vector.broadcast %9 : vector<1x8xf32> to vector<8x8xf32>
    %92 = arith.addf %90, %91 : vector<8x8xf32>
    %cst_40 = arith.constant dense<0xFF800000> : vector<8xf32>
    %93 = vector.multi_reduction <maximumf>, %92, %cst_40 [1] : vector<8x8xf32> to vector<8xf32>
    %94 = vector.shape_cast %93 : vector<8xf32> to vector<8x1xf32>
    %95 = vector.broadcast %94 : vector<8x1xf32> to vector<8x8xf32>
    %96 = arith.subf %92, %95 : vector<8x8xf32>
    %97 = math.exp %96 : vector<8x8xf32>
    %cst_41 = arith.constant dense<0.000000e+00> : vector<8xf32>
    %98 = vector.multi_reduction <add>, %97, %cst_41 [1] : vector<8x8xf32> to vector<8xf32>
    %99 = vector.shape_cast %98 : vector<8xf32> to vector<8x1xf32>
    %100 = tpu.reciprocal %99 {approx = true} : vector<8x1xf32> -> vector<8x1xf32>
    %101 = vector.broadcast %100 : vector<8x1xf32> to vector<8x8xf32>
    %102 = arith.mulf %97, %101 : vector<8x8xf32>
    %cst_42 = arith.constant dense<0.000000e+00> : vector<8x8xf32>
    %103 = tpu.matmul %102, %87, %cst_42 {dimension_numbers = #tpu.dot_dimension_numbers<[1], [0], [0], [1], [0, 0, 1, 1], [], []>} : vector<8x8xf32>, vector<8x8xf32>, vector<8x8xf32> -> vector<8x8xf32>
    %104 = vector.extract_strided_slice %41 {offsets = [16, 0], sizes = [8, 32], strides = [1, 1]} : vector<32x32xf32> to vector<8x32xf32>
    %cst_43 = arith.constant dense<0.000000e+00> : vector<8x32xf32>
    %105 = tpu.matmul %103, %104, %cst_43 {dimension_numbers = #tpu.dot_dimension_numbers<[1], [0], [0], [1], [0, 0, 1, 1], [], []>} : vector<8x8xf32>, vector<8x32xf32>, vector<8x32xf32> -> vector<8x32xf32>
    %106 = arith.addf %84, %105 : vector<8x32xf32>
    %107 = vector.extract_strided_slice %39 {offsets = [0, 24], sizes = [8, 8], strides = [1, 1]} : vector<8x96xf32> to vector<8x8xf32>
    %108 = vector.extract_strided_slice %39 {offsets = [0, 56], sizes = [8, 8], strides = [1, 1]} : vector<8x96xf32> to vector<8x8xf32>
    %109 = vector.extract_strided_slice %39 {offsets = [0, 88], sizes = [8, 8], strides = [1, 1]} : vector<8x96xf32> to vector<8x8xf32>
    "tpu.trace_start"() <{level = 10 : i32, message = "qd,kd->qk"}> : () -> ()
    %cst_44 = arith.constant dense<0.000000e+00> : vector<8x8xf32>
    %110 = tpu.matmul %107, %108, %cst_44 {dimension_numbers = #tpu.dot_dimension_numbers<[1], [1], [0], [0], [0, 0, 1, 0], [], []>} : vector<8x8xf32>, vector<8x8xf32>, vector<8x8xf32> -> vector<8x8xf32>
    "tpu.trace_stop"() : () -> ()
    %cst_45 = arith.constant 0.353553385 : f32
    %111 = vector.broadcast %cst_45 : f32 to vector<8x8xf32>
    %112 = arith.mulf %110, %111 : vector<8x8xf32>
    %113 = vector.broadcast %9 : vector<1x8xf32> to vector<8x8xf32>
    %114 = arith.addf %112, %113 : vector<8x8xf32>
    %cst_46 = arith.constant dense<0xFF800000> : vector<8xf32>
    %115 = vector.multi_reduction <maximumf>, %114, %cst_46 [1] : vector<8x8xf32> to vector<8xf32>
    %116 = vector.shape_cast %115 : vector<8xf32> to vector<8x1xf32>
    %117 = vector.broadcast %116 : vector<8x1xf32> to vector<8x8xf32>
    %118 = arith.subf %114, %117 : vector<8x8xf32>
    %119 = math.exp %118 : vector<8x8xf32>
    %cst_47 = arith.constant dense<0.000000e+00> : vector<8xf32>
    %120 = vector.multi_reduction <add>, %119, %cst_47 [1] : vector<8x8xf32> to vector<8xf32>
    %121 = vector.shape_cast %120 : vector<8xf32> to vector<8x1xf32>
    %122 = tpu.reciprocal %121 {approx = true} : vector<8x1xf32> -> vector<8x1xf32>
    %123 = vector.broadcast %122 : vector<8x1xf32> to vector<8x8xf32>
    %124 = arith.mulf %119, %123 : vector<8x8xf32>
    %cst_48 = arith.constant dense<0.000000e+00> : vector<8x8xf32>
    %125 = tpu.matmul %124, %109, %cst_48 {dimension_numbers = #tpu.dot_dimension_numbers<[1], [0], [0], [1], [0, 0, 1, 1], [], []>} : vector<8x8xf32>, vector<8x8xf32>, vector<8x8xf32> -> vector<8x8xf32>
    %126 = vector.extract_strided_slice %41 {offsets = [24, 0], sizes = [8, 32], strides = [1, 1]} : vector<32x32xf32> to vector<8x32xf32>
    %cst_49 = arith.constant dense<0.000000e+00> : vector<8x32xf32>
    %127 = tpu.matmul %125, %126, %cst_49 {dimension_numbers = #tpu.dot_dimension_numbers<[1], [0], [0], [1], [0, 0, 1, 1], [], []>} : vector<8x8xf32>, vector<8x32xf32>, vector<8x32xf32> -> vector<8x32xf32>
    %128 = arith.addf %106, %127 : vector<8x32xf32>
    %c0_50 = arith.constant 0 : index
    %c0_51 = arith.constant 0 : index
    %c0_52 = arith.constant 0 : index
    %129 = vector.load %arg8[%c0_50, %c0_51, %c0_52] : memref<2x1x32xf32, #tpu.memory_space<vmem>>, vector<1x1x32xf32>
    %130 = vector.shape_cast %129 : vector<1x1x32xf32> to vector<1x32xf32>
    %131 = vector.broadcast %130 : vector<1x32xf32> to vector<8x32xf32>
    %132 = arith.addf %128, %131 : vector<8x32xf32>
    %133 = arith.addf %32, %132 : vector<8x32xf32>
    %c0_53 = arith.constant 0 : index
    %c0_54 = arith.constant 0 : index
    %c0_55 = arith.constant 0 : index
    %134 = vector.load %arg9[%c0_53, %c0_54, %c0_55] : memref<2x2x32xf32, #tpu.memory_space<vmem>>, vector<1x2x32xf32>
    %135 = vector.shape_cast %134 : vector<1x2x32xf32> to vector<2x32xf32>
    %136 = vector.extract_strided_slice %135 {offsets = [0, 0], sizes = [1, 32], strides = [1, 1]} : vector<2x32xf32> to vector<1x32xf32>
    %137 = vector.extract_strided_slice %135 {offsets = [1, 0], sizes = [1, 32], strides = [1, 1]} : vector<2x32xf32> to vector<1x32xf32>
    %cst_56 = arith.constant dense<0.000000e+00> : vector<8xf32>
    %138 = vector.multi_reduction <add>, %133, %cst_56 [1] : vector<8x32xf32> to vector<8xf32>
    %139 = vector.shape_cast %138 : vector<8xf32> to vector<8x1xf32>
    %cst_57 = arith.constant 3.200000e+01 : f32
    %140 = vector.broadcast %cst_57 : f32 to vector<8x1xf32>
    %141 = arith.divf %139, %140 : vector<8x1xf32>
    %142 = vector.broadcast %141 : vector<8x1xf32> to vector<8x32xf32>
    %143 = arith.subf %133, %142 : vector<8x32xf32>
    %144 = arith.mulf %143, %143 : vector<8x32xf32>
    %cst_58 = arith.constant dense<0.000000e+00> : vector<8xf32>
    %145 = vector.multi_reduction <add>, %144, %cst_58 [1] : vector<8x32xf32> to vector<8xf32>
    %146 = vector.shape_cast %145 : vector<8xf32> to vector<8x1xf32>
    %cst_59 = arith.constant 3.200000e+01 : f32
    %147 = vector.broadcast %cst_59 : f32 to vector<8x1xf32>
    %148 = arith.divf %146, %147 : vector<8x1xf32>
    %cst_60 = arith.constant 9.99999996E-13 : f32
    %149 = vector.broadcast %cst_60 : f32 to vector<8x1xf32>
    %150 = arith.addf %148, %149 : vector<8x1xf32>
    %151 = math.rsqrt %150 : vector<8x1xf32>
    %152 = vector.broadcast %151 : vector<8x1xf32> to vector<8x32xf32>
    %153 = arith.mulf %143, %152 : vector<8x32xf32>
    %154 = vector.broadcast %136 : vector<1x32xf32> to vector<8x32xf32>
    %155 = arith.mulf %153, %154 : vector<8x32xf32>
    %156 = vector.broadcast %137 : vector<1x32xf32> to vector<8x32xf32>
    %157 = arith.addf %155, %156 : vector<8x32xf32>
    %c0_61 = arith.constant 0 : index
    %c0_62 = arith.constant 0 : index
    %c0_63 = arith.constant 0 : index
    %158 = vector.load %arg10[%c0_61, %c0_62, %c0_63] : memref<2x32x64xf32, #tpu.memory_space<vmem>>, vector<1x32x64xf32>
    %159 = vector.shape_cast %158 : vector<1x32x64xf32> to vector<32x64xf32>
    %cst_64 = arith.constant dense<0.000000e+00> : vector<8x64xf32>
    %160 = tpu.matmul %157, %159, %cst_64 {dimension_numbers = #tpu.dot_dimension_numbers<[1], [0], [0], [1], [0, 0, 1, 1], [], []>} : vector<8x32xf32>, vector<32x64xf32>, vector<8x64xf32> -> vector<8x64xf32>
    %c0_65 = arith.constant 0 : index
    %c0_66 = arith.constant 0 : index
    %c0_67 = arith.constant 0 : index
    %161 = vector.load %arg11[%c0_65, %c0_66, %c0_67] : memref<2x1x64xf32, #tpu.memory_space<vmem>>, vector<1x1x64xf32>
    %162 = vector.shape_cast %161 : vector<1x1x64xf32> to vector<1x64xf32>
    %163 = vector.broadcast %162 : vector<1x64xf32> to vector<8x64xf32>
    %164 = arith.addf %160, %163 : vector<8x64xf32>
    %cst_68 = arith.constant 5.000000e-01 : f32
    %165 = vector.broadcast %cst_68 : f32 to vector<8x64xf32>
    %166 = arith.mulf %165, %164 : vector<8x64xf32>
    %cst_69 = arith.constant 4.471500e-02 : f32
    %167 = vector.broadcast %cst_69 : f32 to vector<8x64xf32>
    %168 = arith.mulf %167, %164 : vector<8x64xf32>
    %169 = arith.mulf %168, %164 : vector<8x64xf32>
    %170 = arith.mulf %169, %164 : vector<8x64xf32>
    %171 = arith.addf %164, %170 : vector<8x64xf32>
    %cst_70 = arith.constant 0.797884583 : f32
    %172 = vector.broadcast %cst_70 : f32 to vector<8x64xf32>
    %173 = arith.mulf %172, %171 : vector<8x64xf32>
    %174 = math.tanh %173 : vector<8x64xf32>
    %cst_71 = arith.constant 1.000000e+00 : f32
    %175 = vector.broadcast %cst_71 : f32 to vector<8x64xf32>
    %176 = arith.addf %175, %174 : vector<8x64xf32>
    %177 = arith.mulf %166, %176 : vector<8x64xf32>
    %c0_72 = arith.constant 0 : index
    %c0_73 = arith.constant 0 : index
    %c0_74 = arith.constant 0 : index
    %178 = vector.load %arg12[%c0_72, %c0_73, %c0_74] : memref<2x64x32xf32, #tpu.memory_space<vmem>>, vector<1x64x32xf32>
    %179 = vector.shape_cast %178 : vector<1x64x32xf32> to vector<64x32xf32>
    %cst_75 = arith.constant dense<0.000000e+00> : vector<8x32xf32>
    %180 = tpu.matmul %177, %179, %cst_75 {dimension_numbers = #tpu.dot_dimension_numbers<[1], [0], [0], [1], [0, 0, 1, 1], [], []>} : vector<8x64xf32>, vector<64x32xf32>, vector<8x32xf32> -> vector<8x32xf32>
    %c0_76 = arith.constant 0 : index
    %c0_77 = arith.constant 0 : index
    %c0_78 = arith.constant 0 : index
    %181 = vector.load %arg13[%c0_76, %c0_77, %c0_78] : memref<2x1x32xf32, #tpu.memory_space<vmem>>, vector<1x1x32xf32>
    %182 = vector.shape_cast %181 : vector<1x1x32xf32> to vector<1x32xf32>
    %183 = vector.broadcast %182 : vector<1x32xf32> to vector<8x32xf32>
    %184 = arith.addf %180, %183 : vector<8x32xf32>
    %185 = arith.addf %157, %184 : vector<8x32xf32>
    %c0_79 = arith.constant 0 : index
    %c0_80 = arith.constant 0 : index
    %c0_81 = arith.constant 0 : index
    %186 = vector.load %arg14[%c0_79, %c0_80, %c0_81] : memref<2x2x32xf32, #tpu.memory_space<vmem>>, vector<1x2x32xf32>
    %187 = vector.shape_cast %186 : vector<1x2x32xf32> to vector<2x32xf32>
    %188 = vector.extract_strided_slice %187 {offsets = [0, 0], sizes = [1, 32], strides = [1, 1]} : vector<2x32xf32> to vector<1x32xf32>
    %189 = vector.extract_strided_slice %187 {offsets = [1, 0], sizes = [1, 32], strides = [1, 1]} : vector<2x32xf32> to vector<1x32xf32>
    %cst_82 = arith.constant dense<0.000000e+00> : vector<8xf32>
    %190 = vector.multi_reduction <add>, %185, %cst_82 [1] : vector<8x32xf32> to vector<8xf32>
    %191 = vector.shape_cast %190 : vector<8xf32> to vector<8x1xf32>
    %cst_83 = arith.constant 3.200000e+01 : f32
    %192 = vector.broadcast %cst_83 : f32 to vector<8x1xf32>
    %193 = arith.divf %191, %192 : vector<8x1xf32>
    %194 = vector.broadcast %193 : vector<8x1xf32> to vector<8x32xf32>
    %195 = arith.subf %185, %194 : vector<8x32xf32>
    %196 = arith.mulf %195, %195 : vector<8x32xf32>
    %cst_84 = arith.constant dense<0.000000e+00> : vector<8xf32>
    %197 = vector.multi_reduction <add>, %196, %cst_84 [1] : vector<8x32xf32> to vector<8xf32>
    %198 = vector.shape_cast %197 : vector<8xf32> to vector<8x1xf32>
    %cst_85 = arith.constant 3.200000e+01 : f32
    %199 = vector.broadcast %cst_85 : f32 to vector<8x1xf32>
    %200 = arith.divf %198, %199 : vector<8x1xf32>
    %cst_86 = arith.constant 9.99999996E-13 : f32
    %201 = vector.broadcast %cst_86 : f32 to vector<8x1xf32>
    %202 = arith.addf %200, %201 : vector<8x1xf32>
    %203 = math.rsqrt %202 : vector<8x1xf32>
    %204 = vector.broadcast %203 : vector<8x1xf32> to vector<8x32xf32>
    %205 = arith.mulf %195, %204 : vector<8x32xf32>
    %206 = vector.broadcast %188 : vector<1x32xf32> to vector<8x32xf32>
    %207 = arith.mulf %205, %206 : vector<8x32xf32>
    %208 = vector.broadcast %189 : vector<1x32xf32> to vector<8x32xf32>
    %209 = arith.addf %207, %208 : vector<8x32xf32>
    %c1 = arith.constant 1 : index
    %c0_87 = arith.constant 0 : index
    %c0_88 = arith.constant 0 : index
    %210 = vector.load %arg5[%c1, %c0_87, %c0_88] : memref<2x32x96xf32, #tpu.memory_space<vmem>>, vector<1x32x96xf32>
    %211 = vector.shape_cast %210 : vector<1x32x96xf32> to vector<32x96xf32>
    %cst_89 = arith.constant dense<0.000000e+00> : vector<8x96xf32>
    %212 = tpu.matmul %209, %211, %cst_89 {dimension_numbers = #tpu.dot_dimension_numbers<[1], [0], [0], [1], [0, 0, 1, 1], [], []>} : vector<8x32xf32>, vector<32x96xf32>, vector<8x96xf32> -> vector<8x96xf32>
    %c1_90 = arith.constant 1 : index
    %c0_91 = arith.constant 0 : index
    %c0_92 = arith.constant 0 : index
    %213 = vector.load %arg6[%c1_90, %c0_91, %c0_92] : memref<2x1x96xf32, #tpu.memory_space<vmem>>, vector<1x1x96xf32>
    %214 = vector.shape_cast %213 : vector<1x1x96xf32> to vector<1x96xf32>
    %215 = vector.broadcast %214 : vector<1x96xf32> to vector<8x96xf32>
    %216 = arith.addf %212, %215 : vector<8x96xf32>
    %c1_93 = arith.constant 1 : index
    %c0_94 = arith.constant 0 : index
    %c0_95 = arith.constant 0 : index
    %217 = vector.load %arg7[%c1_93, %c0_94, %c0_95] : memref<2x32x32xf32, #tpu.memory_space<vmem>>, vector<1x32x32xf32>
    %218 = vector.shape_cast %217 : vector<1x32x32xf32> to vector<32x32xf32>
    %219 = vector.extract_strided_slice %216 {offsets = [0, 0], sizes = [8, 8], strides = [1, 1]} : vector<8x96xf32> to vector<8x8xf32>
    %220 = vector.extract_strided_slice %216 {offsets = [0, 32], sizes = [8, 8], strides = [1, 1]} : vector<8x96xf32> to vector<8x8xf32>
    %221 = vector.extract_strided_slice %216 {offsets = [0, 64], sizes = [8, 8], strides = [1, 1]} : vector<8x96xf32> to vector<8x8xf32>
    "tpu.trace_start"() <{level = 10 : i32, message = "qd,kd->qk"}> : () -> ()
    %cst_96 = arith.constant dense<0.000000e+00> : vector<8x8xf32>
    %222 = tpu.matmul %219, %220, %cst_96 {dimension_numbers = #tpu.dot_dimension_numbers<[1], [1], [0], [0], [0, 0, 1, 0], [], []>} : vector<8x8xf32>, vector<8x8xf32>, vector<8x8xf32> -> vector<8x8xf32>
    "tpu.trace_stop"() : () -> ()
    %cst_97 = arith.constant 0.353553385 : f32
    %223 = vector.broadcast %cst_97 : f32 to vector<8x8xf32>
    %224 = arith.mulf %222, %223 : vector<8x8xf32>
    %225 = vector.broadcast %9 : vector<1x8xf32> to vector<8x8xf32>
    %226 = arith.addf %224, %225 : vector<8x8xf32>
    %cst_98 = arith.constant dense<0xFF800000> : vector<8xf32>
    %227 = vector.multi_reduction <maximumf>, %226, %cst_98 [1] : vector<8x8xf32> to vector<8xf32>
    %228 = vector.shape_cast %227 : vector<8xf32> to vector<8x1xf32>
    %229 = vector.broadcast %228 : vector<8x1xf32> to vector<8x8xf32>
    %230 = arith.subf %226, %229 : vector<8x8xf32>
    %231 = math.exp %230 : vector<8x8xf32>
    %cst_99 = arith.constant dense<0.000000e+00> : vector<8xf32>
    %232 = vector.multi_reduction <add>, %231, %cst_99 [1] : vector<8x8xf32> to vector<8xf32>
    %233 = vector.shape_cast %232 : vector<8xf32> to vector<8x1xf32>
    %234 = tpu.reciprocal %233 {approx = true} : vector<8x1xf32> -> vector<8x1xf32>
    %235 = vector.broadcast %234 : vector<8x1xf32> to vector<8x8xf32>
    %236 = arith.mulf %231, %235 : vector<8x8xf32>
    %cst_100 = arith.constant dense<0.000000e+00> : vector<8x8xf32>
    %237 = tpu.matmul %236, %221, %cst_100 {dimension_numbers = #tpu.dot_dimension_numbers<[1], [0], [0], [1], [0, 0, 1, 1], [], []>} : vector<8x8xf32>, vector<8x8xf32>, vector<8x8xf32> -> vector<8x8xf32>
    %238 = vector.extract_strided_slice %218 {offsets = [0, 0], sizes = [8, 32], strides = [1, 1]} : vector<32x32xf32> to vector<8x32xf32>
    %cst_101 = arith.constant dense<0.000000e+00> : vector<8x32xf32>
    %239 = tpu.matmul %237, %238, %cst_101 {dimension_numbers = #tpu.dot_dimension_numbers<[1], [0], [0], [1], [0, 0, 1, 1], [], []>} : vector<8x8xf32>, vector<8x32xf32>, vector<8x32xf32> -> vector<8x32xf32>
    %240 = vector.extract_strided_slice %216 {offsets = [0, 8], sizes = [8, 8], strides = [1, 1]} : vector<8x96xf32> to vector<8x8xf32>
    %241 = vector.extract_strided_slice %216 {offsets = [0, 40], sizes = [8, 8], strides = [1, 1]} : vector<8x96xf32> to vector<8x8xf32>
    %242 = vector.extract_strided_slice %216 {offsets = [0, 72], sizes = [8, 8], strides = [1, 1]} : vector<8x96xf32> to vector<8x8xf32>
    "tpu.trace_start"() <{level = 10 : i32, message = "qd,kd->qk"}> : () -> ()
    %cst_102 = arith.constant dense<0.000000e+00> : vector<8x8xf32>
    %243 = tpu.matmul %240, %241, %cst_102 {dimension_numbers = #tpu.dot_dimension_numbers<[1], [1], [0], [0], [0, 0, 1, 0], [], []>} : vector<8x8xf32>, vector<8x8xf32>, vector<8x8xf32> -> vector<8x8xf32>
    "tpu.trace_stop"() : () -> ()
    %cst_103 = arith.constant 0.353553385 : f32
    %244 = vector.broadcast %cst_103 : f32 to vector<8x8xf32>
    %245 = arith.mulf %243, %244 : vector<8x8xf32>
    %246 = vector.broadcast %9 : vector<1x8xf32> to vector<8x8xf32>
    %247 = arith.addf %245, %246 : vector<8x8xf32>
    %cst_104 = arith.constant dense<0xFF800000> : vector<8xf32>
    %248 = vector.multi_reduction <maximumf>, %247, %cst_104 [1] : vector<8x8xf32> to vector<8xf32>
    %249 = vector.shape_cast %248 : vector<8xf32> to vector<8x1xf32>
    %250 = vector.broadcast %249 : vector<8x1xf32> to vector<8x8xf32>
    %251 = arith.subf %247, %250 : vector<8x8xf32>
    %252 = math.exp %251 : vector<8x8xf32>
    %cst_105 = arith.constant dense<0.000000e+00> : vector<8xf32>
    %253 = vector.multi_reduction <add>, %252, %cst_105 [1] : vector<8x8xf32> to vector<8xf32>
    %254 = vector.shape_cast %253 : vector<8xf32> to vector<8x1xf32>
    %255 = tpu.reciprocal %254 {approx = true} : vector<8x1xf32> -> vector<8x1xf32>
    %256 = vector.broadcast %255 : vector<8x1xf32> to vector<8x8xf32>
    %257 = arith.mulf %252, %256 : vector<8x8xf32>
    %cst_106 = arith.constant dense<0.000000e+00> : vector<8x8xf32>
    %258 = tpu.matmul %257, %242, %cst_106 {dimension_numbers = #tpu.dot_dimension_numbers<[1], [0], [0], [1], [0, 0, 1, 1], [], []>} : vector<8x8xf32>, vector<8x8xf32>, vector<8x8xf32> -> vector<8x8xf32>
    %259 = vector.extract_strided_slice %218 {offsets = [8, 0], sizes = [8, 32], strides = [1, 1]} : vector<32x32xf32> to vector<8x32xf32>
    %cst_107 = arith.constant dense<0.000000e+00> : vector<8x32xf32>
    %260 = tpu.matmul %258, %259, %cst_107 {dimension_numbers = #tpu.dot_dimension_numbers<[1], [0], [0], [1], [0, 0, 1, 1], [], []>} : vector<8x8xf32>, vector<8x32xf32>, vector<8x32xf32> -> vector<8x32xf32>
    %261 = arith.addf %239, %260 : vector<8x32xf32>
    %262 = vector.extract_strided_slice %216 {offsets = [0, 16], sizes = [8, 8], strides = [1, 1]} : vector<8x96xf32> to vector<8x8xf32>
    %263 = vector.extract_strided_slice %216 {offsets = [0, 48], sizes = [8, 8], strides = [1, 1]} : vector<8x96xf32> to vector<8x8xf32>
    %264 = vector.extract_strided_slice %216 {offsets = [0, 80], sizes = [8, 8], strides = [1, 1]} : vector<8x96xf32> to vector<8x8xf32>
    "tpu.trace_start"() <{level = 10 : i32, message = "qd,kd->qk"}> : () -> ()
    %cst_108 = arith.constant dense<0.000000e+00> : vector<8x8xf32>
    %265 = tpu.matmul %262, %263, %cst_108 {dimension_numbers = #tpu.dot_dimension_numbers<[1], [1], [0], [0], [0, 0, 1, 0], [], []>} : vector<8x8xf32>, vector<8x8xf32>, vector<8x8xf32> -> vector<8x8xf32>
    "tpu.trace_stop"() : () -> ()
    %cst_109 = arith.constant 0.353553385 : f32
    %266 = vector.broadcast %cst_109 : f32 to vector<8x8xf32>
    %267 = arith.mulf %265, %266 : vector<8x8xf32>
    %268 = vector.broadcast %9 : vector<1x8xf32> to vector<8x8xf32>
    %269 = arith.addf %267, %268 : vector<8x8xf32>
    %cst_110 = arith.constant dense<0xFF800000> : vector<8xf32>
    %270 = vector.multi_reduction <maximumf>, %269, %cst_110 [1] : vector<8x8xf32> to vector<8xf32>
    %271 = vector.shape_cast %270 : vector<8xf32> to vector<8x1xf32>
    %272 = vector.broadcast %271 : vector<8x1xf32> to vector<8x8xf32>
    %273 = arith.subf %269, %272 : vector<8x8xf32>
    %274 = math.exp %273 : vector<8x8xf32>
    %cst_111 = arith.constant dense<0.000000e+00> : vector<8xf32>
    %275 = vector.multi_reduction <add>, %274, %cst_111 [1] : vector<8x8xf32> to vector<8xf32>
    %276 = vector.shape_cast %275 : vector<8xf32> to vector<8x1xf32>
    %277 = tpu.reciprocal %276 {approx = true} : vector<8x1xf32> -> vector<8x1xf32>
    %278 = vector.broadcast %277 : vector<8x1xf32> to vector<8x8xf32>
    %279 = arith.mulf %274, %278 : vector<8x8xf32>
    %cst_112 = arith.constant dense<0.000000e+00> : vector<8x8xf32>
    %280 = tpu.matmul %279, %264, %cst_112 {dimension_numbers = #tpu.dot_dimension_numbers<[1], [0], [0], [1], [0, 0, 1, 1], [], []>} : vector<8x8xf32>, vector<8x8xf32>, vector<8x8xf32> -> vector<8x8xf32>
    %281 = vector.extract_strided_slice %218 {offsets = [16, 0], sizes = [8, 32], strides = [1, 1]} : vector<32x32xf32> to vector<8x32xf32>
    %cst_113 = arith.constant dense<0.000000e+00> : vector<8x32xf32>
    %282 = tpu.matmul %280, %281, %cst_113 {dimension_numbers = #tpu.dot_dimension_numbers<[1], [0], [0], [1], [0, 0, 1, 1], [], []>} : vector<8x8xf32>, vector<8x32xf32>, vector<8x32xf32> -> vector<8x32xf32>
    %283 = arith.addf %261, %282 : vector<8x32xf32>
    %284 = vector.extract_strided_slice %216 {offsets = [0, 24], sizes = [8, 8], strides = [1, 1]} : vector<8x96xf32> to vector<8x8xf32>
    %285 = vector.extract_strided_slice %216 {offsets = [0, 56], sizes = [8, 8], strides = [1, 1]} : vector<8x96xf32> to vector<8x8xf32>
    %286 = vector.extract_strided_slice %216 {offsets = [0, 88], sizes = [8, 8], strides = [1, 1]} : vector<8x96xf32> to vector<8x8xf32>
    "tpu.trace_start"() <{level = 10 : i32, message = "qd,kd->qk"}> : () -> ()
    %cst_114 = arith.constant dense<0.000000e+00> : vector<8x8xf32>
    %287 = tpu.matmul %284, %285, %cst_114 {dimension_numbers = #tpu.dot_dimension_numbers<[1], [1], [0], [0], [0, 0, 1, 0], [], []>} : vector<8x8xf32>, vector<8x8xf32>, vector<8x8xf32> -> vector<8x8xf32>
    "tpu.trace_stop"() : () -> ()
    %cst_115 = arith.constant 0.353553385 : f32
    %288 = vector.broadcast %cst_115 : f32 to vector<8x8xf32>
    %289 = arith.mulf %287, %288 : vector<8x8xf32>
    %290 = vector.broadcast %9 : vector<1x8xf32> to vector<8x8xf32>
    %291 = arith.addf %289, %290 : vector<8x8xf32>
    %cst_116 = arith.constant dense<0xFF800000> : vector<8xf32>
    %292 = vector.multi_reduction <maximumf>, %291, %cst_116 [1] : vector<8x8xf32> to vector<8xf32>
    %293 = vector.shape_cast %292 : vector<8xf32> to vector<8x1xf32>
    %294 = vector.broadcast %293 : vector<8x1xf32> to vector<8x8xf32>
    %295 = arith.subf %291, %294 : vector<8x8xf32>
    %296 = math.exp %295 : vector<8x8xf32>
    %cst_117 = arith.constant dense<0.000000e+00> : vector<8xf32>
    %297 = vector.multi_reduction <add>, %296, %cst_117 [1] : vector<8x8xf32> to vector<8xf32>
    %298 = vector.shape_cast %297 : vector<8xf32> to vector<8x1xf32>
    %299 = tpu.reciprocal %298 {approx = true} : vector<8x1xf32> -> vector<8x1xf32>
    %300 = vector.broadcast %299 : vector<8x1xf32> to vector<8x8xf32>
    %301 = arith.mulf %296, %300 : vector<8x8xf32>
    %cst_118 = arith.constant dense<0.000000e+00> : vector<8x8xf32>
    %302 = tpu.matmul %301, %286, %cst_118 {dimension_numbers = #tpu.dot_dimension_numbers<[1], [0], [0], [1], [0, 0, 1, 1], [], []>} : vector<8x8xf32>, vector<8x8xf32>, vector<8x8xf32> -> vector<8x8xf32>
    %303 = vector.extract_strided_slice %218 {offsets = [24, 0], sizes = [8, 32], strides = [1, 1]} : vector<32x32xf32> to vector<8x32xf32>
    %cst_119 = arith.constant dense<0.000000e+00> : vector<8x32xf32>
    %304 = tpu.matmul %302, %303, %cst_119 {dimension_numbers = #tpu.dot_dimension_numbers<[1], [0], [0], [1], [0, 0, 1, 1], [], []>} : vector<8x8xf32>, vector<8x32xf32>, vector<8x32xf32> -> vector<8x32xf32>
    %305 = arith.addf %283, %304 : vector<8x32xf32>
    %c1_120 = arith.constant 1 : index
    %c0_121 = arith.constant 0 : index
    %c0_122 = arith.constant 0 : index
    %306 = vector.load %arg8[%c1_120, %c0_121, %c0_122] : memref<2x1x32xf32, #tpu.memory_space<vmem>>, vector<1x1x32xf32>
    %307 = vector.shape_cast %306 : vector<1x1x32xf32> to vector<1x32xf32>
    %308 = vector.broadcast %307 : vector<1x32xf32> to vector<8x32xf32>
    %309 = arith.addf %305, %308 : vector<8x32xf32>
    %310 = arith.addf %209, %309 : vector<8x32xf32>
    %c1_123 = arith.constant 1 : index
    %c0_124 = arith.constant 0 : index
    %c0_125 = arith.constant 0 : index
    %311 = vector.load %arg9[%c1_123, %c0_124, %c0_125] : memref<2x2x32xf32, #tpu.memory_space<vmem>>, vector<1x2x32xf32>
    %312 = vector.shape_cast %311 : vector<1x2x32xf32> to vector<2x32xf32>
    %313 = vector.extract_strided_slice %312 {offsets = [0, 0], sizes = [1, 32], strides = [1, 1]} : vector<2x32xf32> to vector<1x32xf32>
    %314 = vector.extract_strided_slice %312 {offsets = [1, 0], sizes = [1, 32], strides = [1, 1]} : vector<2x32xf32> to vector<1x32xf32>
    %cst_126 = arith.constant dense<0.000000e+00> : vector<8xf32>
    %315 = vector.multi_reduction <add>, %310, %cst_126 [1] : vector<8x32xf32> to vector<8xf32>
    %316 = vector.shape_cast %315 : vector<8xf32> to vector<8x1xf32>
    %cst_127 = arith.constant 3.200000e+01 : f32
    %317 = vector.broadcast %cst_127 : f32 to vector<8x1xf32>
    %318 = arith.divf %316, %317 : vector<8x1xf32>
    %319 = vector.broadcast %318 : vector<8x1xf32> to vector<8x32xf32>
    %320 = arith.subf %310, %319 : vector<8x32xf32>
    %321 = arith.mulf %320, %320 : vector<8x32xf32>
    %cst_128 = arith.constant dense<0.000000e+00> : vector<8xf32>
    %322 = vector.multi_reduction <add>, %321, %cst_128 [1] : vector<8x32xf32> to vector<8xf32>
    %323 = vector.shape_cast %322 : vector<8xf32> to vector<8x1xf32>
    %cst_129 = arith.constant 3.200000e+01 : f32
    %324 = vector.broadcast %cst_129 : f32 to vector<8x1xf32>
    %325 = arith.divf %323, %324 : vector<8x1xf32>
    %cst_130 = arith.constant 9.99999996E-13 : f32
    %326 = vector.broadcast %cst_130 : f32 to vector<8x1xf32>
    %327 = arith.addf %325, %326 : vector<8x1xf32>
    %328 = math.rsqrt %327 : vector<8x1xf32>
    %329 = vector.broadcast %328 : vector<8x1xf32> to vector<8x32xf32>
    %330 = arith.mulf %320, %329 : vector<8x32xf32>
    %331 = vector.broadcast %313 : vector<1x32xf32> to vector<8x32xf32>
    %332 = arith.mulf %330, %331 : vector<8x32xf32>
    %333 = vector.broadcast %314 : vector<1x32xf32> to vector<8x32xf32>
    %334 = arith.addf %332, %333 : vector<8x32xf32>
    %c1_131 = arith.constant 1 : index
    %c0_132 = arith.constant 0 : index
    %c0_133 = arith.constant 0 : index
    %335 = vector.load %arg10[%c1_131, %c0_132, %c0_133] : memref<2x32x64xf32, #tpu.memory_space<vmem>>, vector<1x32x64xf32>
    %336 = vector.shape_cast %335 : vector<1x32x64xf32> to vector<32x64xf32>
    %cst_134 = arith.constant dense<0.000000e+00> : vector<8x64xf32>
    %337 = tpu.matmul %334, %336, %cst_134 {dimension_numbers = #tpu.dot_dimension_numbers<[1], [0], [0], [1], [0, 0, 1, 1], [], []>} : vector<8x32xf32>, vector<32x64xf32>, vector<8x64xf32> -> vector<8x64xf32>
    %c1_135 = arith.constant 1 : index
    %c0_136 = arith.constant 0 : index
    %c0_137 = arith.constant 0 : index
    %338 = vector.load %arg11[%c1_135, %c0_136, %c0_137] : memref<2x1x64xf32, #tpu.memory_space<vmem>>, vector<1x1x64xf32>
    %339 = vector.shape_cast %338 : vector<1x1x64xf32> to vector<1x64xf32>
    %340 = vector.broadcast %339 : vector<1x64xf32> to vector<8x64xf32>
    %341 = arith.addf %337, %340 : vector<8x64xf32>
    %cst_138 = arith.constant 5.000000e-01 : f32
    %342 = vector.broadcast %cst_138 : f32 to vector<8x64xf32>
    %343 = arith.mulf %342, %341 : vector<8x64xf32>
    %cst_139 = arith.constant 4.471500e-02 : f32
    %344 = vector.broadcast %cst_139 : f32 to vector<8x64xf32>
    %345 = arith.mulf %344, %341 : vector<8x64xf32>
    %346 = arith.mulf %345, %341 : vector<8x64xf32>
    %347 = arith.mulf %346, %341 : vector<8x64xf32>
    %348 = arith.addf %341, %347 : vector<8x64xf32>
    %cst_140 = arith.constant 0.797884583 : f32
    %349 = vector.broadcast %cst_140 : f32 to vector<8x64xf32>
    %350 = arith.mulf %349, %348 : vector<8x64xf32>
    %351 = math.tanh %350 : vector<8x64xf32>
    %cst_141 = arith.constant 1.000000e+00 : f32
    %352 = vector.broadcast %cst_141 : f32 to vector<8x64xf32>
    %353 = arith.addf %352, %351 : vector<8x64xf32>
    %354 = arith.mulf %343, %353 : vector<8x64xf32>
    %c1_142 = arith.constant 1 : index
    %c0_143 = arith.constant 0 : index
    %c0_144 = arith.constant 0 : index
    %355 = vector.load %arg12[%c1_142, %c0_143, %c0_144] : memref<2x64x32xf32, #tpu.memory_space<vmem>>, vector<1x64x32xf32>
    %356 = vector.shape_cast %355 : vector<1x64x32xf32> to vector<64x32xf32>
    %cst_145 = arith.constant dense<0.000000e+00> : vector<8x32xf32>
    %357 = tpu.matmul %354, %356, %cst_145 {dimension_numbers = #tpu.dot_dimension_numbers<[1], [0], [0], [1], [0, 0, 1, 1], [], []>} : vector<8x64xf32>, vector<64x32xf32>, vector<8x32xf32> -> vector<8x32xf32>
    %c1_146 = arith.constant 1 : index
    %c0_147 = arith.constant 0 : index
    %c0_148 = arith.constant 0 : index
    %358 = vector.load %arg13[%c1_146, %c0_147, %c0_148] : memref<2x1x32xf32, #tpu.memory_space<vmem>>, vector<1x1x32xf32>
    %359 = vector.shape_cast %358 : vector<1x1x32xf32> to vector<1x32xf32>
    %360 = vector.broadcast %359 : vector<1x32xf32> to vector<8x32xf32>
    %361 = arith.addf %357, %360 : vector<8x32xf32>
    %362 = arith.addf %334, %361 : vector<8x32xf32>
    %c1_149 = arith.constant 1 : index
    %c0_150 = arith.constant 0 : index
    %c0_151 = arith.constant 0 : index
    %363 = vector.load %arg14[%c1_149, %c0_150, %c0_151] : memref<2x2x32xf32, #tpu.memory_space<vmem>>, vector<1x2x32xf32>
    %364 = vector.shape_cast %363 : vector<1x2x32xf32> to vector<2x32xf32>
    %365 = vector.extract_strided_slice %364 {offsets = [0, 0], sizes = [1, 32], strides = [1, 1]} : vector<2x32xf32> to vector<1x32xf32>
    %366 = vector.extract_strided_slice %364 {offsets = [1, 0], sizes = [1, 32], strides = [1, 1]} : vector<2x32xf32> to vector<1x32xf32>
    %cst_152 = arith.constant dense<0.000000e+00> : vector<8xf32>
    %367 = vector.multi_reduction <add>, %362, %cst_152 [1] : vector<8x32xf32> to vector<8xf32>
    %368 = vector.shape_cast %367 : vector<8xf32> to vector<8x1xf32>
    %cst_153 = arith.constant 3.200000e+01 : f32
    %369 = vector.broadcast %cst_153 : f32 to vector<8x1xf32>
    %370 = arith.divf %368, %369 : vector<8x1xf32>
    %371 = vector.broadcast %370 : vector<8x1xf32> to vector<8x32xf32>
    %372 = arith.subf %362, %371 : vector<8x32xf32>
    %373 = arith.mulf %372, %372 : vector<8x32xf32>
    %cst_154 = arith.constant dense<0.000000e+00> : vector<8xf32>
    %374 = vector.multi_reduction <add>, %373, %cst_154 [1] : vector<8x32xf32> to vector<8xf32>
    %375 = vector.shape_cast %374 : vector<8xf32> to vector<8x1xf32>
    %cst_155 = arith.constant 3.200000e+01 : f32
    %376 = vector.broadcast %cst_155 : f32 to vector<8x1xf32>
    %377 = arith.divf %375, %376 : vector<8x1xf32>
    %cst_156 = arith.constant 9.99999996E-13 : f32
    %378 = vector.broadcast %cst_156 : f32 to vector<8x1xf32>
    %379 = arith.addf %377, %378 : vector<8x1xf32>
    %380 = math.rsqrt %379 : vector<8x1xf32>
    %381 = vector.broadcast %380 : vector<8x1xf32> to vector<8x32xf32>
    %382 = arith.mulf %372, %381 : vector<8x32xf32>
    %383 = vector.broadcast %365 : vector<1x32xf32> to vector<8x32xf32>
    %384 = arith.mulf %382, %383 : vector<8x32xf32>
    %385 = vector.broadcast %366 : vector<1x32xf32> to vector<8x32xf32>
    %386 = arith.addf %384, %385 : vector<8x32xf32>
    %c0_157 = arith.constant 0 : index
    %c0_158 = arith.constant 0 : index
    %387 = vector.load %arg15[%c0_157, %c0_158] : memref<32x32xf32, #tpu.memory_space<vmem>>, vector<32x32xf32>
    %cst_159 = arith.constant dense<0.000000e+00> : vector<8x32xf32>
    %388 = tpu.matmul %386, %387, %cst_159 {dimension_numbers = #tpu.dot_dimension_numbers<[1], [0], [0], [1], [0, 0, 1, 1], [], []>} : vector<8x32xf32>, vector<32x32xf32>, vector<8x32xf32> -> vector<8x32xf32>
    %c0_160 = arith.constant 0 : index
    %c0_161 = arith.constant 0 : index
    %389 = vector.load %arg16[%c0_160, %c0_161] : memref<1x32xf32, #tpu.memory_space<vmem>>, vector<1x32xf32>
    %390 = vector.broadcast %389 : vector<1x32xf32> to vector<8x32xf32>
    %391 = arith.addf %388, %390 : vector<8x32xf32>
    %cst_162 = arith.constant 5.000000e-01 : f32
    %392 = vector.broadcast %cst_162 : f32 to vector<8x32xf32>
    %393 = arith.mulf %392, %391 : vector<8x32xf32>
    %cst_163 = arith.constant 4.471500e-02 : f32
    %394 = vector.broadcast %cst_163 : f32 to vector<8x32xf32>
    %395 = arith.mulf %394, %391 : vector<8x32xf32>
    %396 = arith.mulf %395, %391 : vector<8x32xf32>
    %397 = arith.mulf %396, %391 : vector<8x32xf32>
    %398 = arith.addf %391, %397 : vector<8x32xf32>
    %cst_164 = arith.constant 0.797884583 : f32
    %399 = vector.broadcast %cst_164 : f32 to vector<8x32xf32>
    %400 = arith.mulf %399, %398 : vector<8x32xf32>
    %401 = math.tanh %400 : vector<8x32xf32>
    %cst_165 = arith.constant 1.000000e+00 : f32
    %402 = vector.broadcast %cst_165 : f32 to vector<8x32xf32>
    %403 = arith.addf %402, %401 : vector<8x32xf32>
    %404 = arith.mulf %393, %403 : vector<8x32xf32>
    %c0_166 = arith.constant 0 : index
    %c0_167 = arith.constant 0 : index
    %405 = vector.load %arg17[%c0_166, %c0_167] : memref<1x32xf32, #tpu.memory_space<vmem>>, vector<1x32xf32>
    "tpu.trace_start"() <{level = 10 : i32, message = "oh,sh->os"}> : () -> ()
    %cst_168 = arith.constant dense<0.000000e+00> : vector<1x8xf32>
    %406 = tpu.matmul %405, %404, %cst_168 {dimension_numbers = #tpu.dot_dimension_numbers<[1], [1], [0], [0], [0, 0, 1, 0], [], []>} : vector<1x32xf32>, vector<8x32xf32>, vector<1x8xf32> -> vector<1x8xf32>
    "tpu.trace_stop"() : () -> ()
    %c0_169 = arith.constant 0 : index
    %c0_170 = arith.constant 0 : index
    %407 = vector.load %arg18[%c0_169, %c0_170] : memref<1x1xf32, #tpu.memory_space<vmem>>, vector<1x1xf32>
    %408 = vector.broadcast %407 : vector<1x1xf32> to vector<1x8xf32>
    %409 = arith.addf %406, %408 : vector<1x8xf32>
    %410 = math.exp %409 : vector<1x8xf32>
    %cst_171 = arith.constant 1.000000e+00 : f32
    %411 = vector.broadcast %cst_171 : f32 to vector<1x8xf32>
    %412 = arith.addf %411, %410 : vector<1x8xf32>
    %cst_172 = arith.constant 1.000000e+00 : f32
    %413 = vector.broadcast %cst_172 : f32 to vector<1x8xf32>
    %414 = arith.divf %413, %412 : vector<1x8xf32>
    %c0_173 = arith.constant 0 : index
    %c0_174 = arith.constant 0 : index
    %c0_175 = arith.constant 0 : index
    %415 = vector.load %arg19[%c0_173, %c0_174, %c0_175] : memref<1x1x8xf32, #tpu.memory_space<vmem>>, vector<1x1x8xf32>
    %416 = vector.shape_cast %415 : vector<1x1x8xf32> to vector<1x8xf32>
    %417 = vector.shape_cast %414 : vector<1x8xf32> to vector<1x1x8xf32>
    tpu.vector_store %arg19[%c0_173, %c0_174, %c0_175], %417 {strides = array<i32>} : memref<1x1x8xf32, #tpu.memory_space<vmem>>, vector<1x1x8xf32>,
    %cst_176 = arith.constant 0.000000e+00 : f32
    %418 = vector.broadcast %cst_176 : f32 to vector<1x8xf32>
    %419 = arith.maximumf %409, %418 : vector<1x8xf32>
    %420 = arith.mulf %409, %5 : vector<1x8xf32>
    %421 = arith.subf %419, %420 : vector<1x8xf32>
    %422 = math.absf %409 : vector<1x8xf32>
    %cst_177 = arith.constant 0.000000e+00 : f32
    %423 = vector.broadcast %cst_177 : f32 to vector<1x8xf32>
    %424 = arith.subf %423, %422 : vector<1x8xf32>
    %425 = math.exp %424 : vector<1x8xf32>
    %cst_178 = arith.constant 1.000000e+00 : f32
    %426 = vector.broadcast %cst_178 : f32 to vector<1x8xf32>
    %427 = arith.addf %426, %425 : vector<1x8xf32>
    %428 = math.log %427 : vector<1x8xf32>
    %429 = arith.addf %421, %428 : vector<1x8xf32>
    %430 = arith.mulf %429, %3 : vector<1x8xf32>
    %c0_179 = arith.constant 0 : index
    %c0_180 = arith.constant 0 : index
    %c0_181 = arith.constant 0 : index
    %431 = vector.load %arg20[%c0_179, %c0_180, %c0_181] : memref<1x1x8xf32, #tpu.memory_space<vmem>>, vector<1x1x8xf32>
    %432 = vector.shape_cast %431 : vector<1x1x8xf32> to vector<1x8xf32>
    %433 = vector.shape_cast %430 : vector<1x8xf32> to vector<1x1x8xf32>
    tpu.vector_store %arg20[%c0_179, %c0_180, %c0_181], %433 {strides = array<i32>} : memref<1x1x8xf32, #tpu.memory_space<vmem>>, vector<1x1x8xf32>,
    return
  }
  func.func @transform_0(%arg0: i32) -> (i32, i32, i32) {
    %c0_i32 = arith.constant 0 : i32
    %c0_i32_0 = arith.constant 0 : i32
    %c0_i32_1 = arith.constant 0 : i32
    return %arg0, %c0_i32, %c0_i32_0 : i32, i32, i32
  }
  func.func @transform_1(%arg0: i32) -> (i32, i32, i32) {
    %c0_i32 = arith.constant 0 : i32
    %c0_i32_0 = arith.constant 0 : i32
    %c0_i32_1 = arith.constant 0 : i32
    return %arg0, %c0_i32, %c0_i32_0 : i32, i32, i32
  }
  func.func @transform_2(%arg0: i32) -> (i32, i32, i32) {
    %c0_i32 = arith.constant 0 : i32
    %c0_i32_0 = arith.constant 0 : i32
    %c0_i32_1 = arith.constant 0 : i32
    return %arg0, %c0_i32, %c0_i32_0 : i32, i32, i32
  }
  func.func @transform_3(%arg0: i32) -> (i32, i32) {
    %c0_i32 = arith.constant 0 : i32
    %c0_i32_0 = arith.constant 0 : i32
    %c0_i32_1 = arith.constant 0 : i32
    return %c0_i32, %c0_i32_0 : i32, i32
  }
  func.func @transform_4(%arg0: i32) -> (i32, i32, i32) {
    %c0_i32 = arith.constant 0 : i32
    %c0_i32_0 = arith.constant 0 : i32
    %c0_i32_1 = arith.constant 0 : i32
    %c0_i32_2 = arith.constant 0 : i32
    return %c0_i32, %c0_i32_0, %c0_i32_1 : i32, i32, i32
  }
  func.func @transform_5(%arg0: i32) -> (i32, i32, i32) {
    %c0_i32 = arith.constant 0 : i32
    %c0_i32_0 = arith.constant 0 : i32
    %c0_i32_1 = arith.constant 0 : i32
    %c0_i32_2 = arith.constant 0 : i32
    return %c0_i32, %c0_i32_0, %c0_i32_1 : i32, i32, i32
  }
  func.func @transform_6(%arg0: i32) -> (i32, i32, i32) {
    %c0_i32 = arith.constant 0 : i32
    %c0_i32_0 = arith.constant 0 : i32
    %c0_i32_1 = arith.constant 0 : i32
    %c0_i32_2 = arith.constant 0 : i32
    return %c0_i32, %c0_i32_0, %c0_i32_1 : i32, i32, i32
  }
  func.func @transform_7(%arg0: i32) -> (i32, i32, i32) {
    %c0_i32 = arith.constant 0 : i32
    %c0_i32_0 = arith.constant 0 : i32
    %c0_i32_1 = arith.constant 0 : i32
    %c0_i32_2 = arith.constant 0 : i32
    return %c0_i32, %c0_i32_0, %c0_i32_1 : i32, i32, i32
  }
  func.func @transform_8(%arg0: i32) -> (i32, i32, i32) {
    %c0_i32 = arith.constant 0 : i32
    %c0_i32_0 = arith.constant 0 : i32
    %c0_i32_1 = arith.constant 0 : i32
    %c0_i32_2 = arith.constant 0 : i32
    return %c0_i32, %c0_i32_0, %c0_i32_1 : i32, i32, i32
  }
  func.func @transform_9(%arg0: i32) -> (i32, i32, i32) {
    %c0_i32 = arith.constant 0 : i32
    %c0_i32_0 = arith.constant 0 : i32
    %c0_i32_1 = arith.constant 0 : i32
    %c0_i32_2 = arith.constant 0 : i32
    return %c0_i32, %c0_i32_0, %c0_i32_1 : i32, i32, i32
  }
  func.func @transform_10(%arg0: i32) -> (i32, i32, i32) {
    %c0_i32 = arith.constant 0 : i32
    %c0_i32_0 = arith.constant 0 : i32
    %c0_i32_1 = arith.constant 0 : i32
    %c0_i32_2 = arith.constant 0 : i32
    return %c0_i32, %c0_i32_0, %c0_i32_1 : i32, i32, i32
  }
  func.func @transform_11(%arg0: i32) -> (i32, i32, i32) {
    %c0_i32 = arith.constant 0 : i32
    %c0_i32_0 = arith.constant 0 : i32
    %c0_i32_1 = arith.constant 0 : i32
    %c0_i32_2 = arith.constant 0 : i32
    return %c0_i32, %c0_i32_0, %c0_i32_1 : i32, i32, i32
  }
  func.func @transform_12(%arg0: i32) -> (i32, i32, i32) {
    %c0_i32 = arith.constant 0 : i32
    %c0_i32_0 = arith.constant 0 : i32
    %c0_i32_1 = arith.constant 0 : i32
    %c0_i32_2 = arith.constant 0 : i32
    return %c0_i32, %c0_i32_0, %c0_i32_1 : i32, i32, i32
  }
  func.func @transform_13(%arg0: i32) -> (i32, i32, i32) {
    %c0_i32 = arith.constant 0 : i32
    %c0_i32_0 = arith.constant 0 : i32
    %c0_i32_1 = arith.constant 0 : i32
    %c0_i32_2 = arith.constant 0 : i32
    return %c0_i32, %c0_i32_0, %c0_i32_1 : i32, i32, i32
  }
  func.func @transform_14(%arg0: i32) -> (i32, i32) {
    %c0_i32 = arith.constant 0 : i32
    %c0_i32_0 = arith.constant 0 : i32
    %c0_i32_1 = arith.constant 0 : i32
    return %c0_i32, %c0_i32_0 : i32, i32
  }
  func.func @transform_15(%arg0: i32) -> (i32, i32) {
    %c0_i32 = arith.constant 0 : i32
    %c0_i32_0 = arith.constant 0 : i32
    %c0_i32_1 = arith.constant 0 : i32
    return %c0_i32, %c0_i32_0 : i32, i32
  }
  func.func @transform_16(%arg0: i32) -> (i32, i32) {
    %c0_i32 = arith.constant 0 : i32
    %c0_i32_0 = arith.constant 0 : i32
    %c0_i32_1 = arith.constant 0 : i32
    return %c0_i32, %c0_i32_0 : i32, i32
  }
  func.func @transform_17(%arg0: i32) -> (i32, i32) {
    %c0_i32 = arith.constant 0 : i32
    %c0_i32_0 = arith.constant 0 : i32
    %c0_i32_1 = arith.constant 0 : i32
    return %c0_i32, %c0_i32_0 : i32, i32
  }
  func.func @transform_18(%arg0: i32) -> (i32, i32, i32) {
    %c0_i32 = arith.constant 0 : i32
    %c0_i32_0 = arith.constant 0 : i32
    %c0_i32_1 = arith.constant 0 : i32
    return %arg0, %c0_i32, %c0_i32_0 : i32, i32, i32
  }
  func.func @transform_19(%arg0: i32) -> (i32, i32, i32) {
    %c0_i32 = arith.constant 0 : i32
    %c0_i32_0 = arith.constant 0 : i32
    %c0_i32_1 = arith.constant 0 : i32
    return %arg0, %c0_i32, %c0_i32_0 : i32, i32, i32
  }
}

</mosaic_0001>

<llo_original>
// kernel: forward.1
$region0: #{forward.1}
  #allocation0 [shape = 'u32[]', space=smem, size = 0x4, offset = 0x4, fixed_abs, tag = 'smem constant byte address 0x4 - core index']
  #allocation1 [shape = 'u32[144,128]{1,0:T(1,128)}', space=vmem, size = 0x12000, scoped, tag = 'internal scratch']
  #allocation2 [shape = 'f32[1,1]{1,0:T(1,128)S(1)}', space=vmem, size = 0x200, scoped, tag = 'scoped memory for forward.1']
  %s0 = inlined_call_operand.vmem [shape: f32[2,8,32], index: 0, kind: input, shape index: {}]
  %s1 = inlined_call_operand.vmem [shape: f32[2,1,8], index: 1, kind: input, shape index: {}]
  %s2 = inlined_call_operand.vmem [shape: f32[2,1,8], index: 2, kind: input, shape index: {}]
  %s3 = inlined_call_operand.vmem [shape: f32[2,32], index: 3, kind: input, shape index: {}]
  %s4 = inlined_call_operand.vmem [shape: f32[2,32,96], index: 4, kind: input, shape index: {}]
  %s5 = inlined_call_operand.vmem [shape: f32[2,1,96], index: 5, kind: input, shape index: {}]
  %s6 = inlined_call_operand.vmem [shape: f32[2,32,32], index: 6, kind: input, shape index: {}]
  %s7 = inlined_call_operand.vmem [shape: f32[2,1,32], index: 7, kind: input, shape index: {}]
  %s8 = inlined_call_operand.vmem [shape: f32[2,2,32], index: 8, kind: input, shape index: {}]
  %s9 = inlined_call_operand.vmem [shape: f32[2,32,64], index: 9, kind: input, shape index: {}]
  %s10 = inlined_call_operand.vmem [shape: f32[2,1,64], index: 10, kind: input, shape index: {}]
  %s11 = inlined_call_operand.vmem [shape: f32[2,64,32], index: 11, kind: input, shape index: {}]
  %s12 = inlined_call_operand.vmem [shape: f32[2,1,32], index: 12, kind: input, shape index: {}]
  %s13 = inlined_call_operand.vmem [shape: f32[2,2,32], index: 13, kind: input, shape index: {}]
  %s14 = inlined_call_operand.vmem [shape: f32[32,32], index: 14, kind: input, shape index: {}]
  %s15 = inlined_call_operand.vmem [shape: f32[1,32], index: 15, kind: input, shape index: {}]
  %s16 = inlined_call_operand.vmem [shape: f32[1,32], index: 16, kind: input, shape index: {}]
  %s17 = inlined_call_operand.<no memory space> [shape: f32[1,1], index: 17, kind: input, shape index: {}]
  %s18 = inlined_call_operand.vmem [shape: f32[2,1,8], index: 18, kind: output, shape index: {0}]
  %s19 = inlined_call_operand.vmem [shape: f32[2,1,8], index: 19, kind: output, shape index: {1}]
  %20 = xla_tuple %s18, %s19
  %s21 = sld [smem:[#allocation0]]
  $region113: #{forward.1} parent=0
    _
  %s23 = ssub.s32 1, %s21
  %s24 = scalar_select 0, %s23, %s21
  %v25 = vstv %s17
  %26 = vst [vmem:[#allocation2] sm:$0x1] %v25
  loop: start=0, step=1, limit=4
  $region2: #{forward.1} parent=0 // loop_pre_header
    _
  $region3: #{forward.1} parent=0 // loop_header
    %s28 = sphi 0, %s32
    %p29 = scmp.ge.s32.totalorder %s28, 4
    %s38 = sphi 0, %s40
    %s41 = sphi 0, %s38
    %s42 = sphi 0, %s41
    %s58 = sphi 0, %s42
    %s64 = sphi 0, %s66
    %s67 = sphi 0, %s64
    %s68 = sphi 0, %s67
    %s84 = sphi 0, %s68
    %s90 = sphi 0, %s92
    %s93 = sphi 0, %s90
    %s94 = sphi 0, %s93
    %s110 = sphi 0, %s94
    %s114 = sphi 0, %s114
    %s116 = sphi 0, %s114
    %s117 = sphi 0, %s116
    %s131 = sphi 0, %s117
    %s135 = sphi 0, %s135
    %s137 = sphi 0, %s135
    %s138 = sphi 0, %s137
    %s152 = sphi 0, %s138
    %s156 = sphi 0, %s156
    %s158 = sphi 0, %s156
    %s159 = sphi 0, %s158
    %s173 = sphi 0, %s159
    %s177 = sphi 0, %s177
    %s179 = sphi 0, %s177
    %s180 = sphi 0, %s179
    %s194 = sphi 0, %s180
    %s198 = sphi 0, %s198
    %s200 = sphi 0, %s198
    %s201 = sphi 0, %s200
    %s215 = sphi 0, %s201
    %s219 = sphi 0, %s219
    %s221 = sphi 0, %s219
    %s222 = sphi 0, %s221
    %s236 = sphi 0, %s222
    %s240 = sphi 0, %s240
    %s242 = sphi 0, %s240
    %s243 = sphi 0, %s242
    %s257 = sphi 0, %s243
    %s261 = sphi 0, %s261
    %s263 = sphi 0, %s261
    %s264 = sphi 0, %s263
    %s278 = sphi 0, %s264
    %s282 = sphi 0, %s282
    %s284 = sphi 0, %s282
    %s285 = sphi 0, %s284
    %s299 = sphi 0, %s285
    %s303 = sphi 0, %s303
    %s305 = sphi 0, %s303
    %s306 = sphi 0, %s305
    %s320 = sphi 0, %s306
    %s324 = sphi 0, %s324
    %s326 = sphi 0, %s324
    %s327 = sphi 0, %s326
    %s341 = sphi 0, %s327
    %s345 = sphi 0, %s345
    %s347 = sphi 0, %s345
    %s348 = sphi 0, %s347
    %s362 = sphi 0, %s348
    %s366 = sphi 0, %s366
    %s368 = sphi 0, %s366
    %s369 = sphi 0, %s368
    %s383 = sphi 0, %s369
    %s387 = sphi 0, %s387
    %s389 = sphi 0, %s387
    %s390 = sphi 0, %s389
    %s404 = sphi 0, %s390
    %s408 = sphi 0, %s408
    %s410 = sphi 0, %s408
    %s411 = sphi 0, %s410
    %s425 = sphi 0, %s411
    %s431 = sphi 0, %s433
    %s434 = sphi 0, %s431
    %s435 = sphi 0, %s434
    %s451 = sphi 0, %s435
    %s457 = sphi 0, %s459
    %s460 = sphi 0, %s457
    %s461 = sphi 0, %s460
    %s477 = sphi 0, %s461
  $region4: #{forward.1} parent=0 // loop_header_branch
    %31 = sbr.rel (%p29) target = $region8
  $region5: #{forward.1} parent=0 // loop_body
    %s33 = ssub.s32 %s28, 1
    %s34 = ssub.s32 %s28, 2
    %s35 = sadd.s32 %s28, 1
    %s36 = ssub.s32 %s28, %s35
    %p37 = scmp.eq.s32.totalorder %s36, 0
    %s39 = sadd.s32 %s38, 1
    %s40 = scalar_select %p37, %s38, %s39
    %p43 = pneg %p37
    %p44 = scmp.eq.s32.totalorder %s28, 1
    %p45 = por %p43, %p44
    %p46 = scmp.ne.s32.totalorder %s38, %s41
    %p47 = scmp.eq.s32.totalorder %s28, 0
    %p48 = por %p46, %p47
    %p49 = scmp.ne.s32.totalorder %s38, %s41
    %p50 = scmp.eq.s32.totalorder %s33, 1
    %p51 = por %p49, %p50
    %p52 = scmp.ne.s32.totalorder %s41, %s42
    %p53 = scmp.eq.s32.totalorder %s33, 0
    %p54 = por %p52, %p53
    %p55 = scmp.ne.s32.totalorder %s41, %s42
    %p56 = scmp.eq.s32.totalorder %s34, 1
    %p57 = por %p55, %p56
    %p59 = scmp.ne.s32.totalorder %s42, %s58
    %p60 = scmp.eq.s32.totalorder %s34, 0
    %p61 = por %p59, %p60
    %s62 = ssub.s32 %s28, %s35
    %p63 = scmp.eq.s32.totalorder %s62, 0
    %s65 = sadd.s32 %s64, 1
    %s66 = scalar_select %p63, %s64, %s65
    %p69 = pneg %p63
    %p70 = scmp.eq.s32.totalorder %s28, 1
    %p71 = por %p69, %p70
    %p72 = scmp.ne.s32.totalorder %s64, %s67
    %p73 = scmp.eq.s32.totalorder %s28, 0
    %p74 = por %p72, %p73
    %p75 = scmp.ne.s32.totalorder %s64, %s67
    %p76 = scmp.eq.s32.totalorder %s33, 1
    %p77 = por %p75, %p76
    %p78 = scmp.ne.s32.totalorder %s67, %s68
    %p79 = scmp.eq.s32.totalorder %s33, 0
    %p80 = por %p78, %p79
    %p81 = scmp.ne.s32.totalorder %s67, %s68
    %p82 = scmp.eq.s32.totalorder %s34, 1
    %p83 = por %p81, %p82
    %p85 = scmp.ne.s32.totalorder %s68, %s84
    %p86 = scmp.eq.s32.totalorder %s34, 0
    %p87 = por %p85, %p86
    %s88 = ssub.s32 %s28, %s35
    %p89 = scmp.eq.s32.totalorder %s88, 0
    %s91 = sadd.s32 %s90, 1
    %s92 = scalar_select %p89, %s90, %s91
    %p95 = pneg %p89
    %p96 = scmp.eq.s32.totalorder %s28, 1
    %p97 = por %p95, %p96
    %p98 = scmp.ne.s32.totalorder %s90, %s93
    %p99 = scmp.eq.s32.totalorder %s28, 0
    %p100 = por %p98, %p99
    %p101 = scmp.ne.s32.totalorder %s90, %s93
    %p102 = scmp.eq.s32.totalorder %s33, 1
    %p103 = por %p101, %p102
    %p104 = scmp.ne.s32.totalorder %s93, %s94
    %p105 = scmp.eq.s32.totalorder %s33, 0
    %p106 = por %p104, %p105
    %p107 = scmp.ne.s32.totalorder %s93, %s94
    %p108 = scmp.eq.s32.totalorder %s34, 1
    %p109 = por %p107, %p108
    %p111 = scmp.ne.s32.totalorder %s94, %s110
    %p112 = scmp.eq.s32.totalorder %s34, 0
    %p113 = por %p111, %p112
    %s115 = sadd.s32 %s114, 1
    %p118 = scmp.eq.s32.totalorder %s28, 1
    %p119 = scmp.ne.s32.totalorder %s114, %s116
    %p120 = scmp.eq.s32.totalorder %s28, 0
    %p121 = por %p119, %p120
    %p122 = scmp.ne.s32.totalorder %s114, %s116
    %p123 = scmp.eq.s32.totalorder %s33, 1
    %p124 = por %p122, %p123
    %p125 = scmp.ne.s32.totalorder %s116, %s117
    %p126 = scmp.eq.s32.totalorder %s33, 0
    %p127 = por %p125, %p126
    %p128 = scmp.ne.s32.totalorder %s116, %s117
    %p129 = scmp.eq.s32.totalorder %s34, 1
    %p130 = por %p128, %p129
    %p132 = scmp.ne.s32.totalorder %s117, %s131
    %p133 = scmp.eq.s32.totalorder %s34, 0
    %p134 = por %p132, %p133
    %s136 = sadd.s32 %s135, 1
    %p139 = scmp.eq.s32.totalorder %s28, 1
    %p140 = scmp.ne.s32.totalorder %s135, %s137
    %p141 = scmp.eq.s32.totalorder %s28, 0
    %p142 = por %p140, %p141
    %p143 = scmp.ne.s32.totalorder %s135, %s137
    %p144 = scmp.eq.s32.totalorder %s33, 1
    %p145 = por %p143, %p144
    %p146 = scmp.ne.s32.totalorder %s137, %s138
    %p147 = scmp.eq.s32.totalorder %s33, 0
    %p148 = por %p146, %p147
    %p149 = scmp.ne.s32.totalorder %s137, %s138
    %p150 = scmp.eq.s32.totalorder %s34, 1
    %p151 = por %p149, %p150
    %p153 = scmp.ne.s32.totalorder %s138, %s152
    %p154 = scmp.eq.s32.totalorder %s34, 0
    %p155 = por %p153, %p154
    %s157 = sadd.s32 %s156, 1
    %p160 = scmp.eq.s32.totalorder %s28, 1
    %p161 = scmp.ne.s32.totalorder %s156, %s158
    %p162 = scmp.eq.s32.totalorder %s28, 0
    %p163 = por %p161, %p162
    %p164 = scmp.ne.s32.totalorder %s156, %s158
    %p165 = scmp.eq.s32.totalorder %s33, 1
    %p166 = por %p164, %p165
    %p167 = scmp.ne.s32.totalorder %s158, %s159
    %p168 = scmp.eq.s32.totalorder %s33, 0
    %p169 = por %p167, %p168
    %p170 = scmp.ne.s32.totalorder %s158, %s159
    %p171 = scmp.eq.s32.totalorder %s34, 1
    %p172 = por %p170, %p171
    %p174 = scmp.ne.s32.totalorder %s159, %s173
    %p175 = scmp.eq.s32.totalorder %s34, 0
    %p176 = por %p174, %p175
    %s178 = sadd.s32 %s177, 1
    %p181 = scmp.eq.s32.totalorder %s28, 1
    %p182 = scmp.ne.s32.totalorder %s177, %s179
    %p183 = scmp.eq.s32.totalorder %s28, 0
    %p184 = por %p182, %p183
    %p185 = scmp.ne.s32.totalorder %s177, %s179
    %p186 = scmp.eq.s32.totalorder %s33, 1
    %p187 = por %p185, %p186
    %p188 = scmp.ne.s32.totalorder %s179, %s180
    %p189 = scmp.eq.s32.totalorder %s33, 0
    %p190 = por %p188, %p189
    %p191 = scmp.ne.s32.totalorder %s179, %s180
    %p192 = scmp.eq.s32.totalorder %s34, 1
    %p193 = por %p191, %p192
    %p195 = scmp.ne.s32.totalorder %s180, %s194
    %p196 = scmp.eq.s32.totalorder %s34, 0
    %p197 = por %p195, %p196
    %s199 = sadd.s32 %s198, 1
    %p202 = scmp.eq.s32.totalorder %s28, 1
    %p203 = scmp.ne.s32.totalorder %s198, %s200
    %p204 = scmp.eq.s32.totalorder %s28, 0
    %p205 = por %p203, %p204
    %p206 = scmp.ne.s32.totalorder %s198, %s200
    %p207 = scmp.eq.s32.totalorder %s33, 1
    %p208 = por %p206, %p207
    %p209 = scmp.ne.s32.totalorder %s200, %s201
    %p210 = scmp.eq.s32.totalorder %s33, 0
    %p211 = por %p209, %p210
    %p212 = scmp.ne.s32.totalorder %s200, %s201
    %p213 = scmp.eq.s32.totalorder %s34, 1
    %p214 = por %p212, %p213
    %p216 = scmp.ne.s32.totalorder %s201, %s215
    %p217 = scmp.eq.s32.totalorder %s34, 0
    %p218 = por %p216, %p217
    %s220 = sadd.s32 %s219, 1
    %p223 = scmp.eq.s32.totalorder %s28, 1
    %p224 = scmp.ne.s32.totalorder %s219, %s221
    %p225 = scmp.eq.s32.totalorder %s28, 0
    %p226 = por %p224, %p225
    %p227 = scmp.ne.s32.totalorder %s219, %s221
    %p228 = scmp.eq.s32.totalorder %s33, 1
    %p229 = por %p227, %p228
    %p230 = scmp.ne.s32.totalorder %s221, %s222
    %p231 = scmp.eq.s32.totalorder %s33, 0
    %p232 = por %p230, %p231
    %p233 = scmp.ne.s32.totalorder %s221, %s222
    %p234 = scmp.eq.s32.totalorder %s34, 1
    %p235 = por %p233, %p234
    %p237 = scmp.ne.s32.totalorder %s222, %s236
    %p238 = scmp.eq.s32.totalorder %s34, 0
    %p239 = por %p237, %p238
    %s241 = sadd.s32 %s240, 1
    %p244 = scmp.eq.s32.totalorder %s28, 1
    %p245 = scmp.ne.s32.totalorder %s240, %s242
    %p246 = scmp.eq.s32.totalorder %s28, 0
    %p247 = por %p245, %p246
    %p248 = scmp.ne.s32.totalorder %s240, %s242
    %p249 = scmp.eq.s32.totalorder %s33, 1
    %p250 = por %p248, %p249
    %p251 = scmp.ne.s32.totalorder %s242, %s243
    %p252 = scmp.eq.s32.totalorder %s33, 0
    %p253 = por %p251, %p252
    %p254 = scmp.ne.s32.totalorder %s242, %s243
    %p255 = scmp.eq.s32.totalorder %s34, 1
    %p256 = por %p254, %p255
    %p258 = scmp.ne.s32.totalorder %s243, %s257
    %p259 = scmp.eq.s32.totalorder %s34, 0
    %p260 = por %p258, %p259
    %s262 = sadd.s32 %s261, 1
    %p265 = scmp.eq.s32.totalorder %s28, 1
    %p266 = scmp.ne.s32.totalorder %s261, %s263
    %p267 = scmp.eq.s32.totalorder %s28, 0
    %p268 = por %p266, %p267
    %p269 = scmp.ne.s32.totalorder %s261, %s263
    %p270 = scmp.eq.s32.totalorder %s33, 1
    %p271 = por %p269, %p270
    %p272 = scmp.ne.s32.totalorder %s263, %s264
    %p273 = scmp.eq.s32.totalorder %s33, 0
    %p274 = por %p272, %p273
    %p275 = scmp.ne.s32.totalorder %s263, %s264
    %p276 = scmp.eq.s32.totalorder %s34, 1
    %p277 = por %p275, %p276
    %p279 = scmp.ne.s32.totalorder %s264, %s278
    %p280 = scmp.eq.s32.totalorder %s34, 0
    %p281 = por %p279, %p280
    %s283 = sadd.s32 %s282, 1
    %p286 = scmp.eq.s32.totalorder %s28, 1
    %p287 = scmp.ne.s32.totalorder %s282, %s284
    %p288 = scmp.eq.s32.totalorder %s28, 0
    %p289 = por %p287, %p288
    %p290 = scmp.ne.s32.totalorder %s282, %s284
    %p291 = scmp.eq.s32.totalorder %s33, 1
    %p292 = por %p290, %p291
    %p293 = scmp.ne.s32.totalorder %s284, %s285
    %p294 = scmp.eq.s32.totalorder %s33, 0
    %p295 = por %p293, %p294
    %p296 = scmp.ne.s32.totalorder %s284, %s285
    %p297 = scmp.eq.s32.totalorder %s34, 1
    %p298 = por %p296, %p297
    %p300 = scmp.ne.s32.totalorder %s285, %s299
    %p301 = scmp.eq.s32.totalorder %s34, 0
    %p302 = por %p300, %p301
    %s304 = sadd.s32 %s303, 1
    %p307 = scmp.eq.s32.totalorder %s28, 1
    %p308 = scmp.ne.s32.totalorder %s303, %s305
    %p309 = scmp.eq.s32.totalorder %s28, 0
    %p310 = por %p308, %p309
    %p311 = scmp.ne.s32.totalorder %s303, %s305
    %p312 = scmp.eq.s32.totalorder %s33, 1
    %p313 = por %p311, %p312
    %p314 = scmp.ne.s32.totalorder %s305, %s306
    %p315 = scmp.eq.s32.totalorder %s33, 0
    %p316 = por %p314, %p315
    %p317 = scmp.ne.s32.totalorder %s305, %s306
    %p318 = scmp.eq.s32.totalorder %s34, 1
    %p319 = por %p317, %p318
    %p321 = scmp.ne.s32.totalorder %s306, %s320
    %p322 = scmp.eq.s32.totalorder %s34, 0
    %p323 = por %p321, %p322
    %s325 = sadd.s32 %s324, 1
    %p328 = scmp.eq.s32.totalorder %s28, 1
    %p329 = scmp.ne.s32.totalorder %s324, %s326
    %p330 = scmp.eq.s32.totalorder %s28, 0
    %p331 = por %p329, %p330
    %p332 = scmp.ne.s32.totalorder %s324, %s326
    %p333 = scmp.eq.s32.totalorder %s33, 1
    %p334 = por %p332, %p333
    %p335 = scmp.ne.s32.totalorder %s326, %s327
    %p336 = scmp.eq.s32.totalorder %s33, 0
    %p337 = por %p335, %p336
    %p338 = scmp.ne.s32.totalorder %s326, %s327
    %p339 = scmp.eq.s32.totalorder %s34, 1
    %p340 = por %p338, %p339
    %p342 = scmp.ne.s32.totalorder %s327, %s341
    %p343 = scmp.eq.s32.totalorder %s34, 0
    %p344 = por %p342, %p343
    %s346 = sadd.s32 %s345, 1
    %p349 = scmp.eq.s32.totalorder %s28, 1
    %p350 = scmp.ne.s32.totalorder %s345, %s347
    %p351 = scmp.eq.s32.totalorder %s28, 0
    %p352 = por %p350, %p351
    %p353 = scmp.ne.s32.totalorder %s345, %s347
    %p354 = scmp.eq.s32.totalorder %s33, 1
    %p355 = por %p353, %p354
    %p356 = scmp.ne.s32.totalorder %s347, %s348
    %p357 = scmp.eq.s32.totalorder %s33, 0
    %p358 = por %p356, %p357
    %p359 = scmp.ne.s32.totalorder %s347, %s348
    %p360 = scmp.eq.s32.totalorder %s34, 1
    %p361 = por %p359, %p360
    %p363 = scmp.ne.s32.totalorder %s348, %s362
    %p364 = scmp.eq.s32.totalorder %s34, 0
    %p365 = por %p363, %p364
    %s367 = sadd.s32 %s366, 1
    %p370 = scmp.eq.s32.totalorder %s28, 1
    %p371 = scmp.ne.s32.totalorder %s366, %s368
    %p372 = scmp.eq.s32.totalorder %s28, 0
    %p373 = por %p371, %p372
    %p374 = scmp.ne.s32.totalorder %s366, %s368
    %p375 = scmp.eq.s32.totalorder %s33, 1
    %p376 = por %p374, %p375
    %p377 = scmp.ne.s32.totalorder %s368, %s369
    %p378 = scmp.eq.s32.totalorder %s33, 0
    %p379 = por %p377, %p378
    %p380 = scmp.ne.s32.totalorder %s368, %s369
    %p381 = scmp.eq.s32.totalorder %s34, 1
    %p382 = por %p380, %p381
    %p384 = scmp.ne.s32.totalorder %s369, %s383
    %p385 = scmp.eq.s32.totalorder %s34, 0
    %p386 = por %p384, %p385
    %s388 = sadd.s32 %s387, 1
    %p391 = scmp.eq.s32.totalorder %s28, 1
    %p392 = scmp.ne.s32.totalorder %s387, %s389
    %p393 = scmp.eq.s32.totalorder %s28, 0
    %p394 = por %p392, %p393
    %p395 = scmp.ne.s32.totalorder %s387, %s389
    %p396 = scmp.eq.s32.totalorder %s33, 1
    %p397 = por %p395, %p396
    %p398 = scmp.ne.s32.totalorder %s389, %s390
    %p399 = scmp.eq.s32.totalorder %s33, 0
    %p400 = por %p398, %p399
    %p401 = scmp.ne.s32.totalorder %s389, %s390
    %p402 = scmp.eq.s32.totalorder %s34, 1
    %p403 = por %p401, %p402
    %p405 = scmp.ne.s32.totalorder %s390, %s404
    %p406 = scmp.eq.s32.totalorder %s34, 0
    %p407 = por %p405, %p406
    %s409 = sadd.s32 %s408, 1
    %p412 = scmp.eq.s32.totalorder %s28, 1
    %p413 = scmp.ne.s32.totalorder %s408, %s410
    %p414 = scmp.eq.s32.totalorder %s28, 0
    %p415 = por %p413, %p414
    %p416 = scmp.ne.s32.totalorder %s408, %s410
    %p417 = scmp.eq.s32.totalorder %s33, 1
    %p418 = por %p416, %p417
    %p419 = scmp.ne.s32.totalorder %s410, %s411
    %p420 = scmp.eq.s32.totalorder %s33, 0
    %p421 = por %p419, %p420
    %p422 = scmp.ne.s32.totalorder %s410, %s411
    %p423 = scmp.eq.s32.totalorder %s34, 1
    %p424 = por %p422, %p423
    %p426 = scmp.ne.s32.totalorder %s411, %s425
    %p427 = scmp.eq.s32.totalorder %s34, 0
    %p428 = por %p426, %p427
    %s429 = ssub.s32 %s28, %s35
    %p430 = scmp.eq.s32.totalorder %s429, 0
    %s432 = sadd.s32 %s431, 1
    %s433 = scalar_select %p430, %s431, %s432
    %p436 = pneg %p430
    %p437 = scmp.eq.s32.totalorder %s28, 1
    %p438 = por %p436, %p437
    %p439 = scmp.ne.s32.totalorder %s431, %s434
    %p440 = scmp.eq.s32.totalorder %s28, 0
    %p441 = por %p439, %p440
    %p442 = scmp.ne.s32.totalorder %s431, %s434
    %p443 = scmp.eq.s32.totalorder %s33, 1
    %p444 = por %p442, %p443
    %p445 = scmp.ne.s32.totalorder %s434, %s435
    %p446 = scmp.eq.s32.totalorder %s33, 0
    %p447 = por %p445, %p446
    %p448 = scmp.ne.s32.totalorder %s434, %s435
    %p449 = scmp.eq.s32.totalorder %s34, 1
    %p450 = por %p448, %p449
    %p452 = scmp.ne.s32.totalorder %s435, %s451
    %p453 = scmp.eq.s32.totalorder %s34, 0
    %p454 = por %p452, %p453
    %s455 = ssub.s32 %s28, %s35
    %p456 = scmp.eq.s32.totalorder %s455, 0
    %s458 = sadd.s32 %s457, 1
    %s459 = scalar_select %p456, %s457, %s458
    %p462 = pneg %p456
    %p463 = scmp.eq.s32.totalorder %s28, 1
    %p464 = por %p462, %p463
    %p465 = scmp.ne.s32.totalorder %s457, %s460
    %p466 = scmp.eq.s32.totalorder %s28, 0
    %p467 = por %p465, %p466
    %p468 = scmp.ne.s32.totalorder %s457, %s460
    %p469 = scmp.eq.s32.totalorder %s33, 1
    %p470 = por %p468, %p469
    %p471 = scmp.ne.s32.totalorder %s460, %s461
    %p472 = scmp.eq.s32.totalorder %s33, 0
    %p473 = por %p471, %p472
    %p474 = scmp.ne.s32.totalorder %s460, %s461
    %p475 = scmp.eq.s32.totalorder %s34, 1
    %p476 = por %p474, %p475
    %p478 = scmp.ne.s32.totalorder %s461, %s477
    %p479 = scmp.eq.s32.totalorder %s34, 0
    %p480 = por %p478, %p479
    %p481 = scmp.le.s32.totalorder 1, %s28
    %p482 = scmp.lt.s32.totalorder %s28, 3
    %p483 = pnand %p481, %p482
    %p484 = pneg %p483
    // Predicated region
    $region9: #{forward.1} parent=5 // pred_check
      _
    $region10: #{forward.1} parent=5 // pred_check_branch
      %486 = sbr.rel (%p483) target = $region12
    $region11: #{forward.1} parent=5 // pred_region
      %s487 = ssub.s32 %s28, 1
      // Predicated region
      $region13: #{forward.1} parent=11 // pred_check
        %p488 = pneg %p127
      $region14: #{forward.1} parent=11 // pred_check_branch
        %490 = sbr.rel (%p488) target = $region16
      $region15: #{forward.1} parent=11 // pred_region
        _
      $region16: #{forward.1} parent=11 // pred_fallthru
        _
      // Predicated region
      $region17: #{forward.1} parent=11 // pred_check
        %p491 = pneg %p148
      $region18: #{forward.1} parent=11 // pred_check_branch
        %493 = sbr.rel (%p491) target = $region20
      $region19: #{forward.1} parent=11 // pred_region
        _
      $region20: #{forward.1} parent=11 // pred_fallthru
        _
      // Predicated region
      $region21: #{forward.1} parent=11 // pred_check
        %p494 = pneg %p169
      $region22: #{forward.1} parent=11 // pred_check_branch
        %496 = sbr.rel (%p494) target = $region24
      $region23: #{forward.1} parent=11 // pred_region
        _
      $region24: #{forward.1} parent=11 // pred_fallthru
        _
      // Predicated region
      $region25: #{forward.1} parent=11 // pred_check
        %p497 = pneg %p190
      $region26: #{forward.1} parent=11 // pred_check_branch
        %499 = sbr.rel (%p497) target = $region28
      $region27: #{forward.1} parent=11 // pred_region
        _
      $region28: #{forward.1} parent=11 // pred_fallthru
        _
      // Predicated region
      $region29: #{forward.1} parent=11 // pred_check
        %p500 = pneg %p211
      $region30: #{forward.1} parent=11 // pred_check_branch
        %502 = sbr.rel (%p500) target = $region32
      $region31: #{forward.1} parent=11 // pred_region
        _
      $region32: #{forward.1} parent=11 // pred_fallthru
        _
      // Predicated region
      $region33: #{forward.1} parent=11 // pred_check
        %p503 = pneg %p232
      $region34: #{forward.1} parent=11 // pred_check_branch
        %505 = sbr.rel (%p503) target = $region36
      $region35: #{forward.1} parent=11 // pred_region
        _
      $region36: #{forward.1} parent=11 // pred_fallthru
        _
      // Predicated region
      $region37: #{forward.1} parent=11 // pred_check
        %p506 = pneg %p253
      $region38: #{forward.1} parent=11 // pred_check_branch
        %508 = sbr.rel (%p506) target = $region40
      $region39: #{forward.1} parent=11 // pred_region
        _
      $region40: #{forward.1} parent=11 // pred_fallthru
        _
      // Predicated region
      $region41: #{forward.1} parent=11 // pred_check
        %p509 = pneg %p274
      $region42: #{forward.1} parent=11 // pred_check_branch
        %511 = sbr.rel (%p509) target = $region44
      $region43: #{forward.1} parent=11 // pred_region
        _
      $region44: #{forward.1} parent=11 // pred_fallthru
        _
      // Predicated region
      $region45: #{forward.1} parent=11 // pred_check
        %p512 = pneg %p295
      $region46: #{forward.1} parent=11 // pred_check_branch
        %514 = sbr.rel (%p512) target = $region48
      $region47: #{forward.1} parent=11 // pred_region
        _
      $region48: #{forward.1} parent=11 // pred_fallthru
        _
      // Predicated region
      $region49: #{forward.1} parent=11 // pred_check
        %p515 = pneg %p316
      $region50: #{forward.1} parent=11 // pred_check_branch
        %517 = sbr.rel (%p515) target = $region52
      $region51: #{forward.1} parent=11 // pred_region
        _
      $region52: #{forward.1} parent=11 // pred_fallthru
        _
      // Predicated region
      $region53: #{forward.1} parent=11 // pred_check
        %p518 = pneg %p337
      $region54: #{forward.1} parent=11 // pred_check_branch
        %520 = sbr.rel (%p518) target = $region56
      $region55: #{forward.1} parent=11 // pred_region
        _
      $region56: #{forward.1} parent=11 // pred_fallthru
        _
      // Predicated region
      $region57: #{forward.1} parent=11 // pred_check
        %p521 = pneg %p358
      $region58: #{forward.1} parent=11 // pred_check_branch
        %523 = sbr.rel (%p521) target = $region60
      $region59: #{forward.1} parent=11 // pred_region
        _
      $region60: #{forward.1} parent=11 // pred_fallthru
        _
      // Predicated region
      $region61: #{forward.1} parent=11 // pred_check
        %p524 = pneg %p379
      $region62: #{forward.1} parent=11 // pred_check_branch
        %526 = sbr.rel (%p524) target = $region64
      $region63: #{forward.1} parent=11 // pred_region
        _
      $region64: #{forward.1} parent=11 // pred_fallthru
        _
      // Predicated region
      $region65: #{forward.1} parent=11 // pred_check
        %p527 = pneg %p400
      $region66: #{forward.1} parent=11 // pred_check_branch
        %529 = sbr.rel (%p527) target = $region68
      $region67: #{forward.1} parent=11 // pred_region
        _
      $region68: #{forward.1} parent=11 // pred_fallthru
        _
      // Predicated region
      $region69: #{forward.1} parent=11 // pred_check
        %p530 = pneg %p421
      $region70: #{forward.1} parent=11 // pred_check_branch
        %532 = sbr.rel (%p530) target = $region72
      $region71: #{forward.1} parent=11 // pred_region
        _
      $region72: #{forward.1} parent=11 // pred_fallthru
        _
    $region12: #{forward.1} parent=5 // pred_fallthru
      _
    %p533 = scmp.lt.s32.totalorder %s28, 2
    // Predicated region
    $region73: #{forward.1} parent=5 // pred_check
      %p534 = pneg %p533
    $region74: #{forward.1} parent=5 // pred_check_branch
      %536 = sbr.rel (%p534) target = $region76
    $region75: #{forward.1} parent=5 // pred_region
      // Predicated region
      $region77: #{forward.1} parent=75 // pred_check
        %p537 = pneg %p48
      $region78: #{forward.1} parent=75 // pred_check_branch
        %539 = sbr.rel (%p537) target = $region80
      $region79: #{forward.1} parent=75 // pred_region
        %p540 = scmp.lt.s32.totalorder %s28, 1
        %s541 = scalar_select %p540, %s28, 1
        %s542 = smul.addr %s541, 8
        %s543 = scalar_lea.vmem %s0, %s542
      $region80: #{forward.1} parent=75 // pred_fallthru
        _
      // Predicated region
      $region81: #{forward.1} parent=75 // pred_check
        %p544 = pneg %p74
      $region82: #{forward.1} parent=75 // pred_check_branch
        %546 = sbr.rel (%p544) target = $region84
      $region83: #{forward.1} parent=75 // pred_region
        %p547 = scmp.lt.s32.totalorder %s28, 1
        %s548 = scalar_select %p547, %s28, 1
        %s549 = scalar_lea.vmem %s1, %s548
      $region84: #{forward.1} parent=75 // pred_fallthru
        _
      // Predicated region
      $region85: #{forward.1} parent=75 // pred_check
        %p550 = pneg %p100
      $region86: #{forward.1} parent=75 // pred_check_branch
        %552 = sbr.rel (%p550) target = $region88
      $region87: #{forward.1} parent=75 // pred_region
        %p553 = scmp.lt.s32.totalorder %s28, 1
        %s554 = scalar_select %p553, %s28, 1
        %s555 = scalar_lea.vmem %s2, %s554
      $region88: #{forward.1} parent=75 // pred_fallthru
        _
    $region76: #{forward.1} parent=5 // pred_fallthru
      _
    %p556 = scmp.le.s32.totalorder 1, %s28
    %p557 = scmp.lt.s32.totalorder %s28, 3
    %p558 = pnand %p556, %p557
    %p559 = pneg %p558
    // Predicated region
    $region89: #{forward.1} parent=5 // pred_check
      _
    $region90: #{forward.1} parent=5 // pred_check_branch
      %561 = sbr.rel (%p558) target = $region92
    $region91: #{forward.1} parent=5 // pred_region
      %s562 = ssub.s32 %s28, 1
      %p563 = scmp.lt.s32.totalorder %s33, 1
      %s564 = scalar_select %p563, %s33, 1
      %s565 = smul.addr %s564, 8
      %s566 = scalar_lea.vmem %s0, %s565
      %p567 = pneg %p54
      %p568 = pneg %p51
      %p569 = scmp.lt.s32.totalorder %s33, 1
      %s570 = scalar_select %p569, %s33, 1
      %s571 = scalar_lea.vmem %s1, %s570
      %p572 = pneg %p80
      %p573 = pneg %p77
      %p574 = scmp.lt.s32.totalorder %s33, 1
      %s575 = scalar_select %p574, %s33, 1
      %s576 = scalar_lea.vmem %s2, %s575
      %p577 = pneg %p106
      %p578 = pneg %p103
      %p579 = pneg %p127
      %p580 = pneg %p124
      %p581 = pneg %p148
      %p582 = pneg %p145
      %p583 = pneg %p169
      %p584 = pneg %p166
      %p585 = pneg %p190
      %p586 = pneg %p187
      %p587 = pneg %p211
      %p588 = pneg %p208
      %p589 = pneg %p232
      %p590 = pneg %p229
      %p591 = pneg %p253
      %p592 = pneg %p250
      %p593 = pneg %p274
      %p594 = pneg %p271
      %p595 = pneg %p295
      %p596 = pneg %p292
      %p597 = pneg %p316
      %p598 = pneg %p313
      %p599 = pneg %p337
      %p600 = pneg %p334
      %p601 = pneg %p358
      %p602 = pneg %p355
      %p603 = pneg %p379
      %p604 = pneg %p376
      %p605 = pneg %p400
      %p606 = pneg %p397
      %p607 = pneg %p421
      %p608 = pneg %p418
      %p609 = pneg %p447
      %p610 = pneg %p444
      %p611 = scmp.lt.s32.totalorder %s33, 1
      %s612 = scalar_select %p611, %s33, 1
      %s613 = scalar_lea.vmem %s18, %s612
      %p614 = pneg %p473
      %p615 = pneg %p470
      %p616 = scmp.lt.s32.totalorder %s33, 1
      %s617 = scalar_select %p616, %s33, 1
      %s618 = scalar_lea.vmem %s19, %s617
      %p619 = scmp.lt.s32.totalorder %s33, 1
      %s620 = scalar_select %p619, %s33, 1
      %s621 = smul.addr %s620, 8
      %s622 = scalar_lea.vmem %s0, %s621
      %p623 = scmp.lt.s32.totalorder %s33, 1
      %s624 = scalar_select %p623, %s33, 1
      %s625 = scalar_lea.vmem %s1, %s624
      %p626 = scmp.lt.s32.totalorder %s33, 1
      %s627 = scalar_select %p626, %s33, 1
      %s628 = scalar_lea.vmem %s2, %s627
      %p629 = scmp.lt.s32.totalorder %s33, 1
      %s630 = scalar_select %p629, %s33, 1
      %s631 = scalar_lea.vmem %s18, %s630
      %p632 = scmp.lt.s32.totalorder %s33, 1
      %s633 = scalar_select %p632, %s33, 1
      %s634 = scalar_lea.vmem %s19, %s633
      %v635 = vld [vmem:[%s622] sm:$0xff]
      %v636 = vld [vmem:[%s625] sm:$0x1]
      %v637 = vld [vmem:[%s628] sm:$0x1]
      %v638 = vsub.f32 1.0, %v636
      %v639 = vmul.f32 %v638, -1e+09
      %v640 = vld [vmem:[%s3] sm:$0x3]
      %vm641 = vcmask 261120
      %v642 = vsel %vm641, %v635, 0.0
      %643 = vadd.xlane.f32.xlu0 %v642
      %v644 = vpop.xlane.xlu0 %643
      %v645 = vrcp.pop 32.0
      %v646 = vmul.f32 %v644, %v645
      %v647 = vsub.f32 %v635, %v646
      %v648 = vmul.f32 %v647, %v647
      %v649 = vsel %vm641, %v648, 0.0
      %650 = vadd.xlane.f32.xlu0 %v649
      %v651 = vpop.xlane.xlu0 %650
      %v652 = vmul.f32 %v651, %v645
      %v653 = vadd.f32 %v652, 1e-12
      %v654 = vrsqrt.pop %v653
      %v655 = vmul.f32 %v647, %v654
      %v656 = vlaneseq
      %v657 = vshrl.u32 %v656, 7
      %v658 = vsub.s32 0, %v657
      %v659 = vrot.slane %v640, %v658
      %v660 = vmul.f32 %v655, %v659
      %v661 = vlaneseq
      %v662 = vshrl.u32 %v661, 7
      %v663 = vsub.s32 1, %v662
      %v664 = vrot.slane %v640, %v663
      %v665 = vadd.f32 %v660, %v664
      %v666 = vld [vmem:[%s4] sm:$0xff]
      %v667 = vld [vmem:[%s4 + $0x8] sm:$0xff]
      %v668 = vld [vmem:[%s4 + $0x10] sm:$0xff]
      %v669 = vld [vmem:[%s4 + $0x18] sm:$0xff]
      %v670 = vld [vmem:[%s5] sm:$0x1]
      %v672 = vlaneseq
      %v673 = vshrl.u32 %v672, 7
      %v674 = vsub.s32 0, %v673
      %v675 = vrot.slane %v670, %v674
      %v678 = vsel %vm641, %v665, 0
      %680 = vmatprep.subr.mxu0 0.0
      %681 = vmatpush1.msra.mxu0 %v666
      %682 = vmatprep.subr.mxu0 0.0
      %683 = vmatpush1.msra.mxu0 %v667
      %684 = vmatprep.subr.mxu0 0.0
      %685 = vmatpush1.msra.mxu0 %v668
      %686 = vmatprep.subr.mxu0 0.0
      %687 = vmatpush1.msra.mxu0 %v669
      %688 = vmatprep.subr.mxu0 0.0
      %689 = vmatpush1.msra.mxu0 0.0
      %690 = vmatprep.subr.mxu0 0.0
      %691 = vmatpush1.msra.mxu0 0.0
      %692 = vmatprep.subr.mxu0 0.0
      %693 = vmatpush1.msra.mxu0 0.0
      %694 = vmatprep.subr.mxu0 0.0
      %695 = vmatpush1.msra.mxu0 0.0
      %696 = vmatprep.subr.mxu0 0.0
      %697 = vmatpush1.msra.mxu0 0.0
      %698 = vmatprep.subr.mxu0 0.0
      %699 = vmatpush1.msra.mxu0 0.0
      %700 = vmatprep.subr.mxu0 0.0
      %701 = vmatpush1.msra.mxu0 0.0
      %702 = vmatprep.subr.mxu0 0.0
      %703 = vmatpush1.msra.mxu0 0.0
      %704 = vmatprep.subr.mxu0 0.0
      %705 = vmatpush1.msra.mxu0 0.0
      %706 = vmatprep.subr.mxu0 0.0
      %707 = vmatpush1.msra.mxu0 0.0
      %708 = vmatprep.subr.mxu0 0.0
      %709 = vmatpush1.msra.mxu0 0.0
      %710 = vmatprep.subr.mxu0 0.0
      %711 = vmatpush1.msra.mxu0 0.0
      %712 = vmatprep.subr.mxu0 0.0
      %713 = vmatpush1.msra.mxu0 0.0
      %714 = vmatprep.subr.mxu0 0.0
      %715 = vmatpush1.msra.mxu0 0.0
      %716 = vmatprep.subr.mxu0 0.0
      %717 = vmatpush1.msra.mxu0 0.0
      %718 = vmatprep.subr.mxu0 0.0
      %719 = vmatpush1.msra.mxu0 0.0
      %720 = vmatprep.subr.mxu0 0.0
      %721 = vmatpush1.msra.mxu0 0.0
      %722 = vmatprep.subr.mxu0 0.0
      %723 = vmatpush1.msra.mxu0 0.0
      %724 = vmatprep.subr.mxu0 0.0
      %725 = vmatpush1.msra.mxu0 0.0
      %726 = vmatprep.subr.mxu0 0.0
      %727 = vmatpush1.msra.mxu0 0.0
      %728 = vmatprep.subr.mxu0 0.0
      %729 = vmatpush1.msra.mxu0 0.0
      %730 = vmatprep.subr.mxu0 0.0
      %731 = vmatpush1.msra.mxu0 0.0
      %732 = vmatprep.subr.mxu0 0.0
      %733 = vmatpush1.msra.mxu0 0.0
      %734 = vmatprep.subr.mxu0 0.0
      %735 = vmatpush1.msra.mxu0 0.0
      %736 = vmatprep.subr.mxu0 0.0
      %737 = vmatpush1.msra.mxu0 0.0
      %738 = vmatprep.subr.mxu0 0.0
      %739 = vmatpush1.msra.mxu0 0.0
      %740 = vmatprep.subr.mxu0 0.0
      %741 = vmatpush1.msra.mxu0 0.0
      %742 = vmatprep.subr.mxu0 0.0
      %743 = vmatpush1.msra.mxu0 0.0
      %744 = vmatprep.mubr.f32.mxu0 0.0
      %745 = vmatmul.mubr.f32.gmra.mrb[0].mxu0 %v678
      %v746 = vpop.f32.mrb[0].mxu0
      %v747 = vadd.f32 %v675, %v746
      %v748 = vpop.f32.mrb[0].mxu0
      %749 = vdwg.mxu0
      %v750 = vld [vmem:[%s6] sm:$0xff]
      %v751 = vld [vmem:[%s6 + $0x8] sm:$0xff]
      %v752 = vld [vmem:[%s6 + $0x10] sm:$0xff]
      %v753 = vld [vmem:[%s6 + $0x18] sm:$0xff]
      %755 = vrot.lane.b32.xlu0 %v747, 96
      %v756 = vpop.permute.xlu0 %755
      %vm757 = vcmask 64512
      %v758 = vsel %vm757, %v747, 0
      %v760 = vsel %vm757, %v756, 0
      %762 = vmatprep.subr.mxu0 0.0
      %763 = vmatpush1.xpose.msra.mxu0 %v760
      %764 = vmatprep.subr.mxu0 0.0
      %765 = vmatpush1.xpose.msra.mxu0 0.0
      %766 = vmatprep.subr.mxu0 0.0
      %767 = vmatpush1.xpose.msra.mxu0 0.0
      %768 = vmatprep.subr.mxu0 0.0
      %769 = vmatpush1.xpose.msra.mxu0 0.0
      %770 = vmatprep.subr.mxu0 0.0
      %771 = vmatpush1.xpose.msra.mxu0 0.0
      %772 = vmatprep.subr.mxu0 0.0
      %773 = vmatpush1.xpose.msra.mxu0 0.0
      %774 = vmatprep.subr.mxu0 0.0
      %775 = vmatpush1.xpose.msra.mxu0 0.0
      %776 = vmatprep.subr.mxu0 0.0
      %777 = vmatpush1.xpose.msra.mxu0 0.0
      %778 = vmatprep.subr.mxu0 0.0
      %779 = vmatpush1.xpose.msra.mxu0 0.0
      %780 = vmatprep.subr.mxu0 0.0
      %781 = vmatpush1.xpose.msra.mxu0 0.0
      %782 = vmatprep.subr.mxu0 0.0
      %783 = vmatpush1.xpose.msra.mxu0 0.0
      %784 = vmatprep.subr.mxu0 0.0
      %785 = vmatpush1.xpose.msra.mxu0 0.0
      %786 = vmatprep.subr.mxu0 0.0
      %787 = vmatpush1.xpose.msra.mxu0 0.0
      %788 = vmatprep.subr.mxu0 0.0
      %789 = vmatpush1.xpose.msra.mxu0 0.0
      %790 = vmatprep.subr.mxu0 0.0
      %791 = vmatpush1.xpose.msra.mxu0 0.0
      %792 = vmatprep.subr.mxu0 0.0
      %793 = vmatpush1.xpose.msra.mxu0 0.0
      %794 = vmatprep.subr.mxu0 0.0
      %795 = vmatpush1.xpose.msra.mxu0 0.0
      %796 = vmatprep.subr.mxu0 0.0
      %797 = vmatpush1.xpose.msra.mxu0 0.0
      %798 = vmatprep.subr.mxu0 0.0
      %799 = vmatpush1.xpose.msra.mxu0 0.0
      %800 = vmatprep.subr.mxu0 0.0
      %801 = vmatpush1.xpose.msra.mxu0 0.0
      %802 = vmatprep.subr.mxu0 0.0
      %803 = vmatpush1.xpose.msra.mxu0 0.0
      %804 = vmatprep.subr.mxu0 0.0
      %805 = vmatpush1.xpose.msra.mxu0 0.0
      %806 = vmatprep.subr.mxu0 0.0
      %807 = vmatpush1.xpose.msra.mxu0 0.0
      %808 = vmatprep.subr.mxu0 0.0
      %809 = vmatpush1.xpose.msra.mxu0 0.0
      %810 = vmatprep.subr.mxu0 0.0
      %811 = vmatpush1.xpose.msra.mxu0 0.0
      %812 = vmatprep.subr.mxu0 0.0
      %813 = vmatpush1.xpose.msra.mxu0 0.0
      %814 = vmatprep.subr.mxu0 0.0
      %815 = vmatpush1.xpose.msra.mxu0 0.0
      %816 = vmatprep.subr.mxu0 0.0
      %817 = vmatpush1.xpose.msra.mxu0 0.0
      %818 = vmatprep.subr.mxu0 0.0
      %819 = vmatpush1.xpose.msra.mxu0 0.0
      %820 = vmatprep.subr.mxu0 0.0
      %821 = vmatpush1.xpose.msra.mxu0 0.0
      %822 = vmatprep.subr.mxu0 0.0
      %823 = vmatpush1.xpose.msra.mxu0 0.0
      %824 = vmatprep.subr.mxu0 0.0
      %825 = vmatpush1.xpose.msra.mxu0 0.0
      %826 = vmatprep.mubr.f32.mxu0 0.0
      %827 = vmatmul.mubr.f32.gmra.mrb[0].mxu0 %v758
      %v828 = vpop.f32.mrb[0].mxu0
      %v829 = vadd.f32 0.0, %v828
      %v830 = vpop.f32.mrb[0].mxu0
      %831 = vdwg.mxu0
      %v832 = vmul.f32 %v829, 0.35355338
      %v834 = vlaneseq
      %v835 = vshrl.u32 %v834, 7
      %v836 = vsub.s32 0, %v835
      %v837 = vrot.slane %v639, %v836
      %v839 = vadd.f32 %v832, %v837
      %v840 = vsel %vm757, %v839, -inf
      %841 = vmax.xlane.f32.xlu0 %v840
      %v842 = vpop.xlane.xlu0 %841
      %v843 = vsub.f32 %v839, %v842
      %v844 = vmul.f32 %v843, 1.442695
      %v845 = vpow.pop %v844
      %v846 = vsel %vm757, %v845, 0.0
      %847 = vadd.xlane.f32.xlu0 %v846
      %v848 = vpop.xlane.xlu0 %847
      %v849 = vrcp.pop %v848
      %v850 = vmul.f32 %v845, %v849
      %851 = vrot.lane.b32.xlu0 %v747, 64
      %v852 = vpop.permute.xlu0 %851
      %v855 = vsel %vm757, %v850, 0
      %857 = vmatprep.subr.mxu0 0.0
      %858 = vmatpush1.msra.mxu0 %v852
      %859 = vmatprep.subr.mxu0 0.0
      %860 = vmatpush1.msra.mxu0 0.0
      %861 = vmatprep.subr.mxu0 0.0
      %862 = vmatpush1.msra.mxu0 0.0
      %863 = vmatprep.subr.mxu0 0.0
      %864 = vmatpush1.msra.mxu0 0.0
      %865 = vmatprep.subr.mxu0 0.0
      %866 = vmatpush1.msra.mxu0 0.0
      %867 = vmatprep.subr.mxu0 0.0
      %868 = vmatpush1.msra.mxu0 0.0
      %869 = vmatprep.subr.mxu0 0.0
      %870 = vmatpush1.msra.mxu0 0.0
      %871 = vmatprep.subr.mxu0 0.0
      %872 = vmatpush1.msra.mxu0 0.0
      %873 = vmatprep.subr.mxu0 0.0
      %874 = vmatpush1.msra.mxu0 0.0
      %875 = vmatprep.subr.mxu0 0.0
      %876 = vmatpush1.msra.mxu0 0.0
      %877 = vmatprep.subr.mxu0 0.0
      %878 = vmatpush1.msra.mxu0 0.0
      %879 = vmatprep.subr.mxu0 0.0
      %880 = vmatpush1.msra.mxu0 0.0
      %881 = vmatprep.subr.mxu0 0.0
      %882 = vmatpush1.msra.mxu0 0.0
      %883 = vmatprep.subr.mxu0 0.0
      %884 = vmatpush1.msra.mxu0 0.0
      %885 = vmatprep.subr.mxu0 0.0
      %886 = vmatpush1.msra.mxu0 0.0
      %887 = vmatprep.subr.mxu0 0.0
      %888 = vmatpush1.msra.mxu0 0.0
      %889 = vmatprep.subr.mxu0 0.0
      %890 = vmatpush1.msra.mxu0 0.0
      %891 = vmatprep.subr.mxu0 0.0
      %892 = vmatpush1.msra.mxu0 0.0
      %893 = vmatprep.subr.mxu0 0.0
      %894 = vmatpush1.msra.mxu0 0.0
      %895 = vmatprep.subr.mxu0 0.0
      %896 = vmatpush1.msra.mxu0 0.0
      %897 = vmatprep.subr.mxu0 0.0
      %898 = vmatpush1.msra.mxu0 0.0
      %899 = vmatprep.subr.mxu0 0.0
      %900 = vmatpush1.msra.mxu0 0.0
      %901 = vmatprep.subr.mxu0 0.0
      %902 = vmatpush1.msra.mxu0 0.0
      %903 = vmatprep.subr.mxu0 0.0
      %904 = vmatpush1.msra.mxu0 0.0
      %905 = vmatprep.subr.mxu0 0.0
      %906 = vmatpush1.msra.mxu0 0.0
      %907 = vmatprep.subr.mxu0 0.0
      %908 = vmatpush1.msra.mxu0 0.0
      %909 = vmatprep.subr.mxu0 0.0
      %910 = vmatpush1.msra.mxu0 0.0
      %911 = vmatprep.subr.mxu0 0.0
      %912 = vmatpush1.msra.mxu0 0.0
      %913 = vmatprep.subr.mxu0 0.0
      %914 = vmatpush1.msra.mxu0 0.0
      %915 = vmatprep.subr.mxu0 0.0
      %916 = vmatpush1.msra.mxu0 0.0
      %917 = vmatprep.subr.mxu0 0.0
      %918 = vmatpush1.msra.mxu0 0.0
      %919 = vmatprep.subr.mxu0 0.0
      %920 = vmatpush1.msra.mxu0 0.0
      %921 = vmatprep.mubr.f32.mxu0 0.0
      %922 = vmatmul.mubr.f32.gmra.mrb[0].mxu0 %v855
      %v923 = vpop.f32.mrb[0].mxu0
      %v924 = vadd.f32 0.0, %v923
      %v925 = vpop.f32.mrb[0].mxu0
      %926 = vdwg.mxu0
      %927 = vrot.lane.b32.xlu0 %v747, 120
      %v928 = vpop.permute.xlu0 %927
      %929 = vrot.lane.b32.xlu0 %v747, 88
      %v930 = vpop.permute.xlu0 %929
      %v931 = vsel %vm757, %v928, 0
      %v933 = vsel %vm757, %v930, 0
      %935 = vmatprep.subr.mxu0 0.0
      %936 = vmatpush1.xpose.msra.mxu0 %v933
      %937 = vmatprep.subr.mxu0 0.0
      %938 = vmatpush1.xpose.msra.mxu0 0.0
      %939 = vmatprep.subr.mxu0 0.0
      %940 = vmatpush1.xpose.msra.mxu0 0.0
      %941 = vmatprep.subr.mxu0 0.0
      %942 = vmatpush1.xpose.msra.mxu0 0.0
      %943 = vmatprep.subr.mxu0 0.0
      %944 = vmatpush1.xpose.msra.mxu0 0.0
      %945 = vmatprep.subr.mxu0 0.0
      %946 = vmatpush1.xpose.msra.mxu0 0.0
      %947 = vmatprep.subr.mxu0 0.0
      %948 = vmatpush1.xpose.msra.mxu0 0.0
      %949 = vmatprep.subr.mxu0 0.0
      %950 = vmatpush1.xpose.msra.mxu0 0.0
      %951 = vmatprep.subr.mxu0 0.0
      %952 = vmatpush1.xpose.msra.mxu0 0.0
      %953 = vmatprep.subr.mxu0 0.0
      %954 = vmatpush1.xpose.msra.mxu0 0.0
      %955 = vmatprep.subr.mxu0 0.0
      %956 = vmatpush1.xpose.msra.mxu0 0.0
      %957 = vmatprep.subr.mxu0 0.0
      %958 = vmatpush1.xpose.msra.mxu0 0.0
      %959 = vmatprep.subr.mxu0 0.0
      %960 = vmatpush1.xpose.msra.mxu0 0.0
      %961 = vmatprep.subr.mxu0 0.0
      %962 = vmatpush1.xpose.msra.mxu0 0.0
      %963 = vmatprep.subr.mxu0 0.0
      %964 = vmatpush1.xpose.msra.mxu0 0.0
      %965 = vmatprep.subr.mxu0 0.0
      %966 = vmatpush1.xpose.msra.mxu0 0.0
      %967 = vmatprep.subr.mxu0 0.0
      %968 = vmatpush1.xpose.msra.mxu0 0.0
      %969 = vmatprep.subr.mxu0 0.0
      %970 = vmatpush1.xpose.msra.mxu0 0.0
      %971 = vmatprep.subr.mxu0 0.0
      %972 = vmatpush1.xpose.msra.mxu0 0.0
      %973 = vmatprep.subr.mxu0 0.0
      %974 = vmatpush1.xpose.msra.mxu0 0.0
      %975 = vmatprep.subr.mxu0 0.0
      %976 = vmatpush1.xpose.msra.mxu0 0.0
      %977 = vmatprep.subr.mxu0 0.0
      %978 = vmatpush1.xpose.msra.mxu0 0.0
      %979 = vmatprep.subr.mxu0 0.0
      %980 = vmatpush1.xpose.msra.mxu0 0.0
      %981 = vmatprep.subr.mxu0 0.0
      %982 = vmatpush1.xpose.msra.mxu0 0.0
      %983 = vmatprep.subr.mxu0 0.0
      %984 = vmatpush1.xpose.msra.mxu0 0.0
      %985 = vmatprep.subr.mxu0 0.0
      %986 = vmatpush1.xpose.msra.mxu0 0.0
      %987 = vmatprep.subr.mxu0 0.0
      %988 = vmatpush1.xpose.msra.mxu0 0.0
      %989 = vmatprep.subr.mxu0 0.0
      %990 = vmatpush1.xpose.msra.mxu0 0.0
      %991 = vmatprep.subr.mxu0 0.0
      %992 = vmatpush1.xpose.msra.mxu0 0.0
      %993 = vmatprep.subr.mxu0 0.0
      %994 = vmatpush1.xpose.msra.mxu0 0.0
      %995 = vmatprep.subr.mxu0 0.0
      %996 = vmatpush1.xpose.msra.mxu0 0.0
      %997 = vmatprep.subr.mxu0 0.0
      %998 = vmatpush1.xpose.msra.mxu0 0.0
      %999 = vmatprep.mubr.f32.mxu0 0.0
      %1000 = vmatmul.mubr.f32.gmra.mrb[0].mxu0 %v931
      %v1001 = vpop.f32.mrb[0].mxu0
      %v1002 = vadd.f32 0.0, %v1001
      %v1003 = vpop.f32.mrb[0].mxu0
      %1004 = vdwg.mxu0
      %v1005 = vmul.f32 %v1002, 0.35355338
      %v1006 = vadd.f32 %v1005, %v837
      %v1007 = vsel %vm757, %v1006, -inf
      %1008 = vmax.xlane.f32.xlu0 %v1007
      %v1009 = vpop.xlane.xlu0 %1008
      %v1010 = vsub.f32 %v1006, %v1009
      %v1011 = vmul.f32 %v1010, 1.442695
      %v1012 = vpow.pop %v1011
      %v1013 = vsel %vm757, %v1012, 0.0
      %1014 = vadd.xlane.f32.xlu0 %v1013
      %v1015 = vpop.xlane.xlu0 %1014
      %v1016 = vrcp.pop %v1015
      %v1017 = vmul.f32 %v1012, %v1016
      %1018 = vrot.lane.b32.xlu0 %v747, 56
      %v1019 = vpop.permute.xlu0 %1018
      %v1022 = vsel %vm757, %v1017, 0
      %1024 = vmatprep.subr.mxu0 0.0
      %1025 = vmatpush1.msra.mxu0 %v1019
      %1026 = vmatprep.subr.mxu0 0.0
      %1027 = vmatpush1.msra.mxu0 0.0
      %1028 = vmatprep.subr.mxu0 0.0
      %1029 = vmatpush1.msra.mxu0 0.0
      %1030 = vmatprep.subr.mxu0 0.0
      %1031 = vmatpush1.msra.mxu0 0.0
      %1032 = vmatprep.subr.mxu0 0.0
      %1033 = vmatpush1.msra.mxu0 0.0
      %1034 = vmatprep.subr.mxu0 0.0
      %1035 = vmatpush1.msra.mxu0 0.0
      %1036 = vmatprep.subr.mxu0 0.0
      %1037 = vmatpush1.msra.mxu0 0.0
      %1038 = vmatprep.subr.mxu0 0.0
      %1039 = vmatpush1.msra.mxu0 0.0
      %1040 = vmatprep.subr.mxu0 0.0
      %1041 = vmatpush1.msra.mxu0 0.0
      %1042 = vmatprep.subr.mxu0 0.0
      %1043 = vmatpush1.msra.mxu0 0.0
      %1044 = vmatprep.subr.mxu0 0.0
      %1045 = vmatpush1.msra.mxu0 0.0
      %1046 = vmatprep.subr.mxu0 0.0
      %1047 = vmatpush1.msra.mxu0 0.0
      %1048 = vmatprep.subr.mxu0 0.0
      %1049 = vmatpush1.msra.mxu0 0.0
      %1050 = vmatprep.subr.mxu0 0.0
      %1051 = vmatpush1.msra.mxu0 0.0
      %1052 = vmatprep.subr.mxu0 0.0
      %1053 = vmatpush1.msra.mxu0 0.0
      %1054 = vmatprep.subr.mxu0 0.0
      %1055 = vmatpush1.msra.mxu0 0.0
      %1056 = vmatprep.subr.mxu0 0.0
      %1057 = vmatpush1.msra.mxu0 0.0
      %1058 = vmatprep.subr.mxu0 0.0
      %1059 = vmatpush1.msra.mxu0 0.0
      %1060 = vmatprep.subr.mxu0 0.0
      %1061 = vmatpush1.msra.mxu0 0.0
      %1062 = vmatprep.subr.mxu0 0.0
      %1063 = vmatpush1.msra.mxu0 0.0
      %1064 = vmatprep.subr.mxu0 0.0
      %1065 = vmatpush1.msra.mxu0 0.0
      %1066 = vmatprep.subr.mxu0 0.0
      %1067 = vmatpush1.msra.mxu0 0.0
      %1068 = vmatprep.subr.mxu0 0.0
      %1069 = vmatpush1.msra.mxu0 0.0
      %1070 = vmatprep.subr.mxu0 0.0
      %1071 = vmatpush1.msra.mxu0 0.0
      %1072 = vmatprep.subr.mxu0 0.0
      %1073 = vmatpush1.msra.mxu0 0.0
      %1074 = vmatprep.subr.mxu0 0.0
      %1075 = vmatpush1.msra.mxu0 0.0
      %1076 = vmatprep.subr.mxu0 0.0
      %1077 = vmatpush1.msra.mxu0 0.0
      %1078 = vmatprep.subr.mxu0 0.0
      %1079 = vmatpush1.msra.mxu0 0.0
      %1080 = vmatprep.subr.mxu0 0.0
      %1081 = vmatpush1.msra.mxu0 0.0
      %1082 = vmatprep.subr.mxu0 0.0
      %1083 = vmatpush1.msra.mxu0 0.0
      %1084 = vmatprep.subr.mxu0 0.0
      %1085 = vmatpush1.msra.mxu0 0.0
      %1086 = vmatprep.subr.mxu0 0.0
      %1087 = vmatpush1.msra.mxu0 0.0
      %1088 = vmatprep.mubr.f32.mxu0 0.0
      %1089 = vmatmul.mubr.f32.gmra.mrb[0].mxu0 %v1022
      %v1090 = vpop.f32.mrb[0].mxu0
      %v1091 = vadd.f32 0.0, %v1090
      %v1092 = vpop.f32.mrb[0].mxu0
      %1093 = vdwg.mxu0
      %v1095 = vsel %vm757, %v1091, 0
      %1097 = vmatprep.subr.mxu0 0.0
      %1098 = vmatpush1.msra.mxu0 %v751
      %1099 = vmatprep.subr.mxu0 0.0
      %1100 = vmatpush1.msra.mxu0 0.0
      %1101 = vmatprep.subr.mxu0 0.0
      %1102 = vmatpush1.msra.mxu0 0.0
      %1103 = vmatprep.subr.mxu0 0.0
      %1104 = vmatpush1.msra.mxu0 0.0
      %1105 = vmatprep.subr.mxu0 0.0
      %1106 = vmatpush1.msra.mxu0 0.0
      %1107 = vmatprep.subr.mxu0 0.0
      %1108 = vmatpush1.msra.mxu0 0.0
      %1109 = vmatprep.subr.mxu0 0.0
      %1110 = vmatpush1.msra.mxu0 0.0
      %1111 = vmatprep.subr.mxu0 0.0
      %1112 = vmatpush1.msra.mxu0 0.0
      %1113 = vmatprep.subr.mxu0 0.0
      %1114 = vmatpush1.msra.mxu0 0.0
      %1115 = vmatprep.subr.mxu0 0.0
      %1116 = vmatpush1.msra.mxu0 0.0
      %1117 = vmatprep.subr.mxu0 0.0
      %1118 = vmatpush1.msra.mxu0 0.0
      %1119 = vmatprep.subr.mxu0 0.0
      %1120 = vmatpush1.msra.mxu0 0.0
      %1121 = vmatprep.subr.mxu0 0.0
      %1122 = vmatpush1.msra.mxu0 0.0
      %1123 = vmatprep.subr.mxu0 0.0
      %1124 = vmatpush1.msra.mxu0 0.0
      %1125 = vmatprep.subr.mxu0 0.0
      %1126 = vmatpush1.msra.mxu0 0.0
      %1127 = vmatprep.subr.mxu0 0.0
      %1128 = vmatpush1.msra.mxu0 0.0
      %1129 = vmatprep.subr.mxu0 0.0
      %1130 = vmatpush1.msra.mxu0 0.0
      %1131 = vmatprep.subr.mxu0 0.0
      %1132 = vmatpush1.msra.mxu0 0.0
      %1133 = vmatprep.subr.mxu0 0.0
      %1134 = vmatpush1.msra.mxu0 0.0
      %1135 = vmatprep.subr.mxu0 0.0
      %1136 = vmatpush1.msra.mxu0 0.0
      %1137 = vmatprep.subr.mxu0 0.0
      %1138 = vmatpush1.msra.mxu0 0.0
      %1139 = vmatprep.subr.mxu0 0.0
      %1140 = vmatpush1.msra.mxu0 0.0
      %1141 = vmatprep.subr.mxu0 0.0
      %1142 = vmatpush1.msra.mxu0 0.0
      %1143 = vmatprep.subr.mxu0 0.0
      %1144 = vmatpush1.msra.mxu0 0.0
      %1145 = vmatprep.subr.mxu0 0.0
      %1146 = vmatpush1.msra.mxu0 0.0
      %1147 = vmatprep.subr.mxu0 0.0
      %1148 = vmatpush1.msra.mxu0 0.0
      %1149 = vmatprep.subr.mxu0 0.0
      %1150 = vmatpush1.msra.mxu0 0.0
      %1151 = vmatprep.subr.mxu0 0.0
      %1152 = vmatpush1.msra.mxu0 0.0
      %1153 = vmatprep.subr.mxu0 0.0
      %1154 = vmatpush1.msra.mxu0 0.0
      %1155 = vmatprep.subr.mxu0 0.0
      %1156 = vmatpush1.msra.mxu0 0.0
      %1157 = vmatprep.subr.mxu0 0.0
      %1158 = vmatpush1.msra.mxu0 0.0
      %1159 = vmatprep.subr.mxu0 0.0
      %1160 = vmatpush1.msra.mxu0 0.0
      %1161 = vmatprep.mubr.f32.mxu0 0.0
      %1162 = vmatmul.mubr.f32.gmra.mrb[0].mxu0 %v1095
      %v1163 = vpop.f32.mrb[0].mxu0
      %v1164 = vadd.f32 0.0, %v1163
      %v1165 = vpop.f32.mrb[0].mxu0
      %1166 = vdwg.mxu0
      %v1168 = vsel %vm757, %v924, 0
      %1170 = vmatprep.subr.mxu0 0.0
      %1171 = vmatpush1.msra.mxu0 %v750
      %1172 = vmatprep.subr.mxu0 0.0
      %1173 = vmatpush1.msra.mxu0 0.0
      %1174 = vmatprep.subr.mxu0 0.0
      %1175 = vmatpush1.msra.mxu0 0.0
      %1176 = vmatprep.subr.mxu0 0.0
      %1177 = vmatpush1.msra.mxu0 0.0
      %1178 = vmatprep.subr.mxu0 0.0
      %1179 = vmatpush1.msra.mxu0 0.0
      %1180 = vmatprep.subr.mxu0 0.0
      %1181 = vmatpush1.msra.mxu0 0.0
      %1182 = vmatprep.subr.mxu0 0.0
      %1183 = vmatpush1.msra.mxu0 0.0
      %1184 = vmatprep.subr.mxu0 0.0
      %1185 = vmatpush1.msra.mxu0 0.0
      %1186 = vmatprep.subr.mxu0 0.0
      %1187 = vmatpush1.msra.mxu0 0.0
      %1188 = vmatprep.subr.mxu0 0.0
      %1189 = vmatpush1.msra.mxu0 0.0
      %1190 = vmatprep.subr.mxu0 0.0
      %1191 = vmatpush1.msra.mxu0 0.0
      %1192 = vmatprep.subr.mxu0 0.0
      %1193 = vmatpush1.msra.mxu0 0.0
      %1194 = vmatprep.subr.mxu0 0.0
      %1195 = vmatpush1.msra.mxu0 0.0
      %1196 = vmatprep.subr.mxu0 0.0
      %1197 = vmatpush1.msra.mxu0 0.0
      %1198 = vmatprep.subr.mxu0 0.0
      %1199 = vmatpush1.msra.mxu0 0.0
      %1200 = vmatprep.subr.mxu0 0.0
      %1201 = vmatpush1.msra.mxu0 0.0
      %1202 = vmatprep.subr.mxu0 0.0
      %1203 = vmatpush1.msra.mxu0 0.0
      %1204 = vmatprep.subr.mxu0 0.0
      %1205 = vmatpush1.msra.mxu0 0.0
      %1206 = vmatprep.subr.mxu0 0.0
      %1207 = vmatpush1.msra.mxu0 0.0
      %1208 = vmatprep.subr.mxu0 0.0
      %1209 = vmatpush1.msra.mxu0 0.0
      %1210 = vmatprep.subr.mxu0 0.0
      %1211 = vmatpush1.msra.mxu0 0.0
      %1212 = vmatprep.subr.mxu0 0.0
      %1213 = vmatpush1.msra.mxu0 0.0
      %1214 = vmatprep.subr.mxu0 0.0
      %1215 = vmatpush1.msra.mxu0 0.0
      %1216 = vmatprep.subr.mxu0 0.0
      %1217 = vmatpush1.msra.mxu0 0.0
      %1218 = vmatprep.subr.mxu0 0.0
      %1219 = vmatpush1.msra.mxu0 0.0
      %1220 = vmatprep.subr.mxu0 0.0
      %1221 = vmatpush1.msra.mxu0 0.0
      %1222 = vmatprep.subr.mxu0 0.0
      %1223 = vmatpush1.msra.mxu0 0.0
      %1224 = vmatprep.subr.mxu0 0.0
      %1225 = vmatpush1.msra.mxu0 0.0
      %1226 = vmatprep.subr.mxu0 0.0
      %1227 = vmatpush1.msra.mxu0 0.0
      %1228 = vmatprep.subr.mxu0 0.0
      %1229 = vmatpush1.msra.mxu0 0.0
      %1230 = vmatprep.subr.mxu0 0.0
      %1231 = vmatpush1.msra.mxu0 0.0
      %1232 = vmatprep.subr.mxu0 0.0
      %1233 = vmatpush1.msra.mxu0 0.0
      %1234 = vmatprep.mubr.f32.mxu0 0.0
      %1235 = vmatmul.mubr.f32.gmra.mrb[0].mxu0 %v1168
      %v1236 = vpop.f32.mrb[0].mxu0
      %v1237 = vadd.f32 %v1164, %v1236
      %v1238 = vpop.f32.mrb[0].mxu0
      %1239 = vdwg.mxu0
      %1240 = vrot.lane.b32.xlu0 %v747, 112
      %v1241 = vpop.permute.xlu0 %1240
      %1242 = vrot.lane.b32.xlu0 %v747, 80
      %v1243 = vpop.permute.xlu0 %1242
      %v1244 = vsel %vm757, %v1241, 0
      %v1246 = vsel %vm757, %v1243, 0
      %1248 = vmatprep.subr.mxu0 0.0
      %1249 = vmatpush1.xpose.msra.mxu0 %v1246
      %1250 = vmatprep.subr.mxu0 0.0
      %1251 = vmatpush1.xpose.msra.mxu0 0.0
      %1252 = vmatprep.subr.mxu0 0.0
      %1253 = vmatpush1.xpose.msra.mxu0 0.0
      %1254 = vmatprep.subr.mxu0 0.0
      %1255 = vmatpush1.xpose.msra.mxu0 0.0
      %1256 = vmatprep.subr.mxu0 0.0
      %1257 = vmatpush1.xpose.msra.mxu0 0.0
      %1258 = vmatprep.subr.mxu0 0.0
      %1259 = vmatpush1.xpose.msra.mxu0 0.0
      %1260 = vmatprep.subr.mxu0 0.0
      %1261 = vmatpush1.xpose.msra.mxu0 0.0
      %1262 = vmatprep.subr.mxu0 0.0
      %1263 = vmatpush1.xpose.msra.mxu0 0.0
      %1264 = vmatprep.subr.mxu0 0.0
      %1265 = vmatpush1.xpose.msra.mxu0 0.0
      %1266 = vmatprep.subr.mxu0 0.0
      %1267 = vmatpush1.xpose.msra.mxu0 0.0
      %1268 = vmatprep.subr.mxu0 0.0
      %1269 = vmatpush1.xpose.msra.mxu0 0.0
      %1270 = vmatprep.subr.mxu0 0.0
      %1271 = vmatpush1.xpose.msra.mxu0 0.0
      %1272 = vmatprep.subr.mxu0 0.0
      %1273 = vmatpush1.xpose.msra.mxu0 0.0
      %1274 = vmatprep.subr.mxu0 0.0
      %1275 = vmatpush1.xpose.msra.mxu0 0.0
      %1276 = vmatprep.subr.mxu0 0.0
      %1277 = vmatpush1.xpose.msra.mxu0 0.0
      %1278 = vmatprep.subr.mxu0 0.0
      %1279 = vmatpush1.xpose.msra.mxu0 0.0
      %1280 = vmatprep.subr.mxu0 0.0
      %1281 = vmatpush1.xpose.msra.mxu0 0.0
      %1282 = vmatprep.subr.mxu0 0.0
      %1283 = vmatpush1.xpose.msra.mxu0 0.0
      %1284 = vmatprep.subr.mxu0 0.0
      %1285 = vmatpush1.xpose.msra.mxu0 0.0
      %1286 = vmatprep.subr.mxu0 0.0
      %1287 = vmatpush1.xpose.msra.mxu0 0.0
      %1288 = vmatprep.subr.mxu0 0.0
      %1289 = vmatpush1.xpose.msra.mxu0 0.0
      %1290 = vmatprep.subr.mxu0 0.0
      %1291 = vmatpush1.xpose.msra.mxu0 0.0
      %1292 = vmatprep.subr.mxu0 0.0
      %1293 = vmatpush1.xpose.msra.mxu0 0.0
      %1294 = vmatprep.subr.mxu0 0.0
      %1295 = vmatpush1.xpose.msra.mxu0 0.0
      %1296 = vmatprep.subr.mxu0 0.0
      %1297 = vmatpush1.xpose.msra.mxu0 0.0
      %1298 = vmatprep.subr.mxu0 0.0
      %1299 = vmatpush1.xpose.msra.mxu0 0.0
      %1300 = vmatprep.subr.mxu0 0.0
      %1301 = vmatpush1.xpose.msra.mxu0 0.0
      %1302 = vmatprep.subr.mxu0 0.0
      %1303 = vmatpush1.xpose.msra.mxu0 0.0
      %1304 = vmatprep.subr.mxu0 0.0
      %1305 = vmatpush1.xpose.msra.mxu0 0.0
      %1306 = vmatprep.subr.mxu0 0.0
      %1307 = vmatpush1.xpose.msra.mxu0 0.0
      %1308 = vmatprep.subr.mxu0 0.0
      %1309 = vmatpush1.xpose.msra.mxu0 0.0
      %1310 = vmatprep.subr.mxu0 0.0
      %1311 = vmatpush1.xpose.msra.mxu0 0.0
      %1312 = vmatprep.mubr.f32.mxu0 0.0
      %1313 = vmatmul.mubr.f32.gmra.mrb[0].mxu0 %v1244
      %v1314 = vpop.f32.mrb[0].mxu0
      %v1315 = vadd.f32 0.0, %v1314
      %v1316 = vpop.f32.mrb[0].mxu0
      %1317 = vdwg.mxu0
      %v1318 = vmul.f32 %v1315, 0.35355338
      %v1319 = vadd.f32 %v1318, %v837
      %v1320 = vsel %vm757, %v1319, -inf
      %1321 = vmax.xlane.f32.xlu0 %v1320
      %v1322 = vpop.xlane.xlu0 %1321
      %v1323 = vsub.f32 %v1319, %v1322
      %v1324 = vmul.f32 %v1323, 1.442695
      %v1325 = vpow.pop %v1324
      %v1326 = vsel %vm757, %v1325, 0.0
      %1327 = vadd.xlane.f32.xlu0 %v1326
      %v1328 = vpop.xlane.xlu0 %1327
      %v1329 = vrcp.pop %v1328
      %v1330 = vmul.f32 %v1325, %v1329
      %1331 = vrot.lane.b32.xlu0 %v747, 48
      %v1332 = vpop.permute.xlu0 %1331
      %v1335 = vsel %vm757, %v1330, 0
      %1337 = vmatprep.subr.mxu0 0.0
      %1338 = vmatpush1.msra.mxu0 %v1332
      %1339 = vmatprep.subr.mxu0 0.0
      %1340 = vmatpush1.msra.mxu0 0.0
      %1341 = vmatprep.subr.mxu0 0.0
      %1342 = vmatpush1.msra.mxu0 0.0
      %1343 = vmatprep.subr.mxu0 0.0
      %1344 = vmatpush1.msra.mxu0 0.0
      %1345 = vmatprep.subr.mxu0 0.0
      %1346 = vmatpush1.msra.mxu0 0.0
      %1347 = vmatprep.subr.mxu0 0.0
      %1348 = vmatpush1.msra.mxu0 0.0
      %1349 = vmatprep.subr.mxu0 0.0
      %1350 = vmatpush1.msra.mxu0 0.0
      %1351 = vmatprep.subr.mxu0 0.0
      %1352 = vmatpush1.msra.mxu0 0.0
      %1353 = vmatprep.subr.mxu0 0.0
      %1354 = vmatpush1.msra.mxu0 0.0
      %1355 = vmatprep.subr.mxu0 0.0
      %1356 = vmatpush1.msra.mxu0 0.0
      %1357 = vmatprep.subr.mxu0 0.0
      %1358 = vmatpush1.msra.mxu0 0.0
      %1359 = vmatprep.subr.mxu0 0.0
      %1360 = vmatpush1.msra.mxu0 0.0
      %1361 = vmatprep.subr.mxu0 0.0
      %1362 = vmatpush1.msra.mxu0 0.0
      %1363 = vmatprep.subr.mxu0 0.0
      %1364 = vmatpush1.msra.mxu0 0.0
      %1365 = vmatprep.subr.mxu0 0.0
      %1366 = vmatpush1.msra.mxu0 0.0
      %1367 = vmatprep.subr.mxu0 0.0
      %1368 = vmatpush1.msra.mxu0 0.0
      %1369 = vmatprep.subr.mxu0 0.0
      %1370 = vmatpush1.msra.mxu0 0.0
      %1371 = vmatprep.subr.mxu0 0.0
      %1372 = vmatpush1.msra.mxu0 0.0
      %1373 = vmatprep.subr.mxu0 0.0
      %1374 = vmatpush1.msra.mxu0 0.0
      %1375 = vmatprep.subr.mxu0 0.0
      %1376 = vmatpush1.msra.mxu0 0.0
      %1377 = vmatprep.subr.mxu0 0.0
      %1378 = vmatpush1.msra.mxu0 0.0
      %1379 = vmatprep.subr.mxu0 0.0
      %1380 = vmatpush1.msra.mxu0 0.0
      %1381 = vmatprep.subr.mxu0 0.0
      %1382 = vmatpush1.msra.mxu0 0.0
      %1383 = vmatprep.subr.mxu0 0.0
      %1384 = vmatpush1.msra.mxu0 0.0
      %1385 = vmatprep.subr.mxu0 0.0
      %1386 = vmatpush1.msra.mxu0 0.0
      %1387 = vmatprep.subr.mxu0 0.0
      %1388 = vmatpush1.msra.mxu0 0.0
      %1389 = vmatprep.subr.mxu0 0.0
      %1390 = vmatpush1.msra.mxu0 0.0
      %1391 = vmatprep.subr.mxu0 0.0
      %1392 = vmatpush1.msra.mxu0 0.0
      %1393 = vmatprep.subr.mxu0 0.0
      %1394 = vmatpush1.msra.mxu0 0.0
      %1395 = vmatprep.subr.mxu0 0.0
      %1396 = vmatpush1.msra.mxu0 0.0
      %1397 = vmatprep.subr.mxu0 0.0
      %1398 = vmatpush1.msra.mxu0 0.0
      %1399 = vmatprep.subr.mxu0 0.0
      %1400 = vmatpush1.msra.mxu0 0.0
      %1401 = vmatprep.mubr.f32.mxu0 0.0
      %1402 = vmatmul.mubr.f32.gmra.mrb[0].mxu0 %v1335
      %v1403 = vpop.f32.mrb[0].mxu0
      %v1404 = vadd.f32 0.0, %v1403
      %v1405 = vpop.f32.mrb[0].mxu0
      %1406 = vdwg.mxu0
      %v1408 = vsel %vm757, %v1404, 0
      %1410 = vmatprep.subr.mxu0 0.0
      %1411 = vmatpush1.msra.mxu0 %v752
      %1412 = vmatprep.subr.mxu0 0.0
      %1413 = vmatpush1.msra.mxu0 0.0
      %1414 = vmatprep.subr.mxu0 0.0
      %1415 = vmatpush1.msra.mxu0 0.0
      %1416 = vmatprep.subr.mxu0 0.0
      %1417 = vmatpush1.msra.mxu0 0.0
      %1418 = vmatprep.subr.mxu0 0.0
      %1419 = vmatpush1.msra.mxu0 0.0
      %1420 = vmatprep.subr.mxu0 0.0
      %1421 = vmatpush1.msra.mxu0 0.0
      %1422 = vmatprep.subr.mxu0 0.0
      %1423 = vmatpush1.msra.mxu0 0.0
      %1424 = vmatprep.subr.mxu0 0.0
      %1425 = vmatpush1.msra.mxu0 0.0
      %1426 = vmatprep.subr.mxu0 0.0
      %1427 = vmatpush1.msra.mxu0 0.0
      %1428 = vmatprep.subr.mxu0 0.0
      %1429 = vmatpush1.msra.mxu0 0.0
      %1430 = vmatprep.subr.mxu0 0.0
      %1431 = vmatpush1.msra.mxu0 0.0
      %1432 = vmatprep.subr.mxu0 0.0
      %1433 = vmatpush1.msra.mxu0 0.0
      %1434 = vmatprep.subr.mxu0 0.0
      %1435 = vmatpush1.msra.mxu0 0.0
      %1436 = vmatprep.subr.mxu0 0.0
      %1437 = vmatpush1.msra.mxu0 0.0
      %1438 = vmatprep.subr.mxu0 0.0
      %1439 = vmatpush1.msra.mxu0 0.0
      %1440 = vmatprep.subr.mxu0 0.0
      %1441 = vmatpush1.msra.mxu0 0.0
      %1442 = vmatprep.subr.mxu0 0.0
      %1443 = vmatpush1.msra.mxu0 0.0
      %1444 = vmatprep.subr.mxu0 0.0
      %1445 = vmatpush1.msra.mxu0 0.0
      %1446 = vmatprep.subr.mxu0 0.0
      %1447 = vmatpush1.msra.mxu0 0.0
      %1448 = vmatprep.subr.mxu0 0.0
      %1449 = vmatpush1.msra.mxu0 0.0
      %1450 = vmatprep.subr.mxu0 0.0
      %1451 = vmatpush1.msra.mxu0 0.0
      %1452 = vmatprep.subr.mxu0 0.0
      %1453 = vmatpush1.msra.mxu0 0.0
      %1454 = vmatprep.subr.mxu0 0.0
      %1455 = vmatpush1.msra.mxu0 0.0
      %1456 = vmatprep.subr.mxu0 0.0
      %1457 = vmatpush1.msra.mxu0 0.0
      %1458 = vmatprep.subr.mxu0 0.0
      %1459 = vmatpush1.msra.mxu0 0.0
      %1460 = vmatprep.subr.mxu0 0.0
      %1461 = vmatpush1.msra.mxu0 0.0
      %1462 = vmatprep.subr.mxu0 0.0
      %1463 = vmatpush1.msra.mxu0 0.0
      %1464 = vmatprep.subr.mxu0 0.0
      %1465 = vmatpush1.msra.mxu0 0.0
      %1466 = vmatprep.subr.mxu0 0.0
      %1467 = vmatpush1.msra.mxu0 0.0
      %1468 = vmatprep.subr.mxu0 0.0
      %1469 = vmatpush1.msra.mxu0 0.0
      %1470 = vmatprep.subr.mxu0 0.0
      %1471 = vmatpush1.msra.mxu0 0.0
      %1472 = vmatprep.subr.mxu0 0.0
      %1473 = vmatpush1.msra.mxu0 0.0
      %1474 = vmatprep.mubr.f32.mxu0 0.0
      %1475 = vmatmul.mubr.f32.gmra.mrb[0].mxu0 %v1408
      %v1476 = vpop.f32.mrb[0].mxu0
      %v1477 = vadd.f32 0.0, %v1476
      %v1478 = vpop.f32.mrb[0].mxu0
      %1479 = vdwg.mxu0
      %v1480 = vadd.f32 %v1237, %v1477
      %1481 = vrot.lane.b32.xlu0 %v747, 104
      %v1482 = vpop.permute.xlu0 %1481
      %1483 = vrot.lane.b32.xlu0 %v747, 72
      %v1484 = vpop.permute.xlu0 %1483
      %v1485 = vsel %vm757, %v1482, 0
      %v1487 = vsel %vm757, %v1484, 0
      %1489 = vmatprep.subr.mxu0 0.0
      %1490 = vmatpush1.xpose.msra.mxu0 %v1487
      %1491 = vmatprep.subr.mxu0 0.0
      %1492 = vmatpush1.xpose.msra.mxu0 0.0
      %1493 = vmatprep.subr.mxu0 0.0
      %1494 = vmatpush1.xpose.msra.mxu0 0.0
      %1495 = vmatprep.subr.mxu0 0.0
      %1496 = vmatpush1.xpose.msra.mxu0 0.0
      %1497 = vmatprep.subr.mxu0 0.0
      %1498 = vmatpush1.xpose.msra.mxu0 0.0
      %1499 = vmatprep.subr.mxu0 0.0
      %1500 = vmatpush1.xpose.msra.mxu0 0.0
      %1501 = vmatprep.subr.mxu0 0.0
      %1502 = vmatpush1.xpose.msra.mxu0 0.0
      %1503 = vmatprep.subr.mxu0 0.0
      %1504 = vmatpush1.xpose.msra.mxu0 0.0
      %1505 = vmatprep.subr.mxu0 0.0
      %1506 = vmatpush1.xpose.msra.mxu0 0.0
      %1507 = vmatprep.subr.mxu0 0.0
      %1508 = vmatpush1.xpose.msra.mxu0 0.0
      %1509 = vmatprep.subr.mxu0 0.0
      %1510 = vmatpush1.xpose.msra.mxu0 0.0
      %1511 = vmatprep.subr.mxu0 0.0
      %1512 = vmatpush1.xpose.msra.mxu0 0.0
      %1513 = vmatprep.subr.mxu0 0.0
      %1514 = vmatpush1.xpose.msra.mxu0 0.0
      %1515 = vmatprep.subr.mxu0 0.0
      %1516 = vmatpush1.xpose.msra.mxu0 0.0
      %1517 = vmatprep.subr.mxu0 0.0
      %1518 = vmatpush1.xpose.msra.mxu0 0.0
      %1519 = vmatprep.subr.mxu0 0.0
      %1520 = vmatpush1.xpose.msra.mxu0 0.0
      %1521 = vmatprep.subr.mxu0 0.0
      %1522 = vmatpush1.xpose.msra.mxu0 0.0
      %1523 = vmatprep.subr.mxu0 0.0
      %1524 = vmatpush1.xpose.msra.mxu0 0.0
      %1525 = vmatprep.subr.mxu0 0.0
      %1526 = vmatpush1.xpose.msra.mxu0 0.0
      %1527 = vmatprep.subr.mxu0 0.0
      %1528 = vmatpush1.xpose.msra.mxu0 0.0
      %1529 = vmatprep.subr.mxu0 0.0
      %1530 = vmatpush1.xpose.msra.mxu0 0.0
      %1531 = vmatprep.subr.mxu0 0.0
      %1532 = vmatpush1.xpose.msra.mxu0 0.0
      %1533 = vmatprep.subr.mxu0 0.0
      %1534 = vmatpush1.xpose.msra.mxu0 0.0
      %1535 = vmatprep.subr.mxu0 0.0
      %1536 = vmatpush1.xpose.msra.mxu0 0.0
      %1537 = vmatprep.subr.mxu0 0.0
      %1538 = vmatpush1.xpose.msra.mxu0 0.0
      %1539 = vmatprep.subr.mxu0 0.0
      %1540 = vmatpush1.xpose.msra.mxu0 0.0
      %1541 = vmatprep.subr.mxu0 0.0
      %1542 = vmatpush1.xpose.msra.mxu0 0.0
      %1543 = vmatprep.subr.mxu0 0.0
      %1544 = vmatpush1.xpose.msra.mxu0 0.0
      %1545 = vmatprep.subr.mxu0 0.0
      %1546 = vmatpush1.xpose.msra.mxu0 0.0
      %1547 = vmatprep.subr.mxu0 0.0
      %1548 = vmatpush1.xpose.msra.mxu0 0.0
      %1549 = vmatprep.subr.mxu0 0.0
      %1550 = vmatpush1.xpose.msra.mxu0 0.0
      %1551 = vmatprep.subr.mxu0 0.0
      %1552 = vmatpush1.xpose.msra.mxu0 0.0
      %1553 = vmatprep.mubr.f32.mxu0 0.0
      %1554 = vmatmul.mubr.f32.gmra.mrb[0].mxu0 %v1485
      %v1555 = vpop.f32.mrb[0].mxu0
      %v1556 = vadd.f32 0.0, %v1555
      %v1557 = vpop.f32.mrb[0].mxu0
      %1558 = vdwg.mxu0
      %v1559 = vmul.f32 %v1556, 0.35355338
      %v1560 = vadd.f32 %v1559, %v837
      %v1561 = vsel %vm757, %v1560, -inf
      %1562 = vmax.xlane.f32.xlu0 %v1561
      %v1563 = vpop.xlane.xlu0 %1562
      %v1564 = vsub.f32 %v1560, %v1563
      %v1565 = vmul.f32 %v1564, 1.442695
      %v1566 = vpow.pop %v1565
      %v1567 = vsel %vm757, %v1566, 0.0
      %1568 = vadd.xlane.f32.xlu0 %v1567
      %v1569 = vpop.xlane.xlu0 %1568
      %v1570 = vrcp.pop %v1569
      %v1571 = vmul.f32 %v1566, %v1570
      %1572 = vrot.lane.b32.xlu0 %v747, 40
      %v1573 = vpop.permute.xlu0 %1572
      %v1576 = vsel %vm757, %v1571, 0
      %1578 = vmatprep.subr.mxu0 0.0
      %1579 = vmatpush1.msra.mxu0 %v1573
      %1580 = vmatprep.subr.mxu0 0.0
      %1581 = vmatpush1.msra.mxu0 0.0
      %1582 = vmatprep.subr.mxu0 0.0
      %1583 = vmatpush1.msra.mxu0 0.0
      %1584 = vmatprep.subr.mxu0 0.0
      %1585 = vmatpush1.msra.mxu0 0.0
      %1586 = vmatprep.subr.mxu0 0.0
      %1587 = vmatpush1.msra.mxu0 0.0
      %1588 = vmatprep.subr.mxu0 0.0
      %1589 = vmatpush1.msra.mxu0 0.0
      %1590 = vmatprep.subr.mxu0 0.0
      %1591 = vmatpush1.msra.mxu0 0.0
      %1592 = vmatprep.subr.mxu0 0.0
      %1593 = vmatpush1.msra.mxu0 0.0
      %1594 = vmatprep.subr.mxu0 0.0
      %1595 = vmatpush1.msra.mxu0 0.0
      %1596 = vmatprep.subr.mxu0 0.0
      %1597 = vmatpush1.msra.mxu0 0.0
      %1598 = vmatprep.subr.mxu0 0.0
      %1599 = vmatpush1.msra.mxu0 0.0
      %1600 = vmatprep.subr.mxu0 0.0
      %1601 = vmatpush1.msra.mxu0 0.0
      %1602 = vmatprep.subr.mxu0 0.0
      %1603 = vmatpush1.msra.mxu0 0.0
      %1604 = vmatprep.subr.mxu0 0.0
      %1605 = vmatpush1.msra.mxu0 0.0
      %1606 = vmatprep.subr.mxu0 0.0
      %1607 = vmatpush1.msra.mxu0 0.0
      %1608 = vmatprep.subr.mxu0 0.0
      %1609 = vmatpush1.msra.mxu0 0.0
      %1610 = vmatprep.subr.mxu0 0.0
      %1611 = vmatpush1.msra.mxu0 0.0
      %1612 = vmatprep.subr.mxu0 0.0
      %1613 = vmatpush1.msra.mxu0 0.0
      %1614 = vmatprep.subr.mxu0 0.0
      %1615 = vmatpush1.msra.mxu0 0.0
      %1616 = vmatprep.subr.mxu0 0.0
      %1617 = vmatpush1.msra.mxu0 0.0
      %1618 = vmatprep.subr.mxu0 0.0
      %1619 = vmatpush1.msra.mxu0 0.0
      %1620 = vmatprep.subr.mxu0 0.0
      %1621 = vmatpush1.msra.mxu0 0.0
      %1622 = vmatprep.subr.mxu0 0.0
      %1623 = vmatpush1.msra.mxu0 0.0
      %1624 = vmatprep.subr.mxu0 0.0
      %1625 = vmatpush1.msra.mxu0 0.0
      %1626 = vmatprep.subr.mxu0 0.0
      %1627 = vmatpush1.msra.mxu0 0.0
      %1628 = vmatprep.subr.mxu0 0.0
      %1629 = vmatpush1.msra.mxu0 0.0
      %1630 = vmatprep.subr.mxu0 0.0
      %1631 = vmatpush1.msra.mxu0 0.0
      %1632 = vmatprep.subr.mxu0 0.0
      %1633 = vmatpush1.msra.mxu0 0.0
      %1634 = vmatprep.subr.mxu0 0.0
      %1635 = vmatpush1.msra.mxu0 0.0
      %1636 = vmatprep.subr.mxu0 0.0
      %1637 = vmatpush1.msra.mxu0 0.0
      %1638 = vmatprep.subr.mxu0 0.0
      %1639 = vmatpush1.msra.mxu0 0.0
      %1640 = vmatprep.subr.mxu0 0.0
      %1641 = vmatpush1.msra.mxu0 0.0
      %1642 = vmatprep.mubr.f32.mxu0 0.0
      %1643 = vmatmul.mubr.f32.gmra.mrb[0].mxu0 %v1576
      %v1644 = vpop.f32.mrb[0].mxu0
      %v1645 = vadd.f32 0.0, %v1644
      %v1646 = vpop.f32.mrb[0].mxu0
      %1647 = vdwg.mxu0
      %v1649 = vsel %vm757, %v1645, 0
      %1651 = vmatprep.subr.mxu0 0.0
      %1652 = vmatpush1.msra.mxu0 %v753
      %1653 = vmatprep.subr.mxu0 0.0
      %1654 = vmatpush1.msra.mxu0 0.0
      %1655 = vmatprep.subr.mxu0 0.0
      %1656 = vmatpush1.msra.mxu0 0.0
      %1657 = vmatprep.subr.mxu0 0.0
      %1658 = vmatpush1.msra.mxu0 0.0
      %1659 = vmatprep.subr.mxu0 0.0
      %1660 = vmatpush1.msra.mxu0 0.0
      %1661 = vmatprep.subr.mxu0 0.0
      %1662 = vmatpush1.msra.mxu0 0.0
      %1663 = vmatprep.subr.mxu0 0.0
      %1664 = vmatpush1.msra.mxu0 0.0
      %1665 = vmatprep.subr.mxu0 0.0
      %1666 = vmatpush1.msra.mxu0 0.0
      %1667 = vmatprep.subr.mxu0 0.0
      %1668 = vmatpush1.msra.mxu0 0.0
      %1669 = vmatprep.subr.mxu0 0.0
      %1670 = vmatpush1.msra.mxu0 0.0
      %1671 = vmatprep.subr.mxu0 0.0
      %1672 = vmatpush1.msra.mxu0 0.0
      %1673 = vmatprep.subr.mxu0 0.0
      %1674 = vmatpush1.msra.mxu0 0.0
      %1675 = vmatprep.subr.mxu0 0.0
      %1676 = vmatpush1.msra.mxu0 0.0
      %1677 = vmatprep.subr.mxu0 0.0
      %1678 = vmatpush1.msra.mxu0 0.0
      %1679 = vmatprep.subr.mxu0 0.0
      %1680 = vmatpush1.msra.mxu0 0.0
      %1681 = vmatprep.subr.mxu0 0.0
      %1682 = vmatpush1.msra.mxu0 0.0
      %1683 = vmatprep.subr.mxu0 0.0
      %1684 = vmatpush1.msra.mxu0 0.0
      %1685 = vmatprep.subr.mxu0 0.0
      %1686 = vmatpush1.msra.mxu0 0.0
      %1687 = vmatprep.subr.mxu0 0.0
      %1688 = vmatpush1.msra.mxu0 0.0
      %1689 = vmatprep.subr.mxu0 0.0
      %1690 = vmatpush1.msra.mxu0 0.0
      %1691 = vmatprep.subr.mxu0 0.0
      %1692 = vmatpush1.msra.mxu0 0.0
      %1693 = vmatprep.subr.mxu0 0.0
      %1694 = vmatpush1.msra.mxu0 0.0
      %1695 = vmatprep.subr.mxu0 0.0
      %1696 = vmatpush1.msra.mxu0 0.0
      %1697 = vmatprep.subr.mxu0 0.0
      %1698 = vmatpush1.msra.mxu0 0.0
      %1699 = vmatprep.subr.mxu0 0.0
      %1700 = vmatpush1.msra.mxu0 0.0
      %1701 = vmatprep.subr.mxu0 0.0
      %1702 = vmatpush1.msra.mxu0 0.0
      %1703 = vmatprep.subr.mxu0 0.0
      %1704 = vmatpush1.msra.mxu0 0.0
      %1705 = vmatprep.subr.mxu0 0.0
      %1706 = vmatpush1.msra.mxu0 0.0
      %1707 = vmatprep.subr.mxu0 0.0
      %1708 = vmatpush1.msra.mxu0 0.0
      %1709 = vmatprep.subr.mxu0 0.0
      %1710 = vmatpush1.msra.mxu0 0.0
      %1711 = vmatprep.subr.mxu0 0.0
      %1712 = vmatpush1.msra.mxu0 0.0
      %1713 = vmatprep.subr.mxu0 0.0
      %1714 = vmatpush1.msra.mxu0 0.0
      %1715 = vmatprep.mubr.f32.mxu0 0.0
      %1716 = vmatmul.mubr.f32.gmra.mrb[0].mxu0 %v1649
      %v1717 = vpop.f32.mrb[0].mxu0
      %v1718 = vadd.f32 0.0, %v1717
      %v1719 = vpop.f32.mrb[0].mxu0
      %1720 = vdwg.mxu0
      %v1721 = vadd.f32 %v1480, %v1718
      %v1722 = vld [vmem:[%s7] sm:$0x1]
      %v1724 = vlaneseq
      %v1725 = vshrl.u32 %v1724, 7
      %v1726 = vsub.s32 0, %v1725
      %v1727 = vrot.slane %v1722, %v1726
      %v1729 = vadd.f32 %v1721, %v1727
      %v1730 = vadd.f32 %v665, %v1729
      %v1731 = vld [vmem:[%s8] sm:$0x3]
      %v1732 = vsel %vm641, %v1730, 0.0
      %1733 = vadd.xlane.f32.xlu0 %v1732
      %v1734 = vpop.xlane.xlu0 %1733
      %v1735 = vmul.f32 %v1734, %v645
      %v1736 = vsub.f32 %v1730, %v1735
      %v1737 = vmul.f32 %v1736, %v1736
      %v1738 = vsel %vm641, %v1737, 0.0
      %1739 = vadd.xlane.f32.xlu0 %v1738
      %v1740 = vpop.xlane.xlu0 %1739
      %v1741 = vmul.f32 %v1740, %v645
      %v1742 = vadd.f32 %v1741, 1e-12
      %v1743 = vrsqrt.pop %v1742
      %v1744 = vmul.f32 %v1736, %v1743
      %v1745 = vlaneseq
      %v1746 = vshrl.u32 %v1745, 7
      %v1747 = vsub.s32 0, %v1746
      %v1748 = vrot.slane %v1731, %v1747
      %v1749 = vmul.f32 %v1744, %v1748
      %v1750 = vlaneseq
      %v1751 = vshrl.u32 %v1750, 7
      %v1752 = vsub.s32 1, %v1751
      %v1753 = vrot.slane %v1731, %v1752
      %v1754 = vadd.f32 %v1749, %v1753
      %v1755 = vld [vmem:[%s9] sm:$0xff]
      %v1756 = vld [vmem:[%s9 + $0x8] sm:$0xff]
      %v1757 = vld [vmem:[%s9 + $0x10] sm:$0xff]
      %v1758 = vld [vmem:[%s9 + $0x18] sm:$0xff]
      %v1759 = vld [vmem:[%s10] sm:$0x1]
      %v1761 = vlaneseq
      %v1762 = vshrl.u32 %v1761, 7
      %v1763 = vsub.s32 0, %v1762
      %v1764 = vrot.slane %v1759, %v1763
      %v1767 = vsel %vm641, %v1754, 0
      %1769 = vmatprep.subr.mxu0 0.0
      %1770 = vmatpush1.msra.mxu0 %v1755
      %1771 = vmatprep.subr.mxu0 0.0
      %1772 = vmatpush1.msra.mxu0 %v1756
      %1773 = vmatprep.subr.mxu0 0.0
      %1774 = vmatpush1.msra.mxu0 %v1757
      %1775 = vmatprep.subr.mxu0 0.0
      %1776 = vmatpush1.msra.mxu0 %v1758
      %1777 = vmatprep.subr.mxu0 0.0
      %1778 = vmatpush1.msra.mxu0 0.0
      %1779 = vmatprep.subr.mxu0 0.0
      %1780 = vmatpush1.msra.mxu0 0.0
      %1781 = vmatprep.subr.mxu0 0.0
      %1782 = vmatpush1.msra.mxu0 0.0
      %1783 = vmatprep.subr.mxu0 0.0
      %1784 = vmatpush1.msra.mxu0 0.0
      %1785 = vmatprep.subr.mxu0 0.0
      %1786 = vmatpush1.msra.mxu0 0.0
      %1787 = vmatprep.subr.mxu0 0.0
      %1788 = vmatpush1.msra.mxu0 0.0
      %1789 = vmatprep.subr.mxu0 0.0
      %1790 = vmatpush1.msra.mxu0 0.0
      %1791 = vmatprep.subr.mxu0 0.0
      %1792 = vmatpush1.msra.mxu0 0.0
      %1793 = vmatprep.subr.mxu0 0.0
      %1794 = vmatpush1.msra.mxu0 0.0
      %1795 = vmatprep.subr.mxu0 0.0
      %1796 = vmatpush1.msra.mxu0 0.0
      %1797 = vmatprep.subr.mxu0 0.0
      %1798 = vmatpush1.msra.mxu0 0.0
      %1799 = vmatprep.subr.mxu0 0.0
      %1800 = vmatpush1.msra.mxu0 0.0
      %1801 = vmatprep.subr.mxu0 0.0
      %1802 = vmatpush1.msra.mxu0 0.0
      %1803 = vmatprep.subr.mxu0 0.0
      %1804 = vmatpush1.msra.mxu0 0.0
      %1805 = vmatprep.subr.mxu0 0.0
      %1806 = vmatpush1.msra.mxu0 0.0
      %1807 = vmatprep.subr.mxu0 0.0
      %1808 = vmatpush1.msra.mxu0 0.0
      %1809 = vmatprep.subr.mxu0 0.0
      %1810 = vmatpush1.msra.mxu0 0.0
      %1811 = vmatprep.subr.mxu0 0.0
      %1812 = vmatpush1.msra.mxu0 0.0
      %1813 = vmatprep.subr.mxu0 0.0
      %1814 = vmatpush1.msra.mxu0 0.0
      %1815 = vmatprep.subr.mxu0 0.0
      %1816 = vmatpush1.msra.mxu0 0.0
      %1817 = vmatprep.subr.mxu0 0.0
      %1818 = vmatpush1.msra.mxu0 0.0
      %1819 = vmatprep.subr.mxu0 0.0
      %1820 = vmatpush1.msra.mxu0 0.0
      %1821 = vmatprep.subr.mxu0 0.0
      %1822 = vmatpush1.msra.mxu0 0.0
      %1823 = vmatprep.subr.mxu0 0.0
      %1824 = vmatpush1.msra.mxu0 0.0
      %1825 = vmatprep.subr.mxu0 0.0
      %1826 = vmatpush1.msra.mxu0 0.0
      %1827 = vmatprep.subr.mxu0 0.0
      %1828 = vmatpush1.msra.mxu0 0.0
      %1829 = vmatprep.subr.mxu0 0.0
      %1830 = vmatpush1.msra.mxu0 0.0
      %1831 = vmatprep.subr.mxu0 0.0
      %1832 = vmatpush1.msra.mxu0 0.0
      %1833 = vmatprep.mubr.f32.mxu0 0.0
      %1834 = vmatmul.mubr.f32.gmra.mrb[0].mxu0 %v1767
      %v1835 = vpop.f32.mrb[0].mxu0
      %v1836 = vadd.f32 %v1764, %v1835
      %v1837 = vpop.f32.mrb[0].mxu0
      %1838 = vdwg.mxu0
      %v1839 = vmul.f32 %v1836, 0.5
      %v1840 = vmul.f32 %v1836, 0.044715
      %v1841 = vmul.f32 %v1840, %v1836
      %v1842 = vmul.f32 %v1841, %v1836
      %v1843 = vadd.f32 %v1836, %v1842
      %v1844 = vmul.f32 %v1843, 0.7978846
      %v1845 = vtanh.pop %v1844
      %v1846 = vadd.f32 %v1845, 1.0
      %v1847 = vmul.f32 %v1839, %v1846
      %v1848 = vld [vmem:[%s11] sm:$0xff]
      %v1849 = vld [vmem:[%s11 + $0x8] sm:$0xff]
      %v1850 = vld [vmem:[%s11 + $0x10] sm:$0xff]
      %v1851 = vld [vmem:[%s11 + $0x18] sm:$0xff]
      %v1852 = vld [vmem:[%s11 + $0x20] sm:$0xff]
      %v1853 = vld [vmem:[%s11 + $0x28] sm:$0xff]
      %v1854 = vld [vmem:[%s11 + $0x30] sm:$0xff]
      %v1855 = vld [vmem:[%s11 + $0x38] sm:$0xff]
      %v1856 = vld [vmem:[%s12] sm:$0x1]
      %v1858 = vlaneseq
      %v1859 = vshrl.u32 %v1858, 7
      %v1860 = vsub.s32 0, %v1859
      %v1861 = vrot.slane %v1856, %v1860
      %vm1863 = vcmask 523264
      %v1865 = vsel %vm1863, %v1847, 0
      %1867 = vmatprep.subr.mxu0 0.0
      %1868 = vmatpush1.msra.mxu0 %v1848
      %1869 = vmatprep.subr.mxu0 0.0
      %1870 = vmatpush1.msra.mxu0 %v1849
      %1871 = vmatprep.subr.mxu0 0.0
      %1872 = vmatpush1.msra.mxu0 %v1850
      %1873 = vmatprep.subr.mxu0 0.0
      %1874 = vmatpush1.msra.mxu0 %v1851
      %1875 = vmatprep.subr.mxu0 0.0
      %1876 = vmatpush1.msra.mxu0 %v1852
      %1877 = vmatprep.subr.mxu0 0.0
      %1878 = vmatpush1.msra.mxu0 %v1853
      %1879 = vmatprep.subr.mxu0 0.0
      %1880 = vmatpush1.msra.mxu0 %v1854
      %1881 = vmatprep.subr.mxu0 0.0
      %1882 = vmatpush1.msra.mxu0 %v1855
      %1883 = vmatprep.subr.mxu0 0.0
      %1884 = vmatpush1.msra.mxu0 0.0
      %1885 = vmatprep.subr.mxu0 0.0
      %1886 = vmatpush1.msra.mxu0 0.0
      %1887 = vmatprep.subr.mxu0 0.0
      %1888 = vmatpush1.msra.mxu0 0.0
      %1889 = vmatprep.subr.mxu0 0.0
      %1890 = vmatpush1.msra.mxu0 0.0
      %1891 = vmatprep.subr.mxu0 0.0
      %1892 = vmatpush1.msra.mxu0 0.0
      %1893 = vmatprep.subr.mxu0 0.0
      %1894 = vmatpush1.msra.mxu0 0.0
      %1895 = vmatprep.subr.mxu0 0.0
      %1896 = vmatpush1.msra.mxu0 0.0
      %1897 = vmatprep.subr.mxu0 0.0
      %1898 = vmatpush1.msra.mxu0 0.0
      %1899 = vmatprep.subr.mxu0 0.0
      %1900 = vmatpush1.msra.mxu0 0.0
      %1901 = vmatprep.subr.mxu0 0.0
      %1902 = vmatpush1.msra.mxu0 0.0
      %1903 = vmatprep.subr.mxu0 0.0
      %1904 = vmatpush1.msra.mxu0 0.0
      %1905 = vmatprep.subr.mxu0 0.0
      %1906 = vmatpush1.msra.mxu0 0.0
      %1907 = vmatprep.subr.mxu0 0.0
      %1908 = vmatpush1.msra.mxu0 0.0
      %1909 = vmatprep.subr.mxu0 0.0
      %1910 = vmatpush1.msra.mxu0 0.0
      %1911 = vmatprep.subr.mxu0 0.0
      %1912 = vmatpush1.msra.mxu0 0.0
      %1913 = vmatprep.subr.mxu0 0.0
      %1914 = vmatpush1.msra.mxu0 0.0
      %1915 = vmatprep.subr.mxu0 0.0
      %1916 = vmatpush1.msra.mxu0 0.0
      %1917 = vmatprep.subr.mxu0 0.0
      %1918 = vmatpush1.msra.mxu0 0.0
      %1919 = vmatprep.subr.mxu0 0.0
      %1920 = vmatpush1.msra.mxu0 0.0
      %1921 = vmatprep.subr.mxu0 0.0
      %1922 = vmatpush1.msra.mxu0 0.0
      %1923 = vmatprep.subr.mxu0 0.0
      %1924 = vmatpush1.msra.mxu0 0.0
      %1925 = vmatprep.subr.mxu0 0.0
      %1926 = vmatpush1.msra.mxu0 0.0
      %1927 = vmatprep.subr.mxu0 0.0
      %1928 = vmatpush1.msra.mxu0 0.0
      %1929 = vmatprep.subr.mxu0 0.0
      %1930 = vmatpush1.msra.mxu0 0.0
      %1931 = vmatprep.mubr.f32.mxu0 0.0
      %1932 = vmatmul.mubr.f32.gmra.mrb[0].mxu0 %v1865
      %v1933 = vpop.f32.mrb[0].mxu0
      %v1934 = vadd.f32 %v1861, %v1933
      %v1935 = vpop.f32.mrb[0].mxu0
      %1936 = vdwg.mxu0
      %v1937 = vadd.f32 %v1754, %v1934
      %v1938 = vld [vmem:[%s13] sm:$0x3]
      %v1939 = vsel %vm641, %v1937, 0.0
      %1940 = vadd.xlane.f32.xlu0 %v1939
      %v1941 = vpop.xlane.xlu0 %1940
      %v1942 = vmul.f32 %v1941, %v645
      %v1943 = vsub.f32 %v1937, %v1942
      %v1944 = vmul.f32 %v1943, %v1943
      %v1945 = vsel %vm641, %v1944, 0.0
      %1946 = vadd.xlane.f32.xlu0 %v1945
      %v1947 = vpop.xlane.xlu0 %1946
      %v1948 = vmul.f32 %v1947, %v645
      %v1949 = vadd.f32 %v1948, 1e-12
      %v1950 = vrsqrt.pop %v1949
      %v1951 = vmul.f32 %v1943, %v1950
      %v1952 = vlaneseq
      %v1953 = vshrl.u32 %v1952, 7
      %v1954 = vsub.s32 0, %v1953
      %v1955 = vrot.slane %v1938, %v1954
      %v1956 = vmul.f32 %v1951, %v1955
      %v1957 = vlaneseq
      %v1958 = vshrl.u32 %v1957, 7
      %v1959 = vsub.s32 1, %v1958
      %v1960 = vrot.slane %v1938, %v1959
      %v1961 = vadd.f32 %v1956, %v1960
      %s1962 = scalar_lea.vmem %s4, 32
      %v1963 = vld [vmem:[%s1962] sm:$0xff]
      %v1964 = vld [vmem:[%s1962 + $0x8] sm:$0xff]
      %v1965 = vld [vmem:[%s1962 + $0x10] sm:$0xff]
      %v1966 = vld [vmem:[%s1962 + $0x18] sm:$0xff]
      %s1967 = scalar_lea.vmem %s5, 1
      %v1968 = vld [vmem:[%s1967] sm:$0x1]
      %v1970 = vlaneseq
      %v1971 = vshrl.u32 %v1970, 7
      %v1972 = vsub.s32 0, %v1971
      %v1973 = vrot.slane %v1968, %v1972
      %v1976 = vsel %vm641, %v1961, 0
      %1978 = vmatprep.subr.mxu0 0.0
      %1979 = vmatpush1.msra.mxu0 %v1963
      %1980 = vmatprep.subr.mxu0 0.0
      %1981 = vmatpush1.msra.mxu0 %v1964
      %1982 = vmatprep.subr.mxu0 0.0
      %1983 = vmatpush1.msra.mxu0 %v1965
      %1984 = vmatprep.subr.mxu0 0.0
      %1985 = vmatpush1.msra.mxu0 %v1966
      %1986 = vmatprep.subr.mxu0 0.0
      %1987 = vmatpush1.msra.mxu0 0.0
      %1988 = vmatprep.subr.mxu0 0.0
      %1989 = vmatpush1.msra.mxu0 0.0
      %1990 = vmatprep.subr.mxu0 0.0
      %1991 = vmatpush1.msra.mxu0 0.0
      %1992 = vmatprep.subr.mxu0 0.0
      %1993 = vmatpush1.msra.mxu0 0.0
      %1994 = vmatprep.subr.mxu0 0.0
      %1995 = vmatpush1.msra.mxu0 0.0
      %1996 = vmatprep.subr.mxu0 0.0
      %1997 = vmatpush1.msra.mxu0 0.0
      %1998 = vmatprep.subr.mxu0 0.0
      %1999 = vmatpush1.msra.mxu0 0.0
      %2000 = vmatprep.subr.mxu0 0.0
      %2001 = vmatpush1.msra.mxu0 0.0
      %2002 = vmatprep.subr.mxu0 0.0
      %2003 = vmatpush1.msra.mxu0 0.0
      %2004 = vmatprep.subr.mxu0 0.0
      %2005 = vmatpush1.msra.mxu0 0.0
      %2006 = vmatprep.subr.mxu0 0.0
      %2007 = vmatpush1.msra.mxu0 0.0
      %2008 = vmatprep.subr.mxu0 0.0
      %2009 = vmatpush1.msra.mxu0 0.0
      %2010 = vmatprep.subr.mxu0 0.0
      %2011 = vmatpush1.msra.mxu0 0.0
      %2012 = vmatprep.subr.mxu0 0.0
      %2013 = vmatpush1.msra.mxu0 0.0
      %2014 = vmatprep.subr.mxu0 0.0
      %2015 = vmatpush1.msra.mxu0 0.0
      %2016 = vmatprep.subr.mxu0 0.0
      %2017 = vmatpush1.msra.mxu0 0.0
      %2018 = vmatprep.subr.mxu0 0.0
      %2019 = vmatpush1.msra.mxu0 0.0
      %2020 = vmatprep.subr.mxu0 0.0
      %2021 = vmatpush1.msra.mxu0 0.0
      %2022 = vmatprep.subr.mxu0 0.0
      %2023 = vmatpush1.msra.mxu0 0.0
      %2024 = vmatprep.subr.mxu0 0.0
      %2025 = vmatpush1.msra.mxu0 0.0
      %2026 = vmatprep.subr.mxu0 0.0
      %2027 = vmatpush1.msra.mxu0 0.0
      %2028 = vmatprep.subr.mxu0 0.0
      %2029 = vmatpush1.msra.mxu0 0.0
      %2030 = vmatprep.subr.mxu0 0.0
      %2031 = vmatpush1.msra.mxu0 0.0
      %2032 = vmatprep.subr.mxu0 0.0
      %2033 = vmatpush1.msra.mxu0 0.0
      %2034 = vmatprep.subr.mxu0 0.0
      %2035 = vmatpush1.msra.mxu0 0.0
      %2036 = vmatprep.subr.mxu0 0.0
      %2037 = vmatpush1.msra.mxu0 0.0
      %2038 = vmatprep.subr.mxu0 0.0
      %2039 = vmatpush1.msra.mxu0 0.0
      %2040 = vmatprep.subr.mxu0 0.0
      %2041 = vmatpush1.msra.mxu0 0.0
      %2042 = vmatprep.mubr.f32.mxu0 0.0
      %2043 = vmatmul.mubr.f32.gmra.mrb[0].mxu0 %v1976
      %v2044 = vpop.f32.mrb[0].mxu0
      %v2045 = vadd.f32 %v1973, %v2044
      %v2046 = vpop.f32.mrb[0].mxu0
      %2047 = vdwg.mxu0
      %s2048 = scalar_lea.vmem %s6, 32
      %v2049 = vld [vmem:[%s2048] sm:$0xff]
      %v2050 = vld [vmem:[%s2048 + $0x8] sm:$0xff]
      %v2051 = vld [vmem:[%s2048 + $0x10] sm:$0xff]
      %v2052 = vld [vmem:[%s2048 + $0x18] sm:$0xff]
      %2054 = vrot.lane.b32.xlu0 %v2045, 96
      %v2055 = vpop.permute.xlu0 %2054
      %v2056 = vsel %vm757, %v2045, 0
      %v2058 = vsel %vm757, %v2055, 0
      %2060 = vmatprep.subr.mxu0 0.0
      %2061 = vmatpush1.xpose.msra.mxu0 %v2058
      %2062 = vmatprep.subr.mxu0 0.0
      %2063 = vmatpush1.xpose.msra.mxu0 0.0
      %2064 = vmatprep.subr.mxu0 0.0
      %2065 = vmatpush1.xpose.msra.mxu0 0.0
      %2066 = vmatprep.subr.mxu0 0.0
      %2067 = vmatpush1.xpose.msra.mxu0 0.0
      %2068 = vmatprep.subr.mxu0 0.0
      %2069 = vmatpush1.xpose.msra.mxu0 0.0
      %2070 = vmatprep.subr.mxu0 0.0
      %2071 = vmatpush1.xpose.msra.mxu0 0.0
      %2072 = vmatprep.subr.mxu0 0.0
      %2073 = vmatpush1.xpose.msra.mxu0 0.0
      %2074 = vmatprep.subr.mxu0 0.0
      %2075 = vmatpush1.xpose.msra.mxu0 0.0
      %2076 = vmatprep.subr.mxu0 0.0
      %2077 = vmatpush1.xpose.msra.mxu0 0.0
      %2078 = vmatprep.subr.mxu0 0.0
      %2079 = vmatpush1.xpose.msra.mxu0 0.0
      %2080 = vmatprep.subr.mxu0 0.0
      %2081 = vmatpush1.xpose.msra.mxu0 0.0
      %2082 = vmatprep.subr.mxu0 0.0
      %2083 = vmatpush1.xpose.msra.mxu0 0.0
      %2084 = vmatprep.subr.mxu0 0.0
      %2085 = vmatpush1.xpose.msra.mxu0 0.0
      %2086 = vmatprep.subr.mxu0 0.0
      %2087 = vmatpush1.xpose.msra.mxu0 0.0
      %2088 = vmatprep.subr.mxu0 0.0
      %2089 = vmatpush1.xpose.msra.mxu0 0.0
      %2090 = vmatprep.subr.mxu0 0.0
      %2091 = vmatpush1.xpose.msra.mxu0 0.0
      %2092 = vmatprep.subr.mxu0 0.0
      %2093 = vmatpush1.xpose.msra.mxu0 0.0
      %2094 = vmatprep.subr.mxu0 0.0
      %2095 = vmatpush1.xpose.msra.mxu0 0.0
      %2096 = vmatprep.subr.mxu0 0.0
      %2097 = vmatpush1.xpose.msra.mxu0 0.0
      %2098 = vmatprep.subr.mxu0 0.0
      %2099 = vmatpush1.xpose.msra.mxu0 0.0
      %2100 = vmatprep.subr.mxu0 0.0
      %2101 = vmatpush1.xpose.msra.mxu0 0.0
      %2102 = vmatprep.subr.mxu0 0.0
      %2103 = vmatpush1.xpose.msra.mxu0 0.0
      %2104 = vmatprep.subr.mxu0 0.0
      %2105 = vmatpush1.xpose.msra.mxu0 0.0
      %2106 = vmatprep.subr.mxu0 0.0
      %2107 = vmatpush1.xpose.msra.mxu0 0.0
      %2108 = vmatprep.subr.mxu0 0.0
      %2109 = vmatpush1.xpose.msra.mxu0 0.0
      %2110 = vmatprep.subr.mxu0 0.0
      %2111 = vmatpush1.xpose.msra.mxu0 0.0
      %2112 = vmatprep.subr.mxu0 0.0
      %2113 = vmatpush1.xpose.msra.mxu0 0.0
      %2114 = vmatprep.subr.mxu0 0.0
      %2115 = vmatpush1.xpose.msra.mxu0 0.0
      %2116 = vmatprep.subr.mxu0 0.0
      %2117 = vmatpush1.xpose.msra.mxu0 0.0
      %2118 = vmatprep.subr.mxu0 0.0
      %2119 = vmatpush1.xpose.msra.mxu0 0.0
      %2120 = vmatprep.subr.mxu0 0.0
      %2121 = vmatpush1.xpose.msra.mxu0 0.0
      %2122 = vmatprep.subr.mxu0 0.0
      %2123 = vmatpush1.xpose.msra.mxu0 0.0
      %2124 = vmatprep.mubr.f32.mxu0 0.0
      %2125 = vmatmul.mubr.f32.gmra.mrb[0].mxu0 %v2056
      %v2126 = vpop.f32.mrb[0].mxu0
      %v2127 = vadd.f32 0.0, %v2126
      %v2128 = vpop.f32.mrb[0].mxu0
      %2129 = vdwg.mxu0
      %v2130 = vmul.f32 %v2127, 0.35355338
      %v2131 = vadd.f32 %v2130, %v837
      %v2132 = vsel %vm757, %v2131, -inf
      %2133 = vmax.xlane.f32.xlu0 %v2132
      %v2134 = vpop.xlane.xlu0 %2133
      %v2135 = vsub.f32 %v2131, %v2134
      %v2136 = vmul.f32 %v2135, 1.442695
      %v2137 = vpow.pop %v2136
      %v2138 = vsel %vm757, %v2137, 0.0
      %2139 = vadd.xlane.f32.xlu0 %v2138
      %v2140 = vpop.xlane.xlu0 %2139
      %v2141 = vrcp.pop %v2140
      %v2142 = vmul.f32 %v2137, %v2141
      %2143 = vrot.lane.b32.xlu0 %v2045, 64
      %v2144 = vpop.permute.xlu0 %2143
      %v2147 = vsel %vm757, %v2142, 0
      %2149 = vmatprep.subr.mxu0 0.0
      %2150 = vmatpush1.msra.mxu0 %v2144
      %2151 = vmatprep.subr.mxu0 0.0
      %2152 = vmatpush1.msra.mxu0 0.0
      %2153 = vmatprep.subr.mxu0 0.0
      %2154 = vmatpush1.msra.mxu0 0.0
      %2155 = vmatprep.subr.mxu0 0.0
      %2156 = vmatpush1.msra.mxu0 0.0
      %2157 = vmatprep.subr.mxu0 0.0
      %2158 = vmatpush1.msra.mxu0 0.0
      %2159 = vmatprep.subr.mxu0 0.0
      %2160 = vmatpush1.msra.mxu0 0.0
      %2161 = vmatprep.subr.mxu0 0.0
      %2162 = vmatpush1.msra.mxu0 0.0
      %2163 = vmatprep.subr.mxu0 0.0
      %2164 = vmatpush1.msra.mxu0 0.0
      %2165 = vmatprep.subr.mxu0 0.0
      %2166 = vmatpush1.msra.mxu0 0.0
      %2167 = vmatprep.subr.mxu0 0.0
      %2168 = vmatpush1.msra.mxu0 0.0
      %2169 = vmatprep.subr.mxu0 0.0
      %2170 = vmatpush1.msra.mxu0 0.0
      %2171 = vmatprep.subr.mxu0 0.0
      %2172 = vmatpush1.msra.mxu0 0.0
      %2173 = vmatprep.subr.mxu0 0.0
      %2174 = vmatpush1.msra.mxu0 0.0
      %2175 = vmatprep.subr.mxu0 0.0
      %2176 = vmatpush1.msra.mxu0 0.0
      %2177 = vmatprep.subr.mxu0 0.0
      %2178 = vmatpush1.msra.mxu0 0.0
      %2179 = vmatprep.subr.mxu0 0.0
      %2180 = vmatpush1.msra.mxu0 0.0
      %2181 = vmatprep.subr.mxu0 0.0
      %2182 = vmatpush1.msra.mxu0 0.0
      %2183 = vmatprep.subr.mxu0 0.0
      %2184 = vmatpush1.msra.mxu0 0.0
      %2185 = vmatprep.subr.mxu0 0.0
      %2186 = vmatpush1.msra.mxu0 0.0
      %2187 = vmatprep.subr.mxu0 0.0
      %2188 = vmatpush1.msra.mxu0 0.0
      %2189 = vmatprep.subr.mxu0 0.0
      %2190 = vmatpush1.msra.mxu0 0.0
      %2191 = vmatprep.subr.mxu0 0.0
      %2192 = vmatpush1.msra.mxu0 0.0
      %2193 = vmatprep.subr.mxu0 0.0
      %2194 = vmatpush1.msra.mxu0 0.0
      %2195 = vmatprep.subr.mxu0 0.0
      %2196 = vmatpush1.msra.mxu0 0.0
      %2197 = vmatprep.subr.mxu0 0.0
      %2198 = vmatpush1.msra.mxu0 0.0
      %2199 = vmatprep.subr.mxu0 0.0
      %2200 = vmatpush1.msra.mxu0 0.0
      %2201 = vmatprep.subr.mxu0 0.0
      %2202 = vmatpush1.msra.mxu0 0.0
      %2203 = vmatprep.subr.mxu0 0.0
      %2204 = vmatpush1.msra.mxu0 0.0
      %2205 = vmatprep.subr.mxu0 0.0
      %2206 = vmatpush1.msra.mxu0 0.0
      %2207 = vmatprep.subr.mxu0 0.0
      %2208 = vmatpush1.msra.mxu0 0.0
      %2209 = vmatprep.subr.mxu0 0.0
      %2210 = vmatpush1.msra.mxu0 0.0
      %2211 = vmatprep.subr.mxu0 0.0
      %2212 = vmatpush1.msra.mxu0 0.0
      %2213 = vmatprep.mubr.f32.mxu0 0.0
      %2214 = vmatmul.mubr.f32.gmra.mrb[0].mxu0 %v2147
      %v2215 = vpop.f32.mrb[0].mxu0
      %v2216 = vadd.f32 0.0, %v2215
      %v2217 = vpop.f32.mrb[0].mxu0
      %2218 = vdwg.mxu0
      %2219 = vrot.lane.b32.xlu0 %v2045, 120
      %v2220 = vpop.permute.xlu0 %2219
      %2221 = vrot.lane.b32.xlu0 %v2045, 88
      %v2222 = vpop.permute.xlu0 %2221
      %v2223 = vsel %vm757, %v2220, 0
      %v2225 = vsel %vm757, %v2222, 0
      %2227 = vmatprep.subr.mxu0 0.0
      %2228 = vmatpush1.xpose.msra.mxu0 %v2225
      %2229 = vmatprep.subr.mxu0 0.0
      %2230 = vmatpush1.xpose.msra.mxu0 0.0
      %2231 = vmatprep.subr.mxu0 0.0
      %2232 = vmatpush1.xpose.msra.mxu0 0.0
      %2233 = vmatprep.subr.mxu0 0.0
      %2234 = vmatpush1.xpose.msra.mxu0 0.0
      %2235 = vmatprep.subr.mxu0 0.0
      %2236 = vmatpush1.xpose.msra.mxu0 0.0
      %2237 = vmatprep.subr.mxu0 0.0
      %2238 = vmatpush1.xpose.msra.mxu0 0.0
      %2239 = vmatprep.subr.mxu0 0.0
      %2240 = vmatpush1.xpose.msra.mxu0 0.0
      %2241 = vmatprep.subr.mxu0 0.0
      %2242 = vmatpush1.xpose.msra.mxu0 0.0
      %2243 = vmatprep.subr.mxu0 0.0
      %2244 = vmatpush1.xpose.msra.mxu0 0.0
      %2245 = vmatprep.subr.mxu0 0.0
      %2246 = vmatpush1.xpose.msra.mxu0 0.0
      %2247 = vmatprep.subr.mxu0 0.0
      %2248 = vmatpush1.xpose.msra.mxu0 0.0
      %2249 = vmatprep.subr.mxu0 0.0
      %2250 = vmatpush1.xpose.msra.mxu0 0.0
      %2251 = vmatprep.subr.mxu0 0.0
      %2252 = vmatpush1.xpose.msra.mxu0 0.0
      %2253 = vmatprep.subr.mxu0 0.0
      %2254 = vmatpush1.xpose.msra.mxu0 0.0
      %2255 = vmatprep.subr.mxu0 0.0
      %2256 = vmatpush1.xpose.msra.mxu0 0.0
      %2257 = vmatprep.subr.mxu0 0.0
      %2258 = vmatpush1.xpose.msra.mxu0 0.0
      %2259 = vmatprep.subr.mxu0 0.0
      %2260 = vmatpush1.xpose.msra.mxu0 0.0
      %2261 = vmatprep.subr.mxu0 0.0
      %2262 = vmatpush1.xpose.msra.mxu0 0.0
      %2263 = vmatprep.subr.mxu0 0.0
      %2264 = vmatpush1.xpose.msra.mxu0 0.0
      %2265 = vmatprep.subr.mxu0 0.0
      %2266 = vmatpush1.xpose.msra.mxu0 0.0
      %2267 = vmatprep.subr.mxu0 0.0
      %2268 = vmatpush1.xpose.msra.mxu0 0.0
      %2269 = vmatprep.subr.mxu0 0.0
      %2270 = vmatpush1.xpose.msra.mxu0 0.0
      %2271 = vmatprep.subr.mxu0 0.0
      %2272 = vmatpush1.xpose.msra.mxu0 0.0
      %2273 = vmatprep.subr.mxu0 0.0
      %2274 = vmatpush1.xpose.msra.mxu0 0.0
      %2275 = vmatprep.subr.mxu0 0.0
      %2276 = vmatpush1.xpose.msra.mxu0 0.0
      %2277 = vmatprep.subr.mxu0 0.0
      %2278 = vmatpush1.xpose.msra.mxu0 0.0
      %2279 = vmatprep.subr.mxu0 0.0
      %2280 = vmatpush1.xpose.msra.mxu0 0.0
      %2281 = vmatprep.subr.mxu0 0.0
      %2282 = vmatpush1.xpose.msra.mxu0 0.0
      %2283 = vmatprep.subr.mxu0 0.0
      %2284 = vmatpush1.xpose.msra.mxu0 0.0
      %2285 = vmatprep.subr.mxu0 0.0
      %2286 = vmatpush1.xpose.msra.mxu0 0.0
      %2287 = vmatprep.subr.mxu0 0.0
      %2288 = vmatpush1.xpose.msra.mxu0 0.0
      %2289 = vmatprep.subr.mxu0 0.0
      %2290 = vmatpush1.xpose.msra.mxu0 0.0
      %2291 = vmatprep.mubr.f32.mxu0 0.0
      %2292 = vmatmul.mubr.f32.gmra.mrb[0].mxu0 %v2223
      %v2293 = vpop.f32.mrb[0].mxu0
      %v2294 = vadd.f32 0.0, %v2293
      %v2295 = vpop.f32.mrb[0].mxu0
      %2296 = vdwg.mxu0
      %v2297 = vmul.f32 %v2294, 0.35355338
      %v2298 = vadd.f32 %v2297, %v837
      %v2299 = vsel %vm757, %v2298, -inf
      %2300 = vmax.xlane.f32.xlu0 %v2299
      %v2301 = vpop.xlane.xlu0 %2300
      %v2302 = vsub.f32 %v2298, %v2301
      %v2303 = vmul.f32 %v2302, 1.442695
      %v2304 = vpow.pop %v2303
      %v2305 = vsel %vm757, %v2304, 0.0
      %2306 = vadd.xlane.f32.xlu0 %v2305
      %v2307 = vpop.xlane.xlu0 %2306
      %v2308 = vrcp.pop %v2307
      %v2309 = vmul.f32 %v2304, %v2308
      %2310 = vrot.lane.b32.xlu0 %v2045, 56
      %v2311 = vpop.permute.xlu0 %2310
      %v2314 = vsel %vm757, %v2309, 0
      %2316 = vmatprep.subr.mxu0 0.0
      %2317 = vmatpush1.msra.mxu0 %v2311
      %2318 = vmatprep.subr.mxu0 0.0
      %2319 = vmatpush1.msra.mxu0 0.0
      %2320 = vmatprep.subr.mxu0 0.0
      %2321 = vmatpush1.msra.mxu0 0.0
      %2322 = vmatprep.subr.mxu0 0.0
      %2323 = vmatpush1.msra.mxu0 0.0
      %2324 = vmatprep.subr.mxu0 0.0
      %2325 = vmatpush1.msra.mxu0 0.0
      %2326 = vmatprep.subr.mxu0 0.0
      %2327 = vmatpush1.msra.mxu0 0.0
      %2328 = vmatprep.subr.mxu0 0.0
      %2329 = vmatpush1.msra.mxu0 0.0
      %2330 = vmatprep.subr.mxu0 0.0
      %2331 = vmatpush1.msra.mxu0 0.0
      %2332 = vmatprep.subr.mxu0 0.0
      %2333 = vmatpush1.msra.mxu0 0.0
      %2334 = vmatprep.subr.mxu0 0.0
      %2335 = vmatpush1.msra.mxu0 0.0
      %2336 = vmatprep.subr.mxu0 0.0
      %2337 = vmatpush1.msra.mxu0 0.0
      %2338 = vmatprep.subr.mxu0 0.0
      %2339 = vmatpush1.msra.mxu0 0.0
      %2340 = vmatprep.subr.mxu0 0.0
      %2341 = vmatpush1.msra.mxu0 0.0
      %2342 = vmatprep.subr.mxu0 0.0
      %2343 = vmatpush1.msra.mxu0 0.0
      %2344 = vmatprep.subr.mxu0 0.0
      %2345 = vmatpush1.msra.mxu0 0.0
      %2346 = vmatprep.subr.mxu0 0.0
      %2347 = vmatpush1.msra.mxu0 0.0
      %2348 = vmatprep.subr.mxu0 0.0
      %2349 = vmatpush1.msra.mxu0 0.0
      %2350 = vmatprep.subr.mxu0 0.0
      %2351 = vmatpush1.msra.mxu0 0.0
      %2352 = vmatprep.subr.mxu0 0.0
      %2353 = vmatpush1.msra.mxu0 0.0
      %2354 = vmatprep.subr.mxu0 0.0
      %2355 = vmatpush1.msra.mxu0 0.0
      %2356 = vmatprep.subr.mxu0 0.0
      %2357 = vmatpush1.msra.mxu0 0.0
      %2358 = vmatprep.subr.mxu0 0.0
      %2359 = vmatpush1.msra.mxu0 0.0
      %2360 = vmatprep.subr.mxu0 0.0
      %2361 = vmatpush1.msra.mxu0 0.0
      %2362 = vmatprep.subr.mxu0 0.0
      %2363 = vmatpush1.msra.mxu0 0.0
      %2364 = vmatprep.subr.mxu0 0.0
      %2365 = vmatpush1.msra.mxu0 0.0
      %2366 = vmatprep.subr.mxu0 0.0
      %2367 = vmatpush1.msra.mxu0 0.0
      %2368 = vmatprep.subr.mxu0 0.0
      %2369 = vmatpush1.msra.mxu0 0.0
      %2370 = vmatprep.subr.mxu0 0.0
      %2371 = vmatpush1.msra.mxu0 0.0
      %2372 = vmatprep.subr.mxu0 0.0
      %2373 = vmatpush1.msra.mxu0 0.0
      %2374 = vmatprep.subr.mxu0 0.0
      %2375 = vmatpush1.msra.mxu0 0.0
      %2376 = vmatprep.subr.mxu0 0.0
      %2377 = vmatpush1.msra.mxu0 0.0
      %2378 = vmatprep.subr.mxu0 0.0
      %2379 = vmatpush1.msra.mxu0 0.0
      %2380 = vmatprep.mubr.f32.mxu0 0.0
      %2381 = vmatmul.mubr.f32.gmra.mrb[0].mxu0 %v2314
      %v2382 = vpop.f32.mrb[0].mxu0
      %v2383 = vadd.f32 0.0, %v2382
      %v2384 = vpop.f32.mrb[0].mxu0
      %2385 = vdwg.mxu0
      %v2387 = vsel %vm757, %v2383, 0
      %2389 = vmatprep.subr.mxu0 0.0
      %2390 = vmatpush1.msra.mxu0 %v2050
      %2391 = vmatprep.subr.mxu0 0.0
      %2392 = vmatpush1.msra.mxu0 0.0
      %2393 = vmatprep.subr.mxu0 0.0
      %2394 = vmatpush1.msra.mxu0 0.0
      %2395 = vmatprep.subr.mxu0 0.0
      %2396 = vmatpush1.msra.mxu0 0.0
      %2397 = vmatprep.subr.mxu0 0.0
      %2398 = vmatpush1.msra.mxu0 0.0
      %2399 = vmatprep.subr.mxu0 0.0
      %2400 = vmatpush1.msra.mxu0 0.0
      %2401 = vmatprep.subr.mxu0 0.0
      %2402 = vmatpush1.msra.mxu0 0.0
      %2403 = vmatprep.subr.mxu0 0.0
      %2404 = vmatpush1.msra.mxu0 0.0
      %2405 = vmatprep.subr.mxu0 0.0
      %2406 = vmatpush1.msra.mxu0 0.0
      %2407 = vmatprep.subr.mxu0 0.0
      %2408 = vmatpush1.msra.mxu0 0.0
      %2409 = vmatprep.subr.mxu0 0.0
      %2410 = vmatpush1.msra.mxu0 0.0
      %2411 = vmatprep.subr.mxu0 0.0
      %2412 = vmatpush1.msra.mxu0 0.0
      %2413 = vmatprep.subr.mxu0 0.0
      %2414 = vmatpush1.msra.mxu0 0.0
      %2415 = vmatprep.subr.mxu0 0.0
      %2416 = vmatpush1.msra.mxu0 0.0
      %2417 = vmatprep.subr.mxu0 0.0
      %2418 = vmatpush1.msra.mxu0 0.0
      %2419 = vmatprep.subr.mxu0 0.0
      %2420 = vmatpush1.msra.mxu0 0.0
      %2421 = vmatprep.subr.mxu0 0.0
      %2422 = vmatpush1.msra.mxu0 0.0
      %2423 = vmatprep.subr.mxu0 0.0
      %2424 = vmatpush1.msra.mxu0 0.0
      %2425 = vmatprep.subr.mxu0 0.0
      %2426 = vmatpush1.msra.mxu0 0.0
      %2427 = vmatprep.subr.mxu0 0.0
      %2428 = vmatpush1.msra.mxu0 0.0
      %2429 = vmatprep.subr.mxu0 0.0
      %2430 = vmatpush1.msra.mxu0 0.0
      %2431 = vmatprep.subr.mxu0 0.0
      %2432 = vmatpush1.msra.mxu0 0.0
      %2433 = vmatprep.subr.mxu0 0.0
      %2434 = vmatpush1.msra.mxu0 0.0
      %2435 = vmatprep.subr.mxu0 0.0
      %2436 = vmatpush1.msra.mxu0 0.0
      %2437 = vmatprep.subr.mxu0 0.0
      %2438 = vmatpush1.msra.mxu0 0.0
      %2439 = vmatprep.subr.mxu0 0.0
      %2440 = vmatpush1.msra.mxu0 0.0
      %2441 = vmatprep.subr.mxu0 0.0
      %2442 = vmatpush1.msra.mxu0 0.0
      %2443 = vmatprep.subr.mxu0 0.0
      %2444 = vmatpush1.msra.mxu0 0.0
      %2445 = vmatprep.subr.mxu0 0.0
      %2446 = vmatpush1.msra.mxu0 0.0
      %2447 = vmatprep.subr.mxu0 0.0
      %2448 = vmatpush1.msra.mxu0 0.0
      %2449 = vmatprep.subr.mxu0 0.0
      %2450 = vmatpush1.msra.mxu0 0.0
      %2451 = vmatprep.subr.mxu0 0.0
      %2452 = vmatpush1.msra.mxu0 0.0
      %2453 = vmatprep.mubr.f32.mxu0 0.0
      %2454 = vmatmul.mubr.f32.gmra.mrb[0].mxu0 %v2387
      %v2455 = vpop.f32.mrb[0].mxu0
      %v2456 = vadd.f32 0.0, %v2455
      %v2457 = vpop.f32.mrb[0].mxu0
      %2458 = vdwg.mxu0
      %v2460 = vsel %vm757, %v2216, 0
      %2462 = vmatprep.subr.mxu0 0.0
      %2463 = vmatpush1.msra.mxu0 %v2049
      %2464 = vmatprep.subr.mxu0 0.0
      %2465 = vmatpush1.msra.mxu0 0.0
      %2466 = vmatprep.subr.mxu0 0.0
      %2467 = vmatpush1.msra.mxu0 0.0
      %2468 = vmatprep.subr.mxu0 0.0
      %2469 = vmatpush1.msra.mxu0 0.0
      %2470 = vmatprep.subr.mxu0 0.0
      %2471 = vmatpush1.msra.mxu0 0.0
      %2472 = vmatprep.subr.mxu0 0.0
      %2473 = vmatpush1.msra.mxu0 0.0
      %2474 = vmatprep.subr.mxu0 0.0
      %2475 = vmatpush1.msra.mxu0 0.0
      %2476 = vmatprep.subr.mxu0 0.0
      %2477 = vmatpush1.msra.mxu0 0.0
      %2478 = vmatprep.subr.mxu0 0.0
      %2479 = vmatpush1.msra.mxu0 0.0
      %2480 = vmatprep.subr.mxu0 0.0
      %2481 = vmatpush1.msra.mxu0 0.0
      %2482 = vmatprep.subr.mxu0 0.0
      %2483 = vmatpush1.msra.mxu0 0.0
      %2484 = vmatprep.subr.mxu0 0.0
      %2485 = vmatpush1.msra.mxu0 0.0
      %2486 = vmatprep.subr.mxu0 0.0
      %2487 = vmatpush1.msra.mxu0 0.0
      %2488 = vmatprep.subr.mxu0 0.0
      %2489 = vmatpush1.msra.mxu0 0.0
      %2490 = vmatprep.subr.mxu0 0.0
      %2491 = vmatpush1.msra.mxu0 0.0
      %2492 = vmatprep.subr.mxu0 0.0
      %2493 = vmatpush1.msra.mxu0 0.0
      %2494 = vmatprep.subr.mxu0 0.0
      %2495 = vmatpush1.msra.mxu0 0.0
      %2496 = vmatprep.subr.mxu0 0.0
      %2497 = vmatpush1.msra.mxu0 0.0
      %2498 = vmatprep.subr.mxu0 0.0
      %2499 = vmatpush1.msra.mxu0 0.0
      %2500 = vmatprep.subr.mxu0 0.0
      %2501 = vmatpush1.msra.mxu0 0.0
      %2502 = vmatprep.subr.mxu0 0.0
      %2503 = vmatpush1.msra.mxu0 0.0
      %2504 = vmatprep.subr.mxu0 0.0
      %2505 = vmatpush1.msra.mxu0 0.0
      %2506 = vmatprep.subr.mxu0 0.0
      %2507 = vmatpush1.msra.mxu0 0.0
      %2508 = vmatprep.subr.mxu0 0.0
      %2509 = vmatpush1.msra.mxu0 0.0
      %2510 = vmatprep.subr.mxu0 0.0
      %2511 = vmatpush1.msra.mxu0 0.0
      %2512 = vmatprep.subr.mxu0 0.0
      %2513 = vmatpush1.msra.mxu0 0.0
      %2514 = vmatprep.subr.mxu0 0.0
      %2515 = vmatpush1.msra.mxu0 0.0
      %2516 = vmatprep.subr.mxu0 0.0
      %2517 = vmatpush1.msra.mxu0 0.0
      %2518 = vmatprep.subr.mxu0 0.0
      %2519 = vmatpush1.msra.mxu0 0.0
      %2520 = vmatprep.subr.mxu0 0.0
      %2521 = vmatpush1.msra.mxu0 0.0
      %2522 = vmatprep.subr.mxu0 0.0
      %2523 = vmatpush1.msra.mxu0 0.0
      %2524 = vmatprep.subr.mxu0 0.0
      %2525 = vmatpush1.msra.mxu0 0.0
      %2526 = vmatprep.mubr.f32.mxu0 0.0
      %2527 = vmatmul.mubr.f32.gmra.mrb[0].mxu0 %v2460
      %v2528 = vpop.f32.mrb[0].mxu0
      %v2529 = vadd.f32 %v2456, %v2528
      %v2530 = vpop.f32.mrb[0].mxu0
      %2531 = vdwg.mxu0
      %2532 = vrot.lane.b32.xlu0 %v2045, 112
      %v2533 = vpop.permute.xlu0 %2532
      %2534 = vrot.lane.b32.xlu0 %v2045, 80
      %v2535 = vpop.permute.xlu0 %2534
      %v2536 = vsel %vm757, %v2533, 0
      %v2538 = vsel %vm757, %v2535, 0
      %2540 = vmatprep.subr.mxu0 0.0
      %2541 = vmatpush1.xpose.msra.mxu0 %v2538
      %2542 = vmatprep.subr.mxu0 0.0
      %2543 = vmatpush1.xpose.msra.mxu0 0.0
      %2544 = vmatprep.subr.mxu0 0.0
      %2545 = vmatpush1.xpose.msra.mxu0 0.0
      %2546 = vmatprep.subr.mxu0 0.0
      %2547 = vmatpush1.xpose.msra.mxu0 0.0
      %2548 = vmatprep.subr.mxu0 0.0
      %2549 = vmatpush1.xpose.msra.mxu0 0.0
      %2550 = vmatprep.subr.mxu0 0.0
      %2551 = vmatpush1.xpose.msra.mxu0 0.0
      %2552 = vmatprep.subr.mxu0 0.0
      %2553 = vmatpush1.xpose.msra.mxu0 0.0
      %2554 = vmatprep.subr.mxu0 0.0
      %2555 = vmatpush1.xpose.msra.mxu0 0.0
      %2556 = vmatprep.subr.mxu0 0.0
      %2557 = vmatpush1.xpose.msra.mxu0 0.0
      %2558 = vmatprep.subr.mxu0 0.0
      %2559 = vmatpush1.xpose.msra.mxu0 0.0
      %2560 = vmatprep.subr.mxu0 0.0
      %2561 = vmatpush1.xpose.msra.mxu0 0.0
      %2562 = vmatprep.subr.mxu0 0.0
      %2563 = vmatpush1.xpose.msra.mxu0 0.0
      %2564 = vmatprep.subr.mxu0 0.0
      %2565 = vmatpush1.xpose.msra.mxu0 0.0
      %2566 = vmatprep.subr.mxu0 0.0
      %2567 = vmatpush1.xpose.msra.mxu0 0.0
      %2568 = vmatprep.subr.mxu0 0.0
      %2569 = vmatpush1.xpose.msra.mxu0 0.0
      %2570 = vmatprep.subr.mxu0 0.0
      %2571 = vmatpush1.xpose.msra.mxu0 0.0
      %2572 = vmatprep.subr.mxu0 0.0
      %2573 = vmatpush1.xpose.msra.mxu0 0.0
      %2574 = vmatprep.subr.mxu0 0.0
      %2575 = vmatpush1.xpose.msra.mxu0 0.0
      %2576 = vmatprep.subr.mxu0 0.0
      %2577 = vmatpush1.xpose.msra.mxu0 0.0
      %2578 = vmatprep.subr.mxu0 0.0
      %2579 = vmatpush1.xpose.msra.mxu0 0.0
      %2580 = vmatprep.subr.mxu0 0.0
      %2581 = vmatpush1.xpose.msra.mxu0 0.0
      %2582 = vmatprep.subr.mxu0 0.0
      %2583 = vmatpush1.xpose.msra.mxu0 0.0
      %2584 = vmatprep.subr.mxu0 0.0
      %2585 = vmatpush1.xpose.msra.mxu0 0.0
      %2586 = vmatprep.subr.mxu0 0.0
      %2587 = vmatpush1.xpose.msra.mxu0 0.0
      %2588 = vmatprep.subr.mxu0 0.0
      %2589 = vmatpush1.xpose.msra.mxu0 0.0
      %2590 = vmatprep.subr.mxu0 0.0
      %2591 = vmatpush1.xpose.msra.mxu0 0.0
      %2592 = vmatprep.subr.mxu0 0.0
      %2593 = vmatpush1.xpose.msra.mxu0 0.0
      %2594 = vmatprep.subr.mxu0 0.0
      %2595 = vmatpush1.xpose.msra.mxu0 0.0
      %2596 = vmatprep.subr.mxu0 0.0
      %2597 = vmatpush1.xpose.msra.mxu0 0.0
      %2598 = vmatprep.subr.mxu0 0.0
      %2599 = vmatpush1.xpose.msra.mxu0 0.0
      %2600 = vmatprep.subr.mxu0 0.0
      %2601 = vmatpush1.xpose.msra.mxu0 0.0
      %2602 = vmatprep.subr.mxu0 0.0
      %2603 = vmatpush1.xpose.msra.mxu0 0.0
      %2604 = vmatprep.mubr.f32.mxu0 0.0
      %2605 = vmatmul.mubr.f32.gmra.mrb[0].mxu0 %v2536
      %v2606 = vpop.f32.mrb[0].mxu0
      %v2607 = vadd.f32 0.0, %v2606
      %v2608 = vpop.f32.mrb[0].mxu0
      %2609 = vdwg.mxu0
      %v2610 = vmul.f32 %v2607, 0.35355338
      %v2611 = vadd.f32 %v2610, %v837
      %v2612 = vsel %vm757, %v2611, -inf
      %2613 = vmax.xlane.f32.xlu0 %v2612
      %v2614 = vpop.xlane.xlu0 %2613
      %v2615 = vsub.f32 %v2611, %v2614
      %v2616 = vmul.f32 %v2615, 1.442695
      %v2617 = vpow.pop %v2616
      %v2618 = vsel %vm757, %v2617, 0.0
      %2619 = vadd.xlane.f32.xlu0 %v2618
      %v2620 = vpop.xlane.xlu0 %2619
      %v2621 = vrcp.pop %v2620
      %v2622 = vmul.f32 %v2617, %v2621
      %2623 = vrot.lane.b32.xlu0 %v2045, 48
      %v2624 = vpop.permute.xlu0 %2623
      %v2627 = vsel %vm757, %v2622, 0
      %2629 = vmatprep.subr.mxu0 0.0
      %2630 = vmatpush1.msra.mxu0 %v2624
      %2631 = vmatprep.subr.mxu0 0.0
      %2632 = vmatpush1.msra.mxu0 0.0
      %2633 = vmatprep.subr.mxu0 0.0
      %2634 = vmatpush1.msra.mxu0 0.0
      %2635 = vmatprep.subr.mxu0 0.0
      %2636 = vmatpush1.msra.mxu0 0.0
      %2637 = vmatprep.subr.mxu0 0.0
      %2638 = vmatpush1.msra.mxu0 0.0
      %2639 = vmatprep.subr.mxu0 0.0
      %2640 = vmatpush1.msra.mxu0 0.0
      %2641 = vmatprep.subr.mxu0 0.0
      %2642 = vmatpush1.msra.mxu0 0.0
      %2643 = vmatprep.subr.mxu0 0.0
      %2644 = vmatpush1.msra.mxu0 0.0
      %2645 = vmatprep.subr.mxu0 0.0
      %2646 = vmatpush1.msra.mxu0 0.0
      %2647 = vmatprep.subr.mxu0 0.0
      %2648 = vmatpush1.msra.mxu0 0.0
      %2649 = vmatprep.subr.mxu0 0.0
      %2650 = vmatpush1.msra.mxu0 0.0
      %2651 = vmatprep.subr.mxu0 0.0
      %2652 = vmatpush1.msra.mxu0 0.0
      %2653 = vmatprep.subr.mxu0 0.0
      %2654 = vmatpush1.msra.mxu0 0.0
      %2655 = vmatprep.subr.mxu0 0.0
      %2656 = vmatpush1.msra.mxu0 0.0
      %2657 = vmatprep.subr.mxu0 0.0
      %2658 = vmatpush1.msra.mxu0 0.0
      %2659 = vmatprep.subr.mxu0 0.0
      %2660 = vmatpush1.msra.mxu0 0.0
      %2661 = vmatprep.subr.mxu0 0.0
      %2662 = vmatpush1.msra.mxu0 0.0
      %2663 = vmatprep.subr.mxu0 0.0
      %2664 = vmatpush1.msra.mxu0 0.0
      %2665 = vmatprep.subr.mxu0 0.0
      %2666 = vmatpush1.msra.mxu0 0.0
      %2667 = vmatprep.subr.mxu0 0.0
      %2668 = vmatpush1.msra.mxu0 0.0
      %2669 = vmatprep.subr.mxu0 0.0
      %2670 = vmatpush1.msra.mxu0 0.0
      %2671 = vmatprep.subr.mxu0 0.0
      %2672 = vmatpush1.msra.mxu0 0.0
      %2673 = vmatprep.subr.mxu0 0.0
      %2674 = vmatpush1.msra.mxu0 0.0
      %2675 = vmatprep.subr.mxu0 0.0
      %2676 = vmatpush1.msra.mxu0 0.0
      %2677 = vmatprep.subr.mxu0 0.0
      %2678 = vmatpush1.msra.mxu0 0.0
      %2679 = vmatprep.subr.mxu0 0.0
      %2680 = vmatpush1.msra.mxu0 0.0
      %2681 = vmatprep.subr.mxu0 0.0
      %2682 = vmatpush1.msra.mxu0 0.0
      %2683 = vmatprep.subr.mxu0 0.0
      %2684 = vmatpush1.msra.mxu0 0.0
      %2685 = vmatprep.subr.mxu0 0.0
      %2686 = vmatpush1.msra.mxu0 0.0
      %2687 = vmatprep.subr.mxu0 0.0
      %2688 = vmatpush1.msra.mxu0 0.0
      %2689 = vmatprep.subr.mxu0 0.0
      %2690 = vmatpush1.msra.mxu0 0.0
      %2691 = vmatprep.subr.mxu0 0.0
      %2692 = vmatpush1.msra.mxu0 0.0
      %2693 = vmatprep.mubr.f32.mxu0 0.0
      %2694 = vmatmul.mubr.f32.gmra.mrb[0].mxu0 %v2627
      %v2695 = vpop.f32.mrb[0].mxu0
      %v2696 = vadd.f32 0.0, %v2695
      %v2697 = vpop.f32.mrb[0].mxu0
      %2698 = vdwg.mxu0
      %v2700 = vsel %vm757, %v2696, 0
      %2702 = vmatprep.subr.mxu0 0.0
      %2703 = vmatpush1.msra.mxu0 %v2051
      %2704 = vmatprep.subr.mxu0 0.0
      %2705 = vmatpush1.msra.mxu0 0.0
      %2706 = vmatprep.subr.mxu0 0.0
      %2707 = vmatpush1.msra.mxu0 0.0
      %2708 = vmatprep.subr.mxu0 0.0
      %2709 = vmatpush1.msra.mxu0 0.0
      %2710 = vmatprep.subr.mxu0 0.0
      %2711 = vmatpush1.msra.mxu0 0.0
      %2712 = vmatprep.subr.mxu0 0.0
      %2713 = vmatpush1.msra.mxu0 0.0
      %2714 = vmatprep.subr.mxu0 0.0
      %2715 = vmatpush1.msra.mxu0 0.0
      %2716 = vmatprep.subr.mxu0 0.0
      %2717 = vmatpush1.msra.mxu0 0.0
      %2718 = vmatprep.subr.mxu0 0.0
      %2719 = vmatpush1.msra.mxu0 0.0
      %2720 = vmatprep.subr.mxu0 0.0
      %2721 = vmatpush1.msra.mxu0 0.0
      %2722 = vmatprep.subr.mxu0 0.0
      %2723 = vmatpush1.msra.mxu0 0.0
      %2724 = vmatprep.subr.mxu0 0.0
      %2725 = vmatpush1.msra.mxu0 0.0
      %2726 = vmatprep.subr.mxu0 0.0
      %2727 = vmatpush1.msra.mxu0 0.0
      %2728 = vmatprep.subr.mxu0 0.0
      %2729 = vmatpush1.msra.mxu0 0.0
      %2730 = vmatprep.subr.mxu0 0.0
      %2731 = vmatpush1.msra.mxu0 0.0
      %2732 = vmatprep.subr.mxu0 0.0
      %2733 = vmatpush1.msra.mxu0 0.0
      %2734 = vmatprep.subr.mxu0 0.0
      %2735 = vmatpush1.msra.mxu0 0.0
      %2736 = vmatprep.subr.mxu0 0.0
      %2737 = vmatpush1.msra.mxu0 0.0
      %2738 = vmatprep.subr.mxu0 0.0
      %2739 = vmatpush1.msra.mxu0 0.0
      %2740 = vmatprep.subr.mxu0 0.0
      %2741 = vmatpush1.msra.mxu0 0.0
      %2742 = vmatprep.subr.mxu0 0.0
      %2743 = vmatpush1.msra.mxu0 0.0
      %2744 = vmatprep.subr.mxu0 0.0
      %2745 = vmatpush1.msra.mxu0 0.0
      %2746 = vmatprep.subr.mxu0 0.0
      %2747 = vmatpush1.msra.mxu0 0.0
      %2748 = vmatprep.subr.mxu0 0.0
      %2749 = vmatpush1.msra.mxu0 0.0
      %2750 = vmatprep.subr.mxu0 0.0
      %2751 = vmatpush1.msra.mxu0 0.0
      %2752 = vmatprep.subr.mxu0 0.0
      %2753 = vmatpush1.msra.mxu0 0.0
      %2754 = vmatprep.subr.mxu0 0.0
      %2755 = vmatpush1.msra.mxu0 0.0
      %2756 = vmatprep.subr.mxu0 0.0
      %2757 = vmatpush1.msra.mxu0 0.0
      %2758 = vmatprep.subr.mxu0 0.0
      %2759 = vmatpush1.msra.mxu0 0.0
      %2760 = vmatprep.subr.mxu0 0.0
      %2761 = vmatpush1.msra.mxu0 0.0
      %2762 = vmatprep.subr.mxu0 0.0
      %2763 = vmatpush1.msra.mxu0 0.0
      %2764 = vmatprep.subr.mxu0 0.0
      %2765 = vmatpush1.msra.mxu0 0.0
      %2766 = vmatprep.mubr.f32.mxu0 0.0
      %2767 = vmatmul.mubr.f32.gmra.mrb[0].mxu0 %v2700
      %v2768 = vpop.f32.mrb[0].mxu0
      %v2769 = vadd.f32 0.0, %v2768
      %v2770 = vpop.f32.mrb[0].mxu0
      %2771 = vdwg.mxu0
      %v2772 = vadd.f32 %v2529, %v2769
      %2773 = vrot.lane.b32.xlu0 %v2045, 104
      %v2774 = vpop.permute.xlu0 %2773
      %2775 = vrot.lane.b32.xlu0 %v2045, 72
      %v2776 = vpop.permute.xlu0 %2775
      %v2777 = vsel %vm757, %v2774, 0
      %v2779 = vsel %vm757, %v2776, 0
      %2781 = vmatprep.subr.mxu0 0.0
      %2782 = vmatpush1.xpose.msra.mxu0 %v2779
      %2783 = vmatprep.subr.mxu0 0.0
      %2784 = vmatpush1.xpose.msra.mxu0 0.0
      %2785 = vmatprep.subr.mxu0 0.0
      %2786 = vmatpush1.xpose.msra.mxu0 0.0
      %2787 = vmatprep.subr.mxu0 0.0
      %2788 = vmatpush1.xpose.msra.mxu0 0.0
      %2789 = vmatprep.subr.mxu0 0.0
      %2790 = vmatpush1.xpose.msra.mxu0 0.0
      %2791 = vmatprep.subr.mxu0 0.0
      %2792 = vmatpush1.xpose.msra.mxu0 0.0
      %2793 = vmatprep.subr.mxu0 0.0
      %2794 = vmatpush1.xpose.msra.mxu0 0.0
      %2795 = vmatprep.subr.mxu0 0.0
      %2796 = vmatpush1.xpose.msra.mxu0 0.0
      %2797 = vmatprep.subr.mxu0 0.0
      %2798 = vmatpush1.xpose.msra.mxu0 0.0
      %2799 = vmatprep.subr.mxu0 0.0
      %2800 = vmatpush1.xpose.msra.mxu0 0.0
      %2801 = vmatprep.subr.mxu0 0.0
      %2802 = vmatpush1.xpose.msra.mxu0 0.0
      %2803 = vmatprep.subr.mxu0 0.0
      %2804 = vmatpush1.xpose.msra.mxu0 0.0
      %2805 = vmatprep.subr.mxu0 0.0
      %2806 = vmatpush1.xpose.msra.mxu0 0.0
      %2807 = vmatprep.subr.mxu0 0.0
      %2808 = vmatpush1.xpose.msra.mxu0 0.0
      %2809 = vmatprep.subr.mxu0 0.0
      %2810 = vmatpush1.xpose.msra.mxu0 0.0
      %2811 = vmatprep.subr.mxu0 0.0
      %2812 = vmatpush1.xpose.msra.mxu0 0.0
      %2813 = vmatprep.subr.mxu0 0.0
      %2814 = vmatpush1.xpose.msra.mxu0 0.0
      %2815 = vmatprep.subr.mxu0 0.0
      %2816 = vmatpush1.xpose.msra.mxu0 0.0
      %2817 = vmatprep.subr.mxu0 0.0
      %2818 = vmatpush1.xpose.msra.mxu0 0.0
      %2819 = vmatprep.subr.mxu0 0.0
      %2820 = vmatpush1.xpose.msra.mxu0 0.0
      %2821 = vmatprep.subr.mxu0 0.0
      %2822 = vmatpush1.xpose.msra.mxu0 0.0
      %2823 = vmatprep.subr.mxu0 0.0
      %2824 = vmatpush1.xpose.msra.mxu0 0.0
      %2825 = vmatprep.subr.mxu0 0.0
      %2826 = vmatpush1.xpose.msra.mxu0 0.0
      %2827 = vmatprep.subr.mxu0 0.0
      %2828 = vmatpush1.xpose.msra.mxu0 0.0
      %2829 = vmatprep.subr.mxu0 0.0
      %2830 = vmatpush1.xpose.msra.mxu0 0.0
      %2831 = vmatprep.subr.mxu0 0.0
      %2832 = vmatpush1.xpose.msra.mxu0 0.0
      %2833 = vmatprep.subr.mxu0 0.0
      %2834 = vmatpush1.xpose.msra.mxu0 0.0
      %2835 = vmatprep.subr.mxu0 0.0
      %2836 = vmatpush1.xpose.msra.mxu0 0.0
      %2837 = vmatprep.subr.mxu0 0.0
      %2838 = vmatpush1.xpose.msra.mxu0 0.0
      %2839 = vmatprep.subr.mxu0 0.0
      %2840 = vmatpush1.xpose.msra.mxu0 0.0
      %2841 = vmatprep.subr.mxu0 0.0
      %2842 = vmatpush1.xpose.msra.mxu0 0.0
      %2843 = vmatprep.subr.mxu0 0.0
      %2844 = vmatpush1.xpose.msra.mxu0 0.0
      %2845 = vmatprep.mubr.f32.mxu0 0.0
      %2846 = vmatmul.mubr.f32.gmra.mrb[0].mxu0 %v2777
      %v2847 = vpop.f32.mrb[0].mxu0
      %v2848 = vadd.f32 0.0, %v2847
      %v2849 = vpop.f32.mrb[0].mxu0
      %2850 = vdwg.mxu0
      %v2851 = vmul.f32 %v2848, 0.35355338
      %v2852 = vadd.f32 %v2851, %v837
      %v2853 = vsel %vm757, %v2852, -inf
      %2854 = vmax.xlane.f32.xlu0 %v2853
      %v2855 = vpop.xlane.xlu0 %2854
      %v2856 = vsub.f32 %v2852, %v2855
      %v2857 = vmul.f32 %v2856, 1.442695
      %v2858 = vpow.pop %v2857
      %v2859 = vsel %vm757, %v2858, 0.0
      %2860 = vadd.xlane.f32.xlu0 %v2859
      %v2861 = vpop.xlane.xlu0 %2860
      %v2862 = vrcp.pop %v2861
      %v2863 = vmul.f32 %v2858, %v2862
      %2864 = vrot.lane.b32.xlu0 %v2045, 40
      %v2865 = vpop.permute.xlu0 %2864
      %v2868 = vsel %vm757, %v2863, 0
      %2870 = vmatprep.subr.mxu0 0.0
      %2871 = vmatpush1.msra.mxu0 %v2865
      %2872 = vmatprep.subr.mxu0 0.0
      %2873 = vmatpush1.msra.mxu0 0.0
      %2874 = vmatprep.subr.mxu0 0.0
      %2875 = vmatpush1.msra.mxu0 0.0
      %2876 = vmatprep.subr.mxu0 0.0
      %2877 = vmatpush1.msra.mxu0 0.0
      %2878 = vmatprep.subr.mxu0 0.0
      %2879 = vmatpush1.msra.mxu0 0.0
      %2880 = vmatprep.subr.mxu0 0.0
      %2881 = vmatpush1.msra.mxu0 0.0
      %2882 = vmatprep.subr.mxu0 0.0
      %2883 = vmatpush1.msra.mxu0 0.0
      %2884 = vmatprep.subr.mxu0 0.0
      %2885 = vmatpush1.msra.mxu0 0.0
      %2886 = vmatprep.subr.mxu0 0.0
      %2887 = vmatpush1.msra.mxu0 0.0
      %2888 = vmatprep.subr.mxu0 0.0
      %2889 = vmatpush1.msra.mxu0 0.0
      %2890 = vmatprep.subr.mxu0 0.0
      %2891 = vmatpush1.msra.mxu0 0.0
      %2892 = vmatprep.subr.mxu0 0.0
      %2893 = vmatpush1.msra.mxu0 0.0
      %2894 = vmatprep.subr.mxu0 0.0
      %2895 = vmatpush1.msra.mxu0 0.0
      %2896 = vmatprep.subr.mxu0 0.0
      %2897 = vmatpush1.msra.mxu0 0.0
      %2898 = vmatprep.subr.mxu0 0.0
      %2899 = vmatpush1.msra.mxu0 0.0
      %2900 = vmatprep.subr.mxu0 0.0
      %2901 = vmatpush1.msra.mxu0 0.0
      %2902 = vmatprep.subr.mxu0 0.0
      %2903 = vmatpush1.msra.mxu0 0.0
      %2904 = vmatprep.subr.mxu0 0.0
      %2905 = vmatpush1.msra.mxu0 0.0
      %2906 = vmatprep.subr.mxu0 0.0
      %2907 = vmatpush1.msra.mxu0 0.0
      %2908 = vmatprep.subr.mxu0 0.0
      %2909 = vmatpush1.msra.mxu0 0.0
      %2910 = vmatprep.subr.mxu0 0.0
      %2911 = vmatpush1.msra.mxu0 0.0
      %2912 = vmatprep.subr.mxu0 0.0
      %2913 = vmatpush1.msra.mxu0 0.0
      %2914 = vmatprep.subr.mxu0 0.0
      %2915 = vmatpush1.msra.mxu0 0.0
      %2916 = vmatprep.subr.mxu0 0.0
      %2917 = vmatpush1.msra.mxu0 0.0
      %2918 = vmatprep.subr.mxu0 0.0
      %2919 = vmatpush1.msra.mxu0 0.0
      %2920 = vmatprep.subr.mxu0 0.0
      %2921 = vmatpush1.msra.mxu0 0.0
      %2922 = vmatprep.subr.mxu0 0.0
      %2923 = vmatpush1.msra.mxu0 0.0
      %2924 = vmatprep.subr.mxu0 0.0
      %2925 = vmatpush1.msra.mxu0 0.0
      %2926 = vmatprep.subr.mxu0 0.0
      %2927 = vmatpush1.msra.mxu0 0.0
      %2928 = vmatprep.subr.mxu0 0.0
      %2929 = vmatpush1.msra.mxu0 0.0
      %2930 = vmatprep.subr.mxu0 0.0
      %2931 = vmatpush1.msra.mxu0 0.0
      %2932 = vmatprep.subr.mxu0 0.0
      %2933 = vmatpush1.msra.mxu0 0.0
      %2934 = vmatprep.mubr.f32.mxu0 0.0
      %2935 = vmatmul.mubr.f32.gmra.mrb[0].mxu0 %v2868
      %v2936 = vpop.f32.mrb[0].mxu0
      %v2937 = vadd.f32 0.0, %v2936
      %v2938 = vpop.f32.mrb[0].mxu0
      %2939 = vdwg.mxu0
      %v2941 = vsel %vm757, %v2937, 0
      %2943 = vmatprep.subr.mxu0 0.0
      %2944 = vmatpush1.msra.mxu0 %v2052
      %2945 = vmatprep.subr.mxu0 0.0
      %2946 = vmatpush1.msra.mxu0 0.0
      %2947 = vmatprep.subr.mxu0 0.0
      %2948 = vmatpush1.msra.mxu0 0.0
      %2949 = vmatprep.subr.mxu0 0.0
      %2950 = vmatpush1.msra.mxu0 0.0
      %2951 = vmatprep.subr.mxu0 0.0
      %2952 = vmatpush1.msra.mxu0 0.0
      %2953 = vmatprep.subr.mxu0 0.0
      %2954 = vmatpush1.msra.mxu0 0.0
      %2955 = vmatprep.subr.mxu0 0.0
      %2956 = vmatpush1.msra.mxu0 0.0
      %2957 = vmatprep.subr.mxu0 0.0
      %2958 = vmatpush1.msra.mxu0 0.0
      %2959 = vmatprep.subr.mxu0 0.0
      %2960 = vmatpush1.msra.mxu0 0.0
      %2961 = vmatprep.subr.mxu0 0.0
      %2962 = vmatpush1.msra.mxu0 0.0
      %2963 = vmatprep.subr.mxu0 0.0
      %2964 = vmatpush1.msra.mxu0 0.0
      %2965 = vmatprep.subr.mxu0 0.0
      %2966 = vmatpush1.msra.mxu0 0.0
      %2967 = vmatprep.subr.mxu0 0.0
      %2968 = vmatpush1.msra.mxu0 0.0
      %2969 = vmatprep.subr.mxu0 0.0
      %2970 = vmatpush1.msra.mxu0 0.0
      %2971 = vmatprep.subr.mxu0 0.0
      %2972 = vmatpush1.msra.mxu0 0.0
      %2973 = vmatprep.subr.mxu0 0.0
      %2974 = vmatpush1.msra.mxu0 0.0
      %2975 = vmatprep.subr.mxu0 0.0
      %2976 = vmatpush1.msra.mxu0 0.0
      %2977 = vmatprep.subr.mxu0 0.0
      %2978 = vmatpush1.msra.mxu0 0.0
      %2979 = vmatprep.subr.mxu0 0.0
      %2980 = vmatpush1.msra.mxu0 0.0
      %2981 = vmatprep.subr.mxu0 0.0
      %2982 = vmatpush1.msra.mxu0 0.0
      %2983 = vmatprep.subr.mxu0 0.0
      %2984 = vmatpush1.msra.mxu0 0.0
      %2985 = vmatprep.subr.mxu0 0.0
      %2986 = vmatpush1.msra.mxu0 0.0
      %2987 = vmatprep.subr.mxu0 0.0
      %2988 = vmatpush1.msra.mxu0 0.0
      %2989 = vmatprep.subr.mxu0 0.0
      %2990 = vmatpush1.msra.mxu0 0.0
      %2991 = vmatprep.subr.mxu0 0.0
      %2992 = vmatpush1.msra.mxu0 0.0
      %2993 = vmatprep.subr.mxu0 0.0
      %2994 = vmatpush1.msra.mxu0 0.0
      %2995 = vmatprep.subr.mxu0 0.0
      %2996 = vmatpush1.msra.mxu0 0.0
      %2997 = vmatprep.subr.mxu0 0.0
      %2998 = vmatpush1.msra.mxu0 0.0
      %2999 = vmatprep.subr.mxu0 0.0
      %3000 = vmatpush1.msra.mxu0 0.0
      %3001 = vmatprep.subr.mxu0 0.0
      %3002 = vmatpush1.msra.mxu0 0.0
      %3003 = vmatprep.subr.mxu0 0.0
      %3004 = vmatpush1.msra.mxu0 0.0
      %3005 = vmatprep.subr.mxu0 0.0
      %3006 = vmatpush1.msra.mxu0 0.0
      %3007 = vmatprep.mubr.f32.mxu0 0.0
      %3008 = vmatmul.mubr.f32.gmra.mrb[0].mxu0 %v2941
      %v3009 = vpop.f32.mrb[0].mxu0
      %v3010 = vadd.f32 0.0, %v3009
      %v3011 = vpop.f32.mrb[0].mxu0
      %3012 = vdwg.mxu0
      %v3013 = vadd.f32 %v2772, %v3010
      %s3014 = scalar_lea.vmem %s7, 1
      %v3015 = vld [vmem:[%s3014] sm:$0x1]
      %v3017 = vlaneseq
      %v3018 = vshrl.u32 %v3017, 7
      %v3019 = vsub.s32 0, %v3018
      %v3020 = vrot.slane %v3015, %v3019
      %v3022 = vadd.f32 %v3013, %v3020
      %v3023 = vadd.f32 %v1961, %v3022
      %s3024 = scalar_lea.vmem %s8, 2
      %v3025 = vld [vmem:[%s3024] sm:$0x3]
      %v3026 = vsel %vm641, %v3023, 0.0
      %3027 = vadd.xlane.f32.xlu0 %v3026
      %v3028 = vpop.xlane.xlu0 %3027
      %v3029 = vmul.f32 %v3028, %v645
      %v3030 = vsub.f32 %v3023, %v3029
      %v3031 = vmul.f32 %v3030, %v3030
      %v3032 = vsel %vm641, %v3031, 0.0
      %3033 = vadd.xlane.f32.xlu0 %v3032
      %v3034 = vpop.xlane.xlu0 %3033
      %v3035 = vmul.f32 %v3034, %v645
      %v3036 = vadd.f32 %v3035, 1e-12
      %v3037 = vrsqrt.pop %v3036
      %v3038 = vmul.f32 %v3030, %v3037
      %v3039 = vlaneseq
      %v3040 = vshrl.u32 %v3039, 7
      %v3041 = vsub.s32 0, %v3040
      %v3042 = vrot.slane %v3025, %v3041
      %v3043 = vmul.f32 %v3038, %v3042
      %v3044 = vlaneseq
      %v3045 = vshrl.u32 %v3044, 7
      %v3046 = vsub.s32 1, %v3045
      %v3047 = vrot.slane %v3025, %v3046
      %v3048 = vadd.f32 %v3043, %v3047
      %s3049 = scalar_lea.vmem %s9, 32
      %v3050 = vld [vmem:[%s3049] sm:$0xff]
      %v3051 = vld [vmem:[%s3049 + $0x8] sm:$0xff]
      %v3052 = vld [vmem:[%s3049 + $0x10] sm:$0xff]
      %v3053 = vld [vmem:[%s3049 + $0x18] sm:$0xff]
      %s3054 = scalar_lea.vmem %s10, 1
      %v3055 = vld [vmem:[%s3054] sm:$0x1]
      %v3057 = vlaneseq
      %v3058 = vshrl.u32 %v3057, 7
      %v3059 = vsub.s32 0, %v3058
      %v3060 = vrot.slane %v3055, %v3059
      %v3063 = vsel %vm641, %v3048, 0
      %3065 = vmatprep.subr.mxu0 0.0
      %3066 = vmatpush1.msra.mxu0 %v3050
      %3067 = vmatprep.subr.mxu0 0.0
      %3068 = vmatpush1.msra.mxu0 %v3051
      %3069 = vmatprep.subr.mxu0 0.0
      %3070 = vmatpush1.msra.mxu0 %v3052
      %3071 = vmatprep.subr.mxu0 0.0
      %3072 = vmatpush1.msra.mxu0 %v3053
      %3073 = vmatprep.subr.mxu0 0.0
      %3074 = vmatpush1.msra.mxu0 0.0
      %3075 = vmatprep.subr.mxu0 0.0
      %3076 = vmatpush1.msra.mxu0 0.0
      %3077 = vmatprep.subr.mxu0 0.0
      %3078 = vmatpush1.msra.mxu0 0.0
      %3079 = vmatprep.subr.mxu0 0.0
      %3080 = vmatpush1.msra.mxu0 0.0
      %3081 = vmatprep.subr.mxu0 0.0
      %3082 = vmatpush1.msra.mxu0 0.0
      %3083 = vmatprep.subr.mxu0 0.0
      %3084 = vmatpush1.msra.mxu0 0.0
      %3085 = vmatprep.subr.mxu0 0.0
      %3086 = vmatpush1.msra.mxu0 0.0
      %3087 = vmatprep.subr.mxu0 0.0
      %3088 = vmatpush1.msra.mxu0 0.0
      %3089 = vmatprep.subr.mxu0 0.0
      %3090 = vmatpush1.msra.mxu0 0.0
      %3091 = vmatprep.subr.mxu0 0.0
      %3092 = vmatpush1.msra.mxu0 0.0
      %3093 = vmatprep.subr.mxu0 0.0
      %3094 = vmatpush1.msra.mxu0 0.0
      %3095 = vmatprep.subr.mxu0 0.0
      %3096 = vmatpush1.msra.mxu0 0.0
      %3097 = vmatprep.subr.mxu0 0.0
      %3098 = vmatpush1.msra.mxu0 0.0
      %3099 = vmatprep.subr.mxu0 0.0
      %3100 = vmatpush1.msra.mxu0 0.0
      %3101 = vmatprep.subr.mxu0 0.0
      %3102 = vmatpush1.msra.mxu0 0.0
      %3103 = vmatprep.subr.mxu0 0.0
      %3104 = vmatpush1.msra.mxu0 0.0
      %3105 = vmatprep.subr.mxu0 0.0
      %3106 = vmatpush1.msra.mxu0 0.0
      %3107 = vmatprep.subr.mxu0 0.0
      %3108 = vmatpush1.msra.mxu0 0.0
      %3109 = vmatprep.subr.mxu0 0.0
      %3110 = vmatpush1.msra.mxu0 0.0
      %3111 = vmatprep.subr.mxu0 0.0
      %3112 = vmatpush1.msra.mxu0 0.0
      %3113 = vmatprep.subr.mxu0 0.0
      %3114 = vmatpush1.msra.mxu0 0.0
      %3115 = vmatprep.subr.mxu0 0.0
      %3116 = vmatpush1.msra.mxu0 0.0
      %3117 = vmatprep.subr.mxu0 0.0
      %3118 = vmatpush1.msra.mxu0 0.0
      %3119 = vmatprep.subr.mxu0 0.0
      %3120 = vmatpush1.msra.mxu0 0.0
      %3121 = vmatprep.subr.mxu0 0.0
      %3122 = vmatpush1.msra.mxu0 0.0
      %3123 = vmatprep.subr.mxu0 0.0
      %3124 = vmatpush1.msra.mxu0 0.0
      %3125 = vmatprep.subr.mxu0 0.0
      %3126 = vmatpush1.msra.mxu0 0.0
      %3127 = vmatprep.subr.mxu0 0.0
      %3128 = vmatpush1.msra.mxu0 0.0
      %3129 = vmatprep.mubr.f32.mxu0 0.0
      %3130 = vmatmul.mubr.f32.gmra.mrb[0].mxu0 %v3063
      %v3131 = vpop.f32.mrb[0].mxu0
      %v3132 = vadd.f32 %v3060, %v3131
      %v3133 = vpop.f32.mrb[0].mxu0
      %3134 = vdwg.mxu0
      %v3135 = vmul.f32 %v3132, 0.5
      %v3136 = vmul.f32 %v3132, 0.044715
      %v3137 = vmul.f32 %v3136, %v3132
      %v3138 = vmul.f32 %v3137, %v3132
      %v3139 = vadd.f32 %v3132, %v3138
      %v3140 = vmul.f32 %v3139, 0.7978846
      %v3141 = vtanh.pop %v3140
      %v3142 = vadd.f32 %v3141, 1.0
      %v3143 = vmul.f32 %v3135, %v3142
      %s3144 = scalar_lea.vmem %s11, 64
      %v3145 = vld [vmem:[%s3144] sm:$0xff]
      %v3146 = vld [vmem:[%s3144 + $0x8] sm:$0xff]
      %v3147 = vld [vmem:[%s3144 + $0x10] sm:$0xff]
      %v3148 = vld [vmem:[%s3144 + $0x18] sm:$0xff]
      %v3149 = vld [vmem:[%s3144 + $0x20] sm:$0xff]
      %v3150 = vld [vmem:[%s3144 + $0x28] sm:$0xff]
      %v3151 = vld [vmem:[%s3144 + $0x30] sm:$0xff]
      %v3152 = vld [vmem:[%s3144 + $0x38] sm:$0xff]
      %s3153 = scalar_lea.vmem %s12, 1
      %v3154 = vld [vmem:[%s3153] sm:$0x1]
      %v3156 = vlaneseq
      %v3157 = vshrl.u32 %v3156, 7
      %v3158 = vsub.s32 0, %v3157
      %v3159 = vrot.slane %v3154, %v3158
      %v3162 = vsel %vm1863, %v3143, 0
      %3164 = vmatprep.subr.mxu0 0.0
      %3165 = vmatpush1.msra.mxu0 %v3145
      %3166 = vmatprep.subr.mxu0 0.0
      %3167 = vmatpush1.msra.mxu0 %v3146
      %3168 = vmatprep.subr.mxu0 0.0
      %3169 = vmatpush1.msra.mxu0 %v3147
      %3170 = vmatprep.subr.mxu0 0.0
      %3171 = vmatpush1.msra.mxu0 %v3148
      %3172 = vmatprep.subr.mxu0 0.0
      %3173 = vmatpush1.msra.mxu0 %v3149
      %3174 = vmatprep.subr.mxu0 0.0
      %3175 = vmatpush1.msra.mxu0 %v3150
      %3176 = vmatprep.subr.mxu0 0.0
      %3177 = vmatpush1.msra.mxu0 %v3151
      %3178 = vmatprep.subr.mxu0 0.0
      %3179 = vmatpush1.msra.mxu0 %v3152
      %3180 = vmatprep.subr.mxu0 0.0
      %3181 = vmatpush1.msra.mxu0 0.0
      %3182 = vmatprep.subr.mxu0 0.0
      %3183 = vmatpush1.msra.mxu0 0.0
      %3184 = vmatprep.subr.mxu0 0.0
      %3185 = vmatpush1.msra.mxu0 0.0
      %3186 = vmatprep.subr.mxu0 0.0
      %3187 = vmatpush1.msra.mxu0 0.0
      %3188 = vmatprep.subr.mxu0 0.0
      %3189 = vmatpush1.msra.mxu0 0.0
      %3190 = vmatprep.subr.mxu0 0.0
      %3191 = vmatpush1.msra.mxu0 0.0
      %3192 = vmatprep.subr.mxu0 0.0
      %3193 = vmatpush1.msra.mxu0 0.0
      %3194 = vmatprep.subr.mxu0 0.0
      %3195 = vmatpush1.msra.mxu0 0.0
      %3196 = vmatprep.subr.mxu0 0.0
      %3197 = vmatpush1.msra.mxu0 0.0
      %3198 = vmatprep.subr.mxu0 0.0
      %3199 = vmatpush1.msra.mxu0 0.0
      %3200 = vmatprep.subr.mxu0 0.0
      %3201 = vmatpush1.msra.mxu0 0.0
      %3202 = vmatprep.subr.mxu0 0.0
      %3203 = vmatpush1.msra.mxu0 0.0
      %3204 = vmatprep.subr.mxu0 0.0
      %3205 = vmatpush1.msra.mxu0 0.0
      %3206 = vmatprep.subr.mxu0 0.0
      %3207 = vmatpush1.msra.mxu0 0.0
      %3208 = vmatprep.subr.mxu0 0.0
      %3209 = vmatpush1.msra.mxu0 0.0
      %3210 = vmatprep.subr.mxu0 0.0
      %3211 = vmatpush1.msra.mxu0 0.0
      %3212 = vmatprep.subr.mxu0 0.0
      %3213 = vmatpush1.msra.mxu0 0.0
      %3214 = vmatprep.subr.mxu0 0.0
      %3215 = vmatpush1.msra.mxu0 0.0
      %3216 = vmatprep.subr.mxu0 0.0
      %3217 = vmatpush1.msra.mxu0 0.0
      %3218 = vmatprep.subr.mxu0 0.0
      %3219 = vmatpush1.msra.mxu0 0.0
      %3220 = vmatprep.subr.mxu0 0.0
      %3221 = vmatpush1.msra.mxu0 0.0
      %3222 = vmatprep.subr.mxu0 0.0
      %3223 = vmatpush1.msra.mxu0 0.0
      %3224 = vmatprep.subr.mxu0 0.0
      %3225 = vmatpush1.msra.mxu0 0.0
      %3226 = vmatprep.subr.mxu0 0.0
      %3227 = vmatpush1.msra.mxu0 0.0
      %3228 = vmatprep.mubr.f32.mxu0 0.0
      %3229 = vmatmul.mubr.f32.gmra.mrb[0].mxu0 %v3162
      %v3230 = vpop.f32.mrb[0].mxu0
      %v3231 = vadd.f32 %v3159, %v3230
      %v3232 = vpop.f32.mrb[0].mxu0
      %3233 = vdwg.mxu0
      %v3234 = vadd.f32 %v3048, %v3231
      %s3235 = scalar_lea.vmem %s13, 2
      %v3236 = vld [vmem:[%s3235] sm:$0x3]
      %v3237 = vsel %vm641, %v3234, 0.0
      %3238 = vadd.xlane.f32.xlu0 %v3237
      %v3239 = vpop.xlane.xlu0 %3238
      %v3240 = vmul.f32 %v3239, %v645
      %v3241 = vsub.f32 %v3234, %v3240
      %v3242 = vmul.f32 %v3241, %v3241
      %v3243 = vsel %vm641, %v3242, 0.0
      %3244 = vadd.xlane.f32.xlu0 %v3243
      %v3245 = vpop.xlane.xlu0 %3244
      %v3246 = vmul.f32 %v3245, %v645
      %v3247 = vadd.f32 %v3246, 1e-12
      %v3248 = vrsqrt.pop %v3247
      %v3249 = vmul.f32 %v3241, %v3248
      %v3250 = vlaneseq
      %v3251 = vshrl.u32 %v3250, 7
      %v3252 = vsub.s32 0, %v3251
      %v3253 = vrot.slane %v3236, %v3252
      %v3254 = vmul.f32 %v3249, %v3253
      %v3255 = vlaneseq
      %v3256 = vshrl.u32 %v3255, 7
      %v3257 = vsub.s32 1, %v3256
      %v3258 = vrot.slane %v3236, %v3257
      %v3259 = vadd.f32 %v3254, %v3258
      %v3260 = vld [vmem:[%s14] sm:$0xff]
      %v3261 = vld [vmem:[%s14 + $0x8] sm:$0xff]
      %v3262 = vld [vmem:[%s14 + $0x10] sm:$0xff]
      %v3263 = vld [vmem:[%s14 + $0x18] sm:$0xff]
      %v3264 = vld [vmem:[%s15] sm:$0x1]
      %v3266 = vlaneseq
      %v3267 = vshrl.u32 %v3266, 7
      %v3268 = vsub.s32 0, %v3267
      %v3269 = vrot.slane %v3264, %v3268
      %v3272 = vsel %vm641, %v3259, 0
      %3274 = vmatprep.subr.mxu0 0.0
      %3275 = vmatpush1.msra.mxu0 %v3260
      %3276 = vmatprep.subr.mxu0 0.0
      %3277 = vmatpush1.msra.mxu0 %v3261
      %3278 = vmatprep.subr.mxu0 0.0
      %3279 = vmatpush1.msra.mxu0 %v3262
      %3280 = vmatprep.subr.mxu0 0.0
      %3281 = vmatpush1.msra.mxu0 %v3263
      %3282 = vmatprep.subr.mxu0 0.0
      %3283 = vmatpush1.msra.mxu0 0.0
      %3284 = vmatprep.subr.mxu0 0.0
      %3285 = vmatpush1.msra.mxu0 0.0
      %3286 = vmatprep.subr.mxu0 0.0
      %3287 = vmatpush1.msra.mxu0 0.0
      %3288 = vmatprep.subr.mxu0 0.0
      %3289 = vmatpush1.msra.mxu0 0.0
      %3290 = vmatprep.subr.mxu0 0.0
      %3291 = vmatpush1.msra.mxu0 0.0
      %3292 = vmatprep.subr.mxu0 0.0
      %3293 = vmatpush1.msra.mxu0 0.0
      %3294 = vmatprep.subr.mxu0 0.0
      %3295 = vmatpush1.msra.mxu0 0.0
      %3296 = vmatprep.subr.mxu0 0.0
      %3297 = vmatpush1.msra.mxu0 0.0
      %3298 = vmatprep.subr.mxu0 0.0
      %3299 = vmatpush1.msra.mxu0 0.0
      %3300 = vmatprep.subr.mxu0 0.0
      %3301 = vmatpush1.msra.mxu0 0.0
      %3302 = vmatprep.subr.mxu0 0.0
      %3303 = vmatpush1.msra.mxu0 0.0
      %3304 = vmatprep.subr.mxu0 0.0
      %3305 = vmatpush1.msra.mxu0 0.0
      %3306 = vmatprep.subr.mxu0 0.0
      %3307 = vmatpush1.msra.mxu0 0.0
      %3308 = vmatprep.subr.mxu0 0.0
      %3309 = vmatpush1.msra.mxu0 0.0
      %3310 = vmatprep.subr.mxu0 0.0
      %3311 = vmatpush1.msra.mxu0 0.0
      %3312 = vmatprep.subr.mxu0 0.0
      %3313 = vmatpush1.msra.mxu0 0.0
      %3314 = vmatprep.subr.mxu0 0.0
      %3315 = vmatpush1.msra.mxu0 0.0
      %3316 = vmatprep.subr.mxu0 0.0
      %3317 = vmatpush1.msra.mxu0 0.0
      %3318 = vmatprep.subr.mxu0 0.0
      %3319 = vmatpush1.msra.mxu0 0.0
      %3320 = vmatprep.subr.mxu0 0.0
      %3321 = vmatpush1.msra.mxu0 0.0
      %3322 = vmatprep.subr.mxu0 0.0
      %3323 = vmatpush1.msra.mxu0 0.0
      %3324 = vmatprep.subr.mxu0 0.0
      %3325 = vmatpush1.msra.mxu0 0.0
      %3326 = vmatprep.subr.mxu0 0.0
      %3327 = vmatpush1.msra.mxu0 0.0
      %3328 = vmatprep.subr.mxu0 0.0
      %3329 = vmatpush1.msra.mxu0 0.0
      %3330 = vmatprep.subr.mxu0 0.0
      %3331 = vmatpush1.msra.mxu0 0.0
      %3332 = vmatprep.subr.mxu0 0.0
      %3333 = vmatpush1.msra.mxu0 0.0
      %3334 = vmatprep.subr.mxu0 0.0
      %3335 = vmatpush1.msra.mxu0 0.0
      %3336 = vmatprep.subr.mxu0 0.0
      %3337 = vmatpush1.msra.mxu0 0.0
      %3338 = vmatprep.mubr.f32.mxu0 0.0
      %3339 = vmatmul.mubr.f32.gmra.mrb[0].mxu0 %v3272
      %v3340 = vpop.f32.mrb[0].mxu0
      %v3341 = vadd.f32 %v3269, %v3340
      %v3342 = vpop.f32.mrb[0].mxu0
      %3343 = vdwg.mxu0
      %v3344 = vmul.f32 %v3341, 0.5
      %v3345 = vmul.f32 %v3341, 0.044715
      %v3346 = vmul.f32 %v3345, %v3341
      %v3347 = vmul.f32 %v3346, %v3341
      %v3348 = vadd.f32 %v3341, %v3347
      %v3349 = vmul.f32 %v3348, 0.7978846
      %v3350 = vtanh.pop %v3349
      %v3351 = vadd.f32 %v3350, 1.0
      %v3352 = vmul.f32 %v3344, %v3351
      %v3353 = vld [vmem:[%s16] sm:$0x1]
      %v3354 = vld [vmem:[#allocation2] sm:$0x1]
      %3356 = vset.pattern.permute.xlu0 0
      %3357 = vperm.xlu0 %3356, %v3354
      %v3358 = vpop.permute.xlu0 %3357
      %v3360 = vlaneseq
      %v3361 = vshrl.u32 %v3360, 7
      %v3362 = vsub.s32 0, %v3361
      %v3363 = vrot.slane %v3358, %v3362
      %v3365 = vsel %vm641, %v3353, 0
      %v3368 = vsel %vm641, %v3352, 0
      %3370 = vmatprep.subr.mxu0 0.0
      %3371 = vmatpush1.xpose.msra.mxu0 %v3368
      %3372 = vmatprep.subr.mxu0 0.0
      %3373 = vmatpush1.xpose.msra.mxu0 0.0
      %3374 = vmatprep.subr.mxu0 0.0
      %3375 = vmatpush1.xpose.msra.mxu0 0.0
      %3376 = vmatprep.subr.mxu0 0.0
      %3377 = vmatpush1.xpose.msra.mxu0 0.0
      %3378 = vmatprep.subr.mxu0 0.0
      %3379 = vmatpush1.xpose.msra.mxu0 0.0
      %3380 = vmatprep.subr.mxu0 0.0
      %3381 = vmatpush1.xpose.msra.mxu0 0.0
      %3382 = vmatprep.subr.mxu0 0.0
      %3383 = vmatpush1.xpose.msra.mxu0 0.0
      %3384 = vmatprep.subr.mxu0 0.0
      %3385 = vmatpush1.xpose.msra.mxu0 0.0
      %3386 = vmatprep.subr.mxu0 0.0
      %3387 = vmatpush1.xpose.msra.mxu0 0.0
      %3388 = vmatprep.subr.mxu0 0.0
      %3389 = vmatpush1.xpose.msra.mxu0 0.0
      %3390 = vmatprep.subr.mxu0 0.0
      %3391 = vmatpush1.xpose.msra.mxu0 0.0
      %3392 = vmatprep.subr.mxu0 0.0
      %3393 = vmatpush1.xpose.msra.mxu0 0.0
      %3394 = vmatprep.subr.mxu0 0.0
      %3395 = vmatpush1.xpose.msra.mxu0 0.0
      %3396 = vmatprep.subr.mxu0 0.0
      %3397 = vmatpush1.xpose.msra.mxu0 0.0
      %3398 = vmatprep.subr.mxu0 0.0
      %3399 = vmatpush1.xpose.msra.mxu0 0.0
      %3400 = vmatprep.subr.mxu0 0.0
      %3401 = vmatpush1.xpose.msra.mxu0 0.0
      %3402 = vmatprep.subr.mxu0 0.0
      %3403 = vmatpush1.xpose.msra.mxu0 0.0
      %3404 = vmatprep.subr.mxu0 0.0
      %3405 = vmatpush1.xpose.msra.mxu0 0.0
      %3406 = vmatprep.subr.mxu0 0.0
      %3407 = vmatpush1.xpose.msra.mxu0 0.0
      %3408 = vmatprep.subr.mxu0 0.0
      %3409 = vmatpush1.xpose.msra.mxu0 0.0
      %3410 = vmatprep.subr.mxu0 0.0
      %3411 = vmatpush1.xpose.msra.mxu0 0.0
      %3412 = vmatprep.subr.mxu0 0.0
      %3413 = vmatpush1.xpose.msra.mxu0 0.0
      %3414 = vmatprep.subr.mxu0 0.0
      %3415 = vmatpush1.xpose.msra.mxu0 0.0
      %3416 = vmatprep.subr.mxu0 0.0
      %3417 = vmatpush1.xpose.msra.mxu0 0.0
      %3418 = vmatprep.subr.mxu0 0.0
      %3419 = vmatpush1.xpose.msra.mxu0 0.0
      %3420 = vmatprep.subr.mxu0 0.0
      %3421 = vmatpush1.xpose.msra.mxu0 0.0
      %3422 = vmatprep.subr.mxu0 0.0
      %3423 = vmatpush1.xpose.msra.mxu0 0.0
      %3424 = vmatprep.subr.mxu0 0.0
      %3425 = vmatpush1.xpose.msra.mxu0 0.0
      %3426 = vmatprep.subr.mxu0 0.0
      %3427 = vmatpush1.xpose.msra.mxu0 0.0
      %3428 = vmatprep.subr.mxu0 0.0
      %3429 = vmatpush1.xpose.msra.mxu0 0.0
      %3430 = vmatprep.subr.mxu0 0.0
      %3431 = vmatpush1.xpose.msra.mxu0 0.0
      %3432 = vmatprep.subr.mxu0 0.0
      %3433 = vmatpush1.xpose.msra.mxu0 0.0
      %3434 = vmatprep.mubr.f32.mxu0 0.0
      %3435 = vmatmul.mubr.f32.gmra.mrb[0].mxu0 %v3365
      %v3436 = vpop.f32.mrb[0].mxu0
      %v3437 = vadd.f32 %v3363, %v3436
      %v3438 = vpop.f32.mrb[0].mxu0
      %3439 = vdwg.mxu0
      %v3440 = vmul.f32 %v3437, 1.442695
      %v3441 = vpow.pop %v3440
      %v3442 = vadd.f32 %v3441, 1.0
      %v3443 = vrcp.pop %v3442
      %v3444 = vmul.f32 1.0, %v3443
      %vm3445 = vcmask 57344
      %3446 = vst.msk [vmem:[%s631] sm:$0x1] %vm3445, %v3444
      %v3447 = vmax.f32 %v3437, 0.0
      %v3448 = vmul.f32 %v3437, %v637
      %v3449 = vsub.f32 %v3447, %v3448
      %v3450 = vand.u32 2147483647, %v3437
      %v3451 = vsub.f32 0.0, %v3450
      %v3452 = vmul.f32 %v3451, 1.442695
      %v3453 = vpow.pop %v3452
      %v3454 = vadd.f32 %v3453, 1.0
      %v3455 = vlog2.pop %v3454
      %v3456 = vmul.f32 %v3455, 0.6931472
      %v3457 = vadd.f32 %v3449, %v3456
      %v3458 = vmul.f32 %v3457, %v636
      %3459 = vst.msk [vmem:[%s634] sm:$0x1] %vm3445, %v3458
      %p3460 = scmp.lt.s32.totalorder %s33, 1
      %s3461 = scalar_select %p3460, %s33, 1
      %s3462 = scalar_lea.vmem %s18, %s3461
      %p3463 = scmp.lt.s32.totalorder %s33, 1
      %s3464 = scalar_select %p3463, %s33, 1
      %s3465 = scalar_lea.vmem %s19, %s3464
      // Predicated region
      $region93: #{forward.1} parent=91 // pred_check
        %p3466 = pneg %p444
      $region94: #{forward.1} parent=91 // pred_check_branch
        %3468 = sbr.rel (%p3466) target = $region96
      $region95: #{forward.1} parent=91 // pred_region
        _
      $region96: #{forward.1} parent=91 // pred_fallthru
        _
      // Predicated region
      $region97: #{forward.1} parent=91 // pred_check
        %p3469 = pneg %p470
      $region98: #{forward.1} parent=91 // pred_check_branch
        %3471 = sbr.rel (%p3469) target = $region100
      $region99: #{forward.1} parent=91 // pred_region
        _
      $region100: #{forward.1} parent=91 // pred_fallthru
        _
    $region92: #{forward.1} parent=5 // pred_fallthru
      _
    %p3472 = scmp.le.s32.totalorder 2, %s28
    // Predicated region
    $region101: #{forward.1} parent=5 // pred_check
      %p3473 = pneg %p3472
    $region102: #{forward.1} parent=5 // pred_check_branch
      %3475 = sbr.rel (%p3473) target = $region104
    $region103: #{forward.1} parent=5 // pred_region
      %s3476 = ssub.s32 %s28, 2
      // Predicated region
      $region105: #{forward.1} parent=103 // pred_check
        %p3477 = pneg %p450
      $region106: #{forward.1} parent=103 // pred_check_branch
        %3479 = sbr.rel (%p3477) target = $region108
      $region107: #{forward.1} parent=103 // pred_region
        %p3480 = scmp.lt.s32.totalorder %s34, 1
        %s3481 = scalar_select %p3480, %s34, 1
        %s3482 = scalar_lea.vmem %s18, %s3481
      $region108: #{forward.1} parent=103 // pred_fallthru
        _
      // Predicated region
      $region109: #{forward.1} parent=103 // pred_check
        %p3483 = pneg %p476
      $region110: #{forward.1} parent=103 // pred_check_branch
        %3485 = sbr.rel (%p3483) target = $region112
      $region111: #{forward.1} parent=103 // pred_region
        %p3486 = scmp.lt.s32.totalorder %s34, 1
        %s3487 = scalar_select %p3486, %s34, 1
        %s3488 = scalar_lea.vmem %s19, %s3487
      $region112: #{forward.1} parent=103 // pred_fallthru
        _
    $region104: #{forward.1} parent=5 // pred_fallthru
      _
  $region6: #{forward.1} parent=0 // loop_footer
    %s32 = sadd.s32 1, %s28
  $region7: #{forward.1} parent=0 // loop_footer_branch
    %27 = sbr.rel target = $region3
  $region8: #{forward.1} parent=0 // loop_exit
    _

</llo_original>
